<compile_context>
chip_gen: v6e
topology: v6e:2x2x1
jax: 0.10.0
libtpu: 0.0.40
codegen_flags: <defaults>
</compile_context>

<pallas_src>
import functools

import jax
import jax.numpy as jnp
import numpy as np
from jax.experimental import pallas as pl
from jax.experimental.pallas import tpu as pltpu


def cross_modal_attn_kernel(lang_ref, vis_ref,
                            wq_ref, bq_ref, wkv_ref, bkv_ref,
                            wo_ref, bo_ref, gamma_ref, beta_ref,
                            out_ref, *, num_heads, head_dim, eps):
    """One grid step == Bt batch elements. Weights stay VMEM-resident (unblocked)."""
    Bt, L, Dl = lang_ref.shape
    _, V, Dv = vis_ref.shape
    Hh = num_heads * head_dim

    x = lang_ref[...]                         # (Bt, L, Dl) f32 (kept for residual)
    x2 = x.reshape(Bt * L, Dl)                # f32
    xb = x2.astype(jnp.bfloat16)              # bf16 for MXU
    vb = vis_ref[...].reshape(Bt * V, Dv)     # bf16 from wrapper

    # Q projection (1/sqrt(head_dim) already folded into wq/bq).  Bias add is
    # fused with the bf16 cast so the f32 slab dies immediately.
    qb = (jnp.dot(xb, wq_ref[...], preferred_element_type=jnp.float32)
          + bq_ref[...]).astype(jnp.bfloat16).reshape(Bt, L, Hh)

    # Fused K/V projection: single (Bt*V, Dv) @ (Dv, 2*Hh) matmul, then slice.
    kv = (jnp.dot(vb, wkv_ref[...], preferred_element_type=jnp.float32)
          + bkv_ref[...]).astype(jnp.bfloat16)                       # (Bt*V, 2*Hh)
    kb = kv[:, :Hh].reshape(Bt, V, Hh)
    vvb = kv[:, Hh:].reshape(Bt, V, Hh)

    # Per-head attention core (num_heads is small; projections dominate FLOPs).
    # Heads are lane-concatenated so the output projection is a single K=Hh dot.
    heads = []
    for h in range(num_heads):
        lo, hi = h * head_dim, (h + 1) * head_dim
        qh = qb[:, :, lo:hi]                  # (Bt, L, hd)
        kh = kb[:, :, lo:hi]                  # (Bt, V, hd)
        vh = vvb[:, :, lo:hi]                 # (Bt, V, hd)

        # scores: last-dim contraction -> no transpose / relayout.
        s = jnp.einsum('bld,bvd->blv', qh, kh,
                       preferred_element_type=jnp.float32)           # (Bt, L, V)
        # TODO(synk): optional attention_mask (scores.masked_fill(mask==0, -1e9)) not wired in.

        m = jnp.max(s, axis=-1, keepdims=True)
        e = jnp.exp(s - m)
        p = e * pl.reciprocal(jnp.sum(e, axis=-1, keepdims=True), approx=True)

        pv = jnp.einsum('blv,bvd->bld', p.astype(jnp.bfloat16), vh,
                        preferred_element_type=jnp.float32)          # (Bt, L, hd)
        heads.append(pv.astype(jnp.bfloat16))

    attn = jnp.concatenate(heads, axis=-1).reshape(Bt * L, Hh)       # bf16 (Bt*L, Hh)

    # Single output projection over the full Hh contraction depth.
    o = jnp.dot(attn, wo_ref[...], preferred_element_type=jnp.float32)  # (Bt*L, Dl)

    # Output bias + residual + LayerNorm, all in f32.
    res = x2 + o + bo_ref[...]
    mu = jnp.mean(res, axis=-1, keepdims=True)
    var = jnp.mean(jnp.square(res - mu), axis=-1, keepdims=True)
    y = (res - mu) * jax.lax.rsqrt(var + eps)
    y = y * gamma_ref[...] + beta_ref[...]
    out_ref[...] = y.reshape(Bt, L, Dl)


def _vmem_limit_bytes():
    # Raise the scoped VMEM limit, but stay under physical capacity (v7x: 64 MiB).
    try:
        cap = pltpu.get_tpu_info().vmem_capacity_bytes
        return int(min(cap * 3 // 4, 96 * 1024 * 1024))
    except Exception:
        return 64 * 1024 * 1024


def _pick_batch_tile(B, L):
    # Largest divisor of B with <= ~1024 rows (Bt*L) per grid step so the
    # projection matmuls fill the MXU M dim and the ~0.35us/step pipeline
    # overhead is amortized.  Prefer an even grid (B//Bt) so v7x's two
    # TensorCores both get work; grid==1 is fine on v5e/v6e (single TC).
    divisors = [d for d in range(1, B + 1) if B % d == 0]
    fits = [d for d in divisors if d * L <= 1024]
    even_grid = [d for d in fits if (B // d) % 2 == 0]
    if even_grid:
        return max(even_grid)
    if fits:
        return max(fits)
    return 1


def cross_modal_attention(lang, vis, params, *, num_heads, head_dim,
                          batch_tile=None, eps=1e-5):
    B, L, Dl = lang.shape
    _, V, Dv = vis.shape
    Hh = num_heads * head_dim

    if batch_tile is None:
        batch_tile = _pick_batch_tile(B, L)
    Bt = batch_tile
    assert B % Bt == 0, "batch_tile must divide batch size"

    # One-time constant folding: attention scale into the Q projection,
    # K/V weight fusion, bf16 cast of matmul weights and vision activations.
    scale = 1.0 / (head_dim ** 0.5)
    wq = (params["wq"] * scale).astype(jnp.bfloat16)
    bq = (params["bq"] * scale).astype(jnp.float32)
    wkv = jnp.concatenate([params["wk"], params["wv"]], axis=-1).astype(jnp.bfloat16)
    bkv = jnp.concatenate([params["bk"], params["bv"]], axis=-1).astype(jnp.float32)
    wo = params["wo"].astype(jnp.bfloat16)
    vis_bf = vis.astype(jnp.bfloat16)

    kernel = functools.partial(cross_modal_attn_kernel,
                               num_heads=num_heads, head_dim=head_dim, eps=eps)

    # Unblocked, VMEM-resident spec for weights/biases/norm params: one copy,
    # no per-step double-buffering.
    # TODO(synk): at production hidden sizes on v7x (64 MiB VMEM) the full
    # weight set may not fit; would need an Hh/Dl-tiling grid axis there.
    vmem_full = pl.BlockSpec(memory_space=pltpu.MemorySpace.VMEM)

    flops = (2 * B * L * Dl * Hh            # Q projection
             + 2 * B * V * Dv * (2 * Hh)    # fused K/V projection
             + 2 * B * L * V * Hh           # scores
             + 2 * B * L * V * Hh           # attn @ V
             + 2 * B * L * Hh * Dl)         # output projection
    transcendentals = B * num_heads * L * V  # softmax exps
    bytes_accessed = (B * L * Dl * 4        # lang in (f32)
                      + B * V * Dv * 2      # vis in (bf16)
                      + (Dl * Hh + 2 * Dv * Hh + Hh * Dl) * 2   # bf16 weights
                      + (4 * Hh + 3 * Dl) * 4                   # biases + gamma/beta
                      + B * L * Dl * 4)     # out (f32)

    return pl.pallas_call(
        kernel,
        out_shape=jax.ShapeDtypeStruct((B, L, Dl), jnp.float32),
        grid=(B // Bt,),
        in_specs=[
            pl.BlockSpec((Bt, L, Dl), lambda b: (b, 0, 0)),   # language features (f32)
            pl.BlockSpec((Bt, V, Dv), lambda b: (b, 0, 0)),   # vision features (bf16)
            vmem_full, vmem_full,                             # Wq (scaled, bf16), bq (scaled, f32)
            vmem_full, vmem_full,                             # Wk||Wv (bf16), bk||bv (f32)
            vmem_full, vmem_full,                             # Wo (bf16), bo (f32)
            vmem_full, vmem_full,                             # LayerNorm gamma, beta (f32)
        ],
        out_specs=pl.BlockSpec((Bt, L, Dl), lambda b: (b, 0, 0)),
        compiler_params=pltpu.CompilerParams(
            dimension_semantics=("parallel",),
            vmem_limit_bytes=_vmem_limit_bytes()),
        cost_estimate=pl.CostEstimate(flops=flops,
                                      transcendentals=transcendentals,
                                      bytes_accessed=bytes_accessed),
    )(lang, vis_bf,
      wq, bq, wkv, bkv,
      wo, params["bo"], params["gamma"], params["beta"])


def reference(lang, vis, params, *, num_heads, head_dim, eps=1e-5):
    """Pure-JAX f32 reference mirroring the PyTorch forward (eval mode, no mask)."""
    B, L, Dl = lang.shape
    _, V, _ = vis.shape
    Hh = num_heads * head_dim
    with jax.default_matmul_precision("highest"):
        q = (lang @ params["wq"] + params["bq"]).reshape(B, L, num_heads, head_dim)
        k = (vis @ params["wk"] + params["bk"]).reshape(B, V, num_heads, head_dim)
        v = (vis @ params["wv"] + params["bv"]).reshape(B, V, num_heads, head_dim)
        q = jnp.transpose(q, (0, 2, 1, 3))
        k = jnp.transpose(k, (0, 2, 1, 3))
        v = jnp.transpose(v, (0, 2, 1, 3))
        s = jnp.einsum("bhld,bhvd->bhlv", q, k) / (head_dim ** 0.5)
        p = jax.nn.softmax(s, axis=-1)
        a = jnp.einsum("bhlv,bhvd->bhld", p, v)
        a = jnp.transpose(a, (0, 2, 1, 3)).reshape(B, L, Hh)
        o = a @ params["wo"] + params["bo"]
    res = lang + o
    mu = jnp.mean(res, axis=-1, keepdims=True)
    var = jnp.mean((res - mu) ** 2, axis=-1, keepdims=True)
    return (res - mu) * jax.lax.rsqrt(var + eps) * params["gamma"] + params["beta"]


if __name__ == "__main__":
    # Scaled-down config with the module's shape relations preserved:
    #   q_proj: D_lang -> H*hd, k/v_proj: D_vis -> H*hd, o_proj: H*hd -> D_lang
    # head_dim = 128 (as in the real config) and lane-dense hidden dims.
    B, L, V = 16, 16, 32
    D_LANG, D_VIS = 256, 128
    NUM_HEADS, HEAD_DIM = 2, 128
    HH = NUM_HEADS * HEAD_DIM        # fusion_hidden_size = 256

    key = jax.random.PRNGKey(0)
    ks = jax.random.split(key, 12)
    scale = 0.02
    params = {
        "wq": scale * jax.random.normal(ks[0], (D_LANG, HH), jnp.float32),
        "bq": scale * jax.random.normal(ks[1], (1, HH), jnp.float32),
        "wk": scale * jax.random.normal(ks[2], (D_VIS, HH), jnp.float32),
        "bk": scale * jax.random.normal(ks[3], (1, HH), jnp.float32),
        "wv": scale * jax.random.normal(ks[4], (D_VIS, HH), jnp.float32),
        "bv": scale * jax.random.normal(ks[5], (1, HH), jnp.float32),
        "wo": scale * jax.random.normal(ks[6], (HH, D_LANG), jnp.float32),
        "bo": scale * jax.random.normal(ks[7], (1, D_LANG), jnp.float32),
        "gamma": jnp.ones((1, D_LANG), jnp.float32),   # nn.LayerNorm defaults
        "beta": jnp.zeros((1, D_LANG), jnp.float32),
    }

    lang = jax.random.normal(ks[8], (B, L, D_LANG), jnp.float32)
    vis = jax.random.normal(ks[9], (B, V, D_VIS), jnp.float32)

    out = cross_modal_attention(lang, vis, params,
                                num_heads=NUM_HEADS, head_dim=HEAD_DIM)
    out = jax.block_until_ready(out)

    ref = jax.block_until_ready(
        reference(lang, vis, params, num_heads=NUM_HEADS, head_dim=HEAD_DIM))

    # Tolerance accounts for bf16 MXU operands + approx reciprocal vs f32 reference.
    np.testing.assert_allclose(np.asarray(out), np.asarray(ref), rtol=5e-3, atol=5e-3)

    print("KERNEL_OK")
</pallas_src>

<mosaic_0001>
module attributes {stable_mosaic.version = 11 : i64} {
  func.func @cross_modal_attn_kernel(%arg0: i32, %arg1: memref<8x16x256xf32, #tpu.memory_space<vmem>>, %arg2: memref<8x32x128xbf16, #tpu.memory_space<vmem>>, %arg3: memref<256x256xbf16, #tpu.memory_space<vmem>>, %arg4: memref<1x256xf32, #tpu.memory_space<vmem>>, %arg5: memref<128x512xbf16, #tpu.memory_space<vmem>>, %arg6: memref<1x512xf32, #tpu.memory_space<vmem>>, %arg7: memref<256x256xbf16, #tpu.memory_space<vmem>>, %arg8: memref<1x256xf32, #tpu.memory_space<vmem>>, %arg9: memref<1x256xf32, #tpu.memory_space<vmem>>, %arg10: memref<1x256xf32, #tpu.memory_space<vmem>>, %arg11: memref<8x16x256xf32, #tpu.memory_space<vmem>>) attributes {dimension_semantics = [#tpu.dimension_semantics<parallel>], iteration_bounds = array<i64: 2>, scalar_prefetch = 0 : i64, scratch_operands = 0 : i64, tpu.core_type = #tpu.core_type<tc>, window_params = [{transform_indices = @transform_0, window_bounds = array<i64: 8, 16, 256>}, {transform_indices = @transform_1, window_bounds = array<i64: 8, 32, 128>}, {pipeline_mode = #tpu.pipeline_mode<synchronous>, transform_indices = @transform_2, window_bounds = array<i64: 256, 256>}, {pipeline_mode = #tpu.pipeline_mode<synchronous>, transform_indices = @transform_3, window_bounds = array<i64: 1, 256>}, {pipeline_mode = #tpu.pipeline_mode<synchronous>, transform_indices = @transform_4, window_bounds = array<i64: 128, 512>}, {pipeline_mode = #tpu.pipeline_mode<synchronous>, transform_indices = @transform_5, window_bounds = array<i64: 1, 512>}, {pipeline_mode = #tpu.pipeline_mode<synchronous>, transform_indices = @transform_6, window_bounds = array<i64: 256, 256>}, {pipeline_mode = #tpu.pipeline_mode<synchronous>, transform_indices = @transform_7, window_bounds = array<i64: 1, 256>}, {pipeline_mode = #tpu.pipeline_mode<synchronous>, transform_indices = @transform_8, window_bounds = array<i64: 1, 256>}, {pipeline_mode = #tpu.pipeline_mode<synchronous>, transform_indices = @transform_9, window_bounds = array<i64: 1, 256>}, {transform_indices = @transform_10, window_bounds = array<i64: 8, 16, 256>}]} {
    %c0 = arith.constant 0 : index
    %c0_0 = arith.constant 0 : index
    %c0_1 = arith.constant 0 : index
    %0 = vector.load %arg1[%c0, %c0_0, %c0_1] : memref<8x16x256xf32, #tpu.memory_space<vmem>>, vector<8x16x256xf32>
    %1 = vector.shape_cast %0 : vector<8x16x256xf32> to vector<128x256xf32>
    %2 = arith.truncf %1 : vector<128x256xf32> to vector<128x256xbf16>
    %c0_2 = arith.constant 0 : index
    %c0_3 = arith.constant 0 : index
    %c0_4 = arith.constant 0 : index
    %3 = vector.load %arg2[%c0_2, %c0_3, %c0_4] : memref<8x32x128xbf16, #tpu.memory_space<vmem>>, vector<8x32x128xbf16>
    %4 = vector.shape_cast %3 : vector<8x32x128xbf16> to vector<256x128xbf16>
    %c0_5 = arith.constant 0 : index
    %c0_6 = arith.constant 0 : index
    %5 = vector.load %arg3[%c0_5, %c0_6] : memref<256x256xbf16, #tpu.memory_space<vmem>>, vector<256x256xbf16>
    %cst = arith.constant dense<0.000000e+00> : vector<128x256xf32>
    %6 = tpu.matmul %2, %5, %cst {dimension_numbers = #tpu.dot_dimension_numbers<[1], [0], [0], [1], [0, 0, 1, 1], [], []>} : vector<128x256xbf16>, vector<256x256xbf16>, vector<128x256xf32> -> vector<128x256xf32>
    %c0_7 = arith.constant 0 : index
    %c0_8 = arith.constant 0 : index
    %7 = vector.load %arg4[%c0_7, %c0_8] : memref<1x256xf32, #tpu.memory_space<vmem>>, vector<1x256xf32>
    %8 = vector.broadcast %7 : vector<1x256xf32> to vector<128x256xf32>
    %9 = arith.addf %6, %8 : vector<128x256xf32>
    %10 = arith.truncf %9 : vector<128x256xf32> to vector<128x256xbf16>
    %11 = vector.shape_cast %10 : vector<128x256xbf16> to vector<8x16x256xbf16>
    %c0_9 = arith.constant 0 : index
    %c0_10 = arith.constant 0 : index
    %12 = vector.load %arg5[%c0_9, %c0_10] : memref<128x512xbf16, #tpu.memory_space<vmem>>, vector<128x512xbf16>
    %cst_11 = arith.constant dense<0.000000e+00> : vector<256x512xf32>
    %13 = tpu.matmul %4, %12, %cst_11 {dimension_numbers = #tpu.dot_dimension_numbers<[1], [0], [0], [1], [0, 0, 1, 1], [], []>} : vector<256x128xbf16>, vector<128x512xbf16>, vector<256x512xf32> -> vector<256x512xf32>
    %c0_12 = arith.constant 0 : index
    %c0_13 = arith.constant 0 : index
    %14 = vector.load %arg6[%c0_12, %c0_13] : memref<1x512xf32, #tpu.memory_space<vmem>>, vector<1x512xf32>
    %15 = vector.broadcast %14 : vector<1x512xf32> to vector<256x512xf32>
    %16 = arith.addf %13, %15 : vector<256x512xf32>
    %17 = arith.truncf %16 : vector<256x512xf32> to vector<256x512xbf16>
    %18 = vector.extract_strided_slice %17 {offsets = [0, 0], sizes = [256, 256], strides = [1, 1]} : vector<256x512xbf16> to vector<256x256xbf16>
    %19 = vector.shape_cast %18 : vector<256x256xbf16> to vector<8x32x256xbf16>
    %20 = vector.extract_strided_slice %17 {offsets = [0, 256], sizes = [256, 256], strides = [1, 1]} : vector<256x512xbf16> to vector<256x256xbf16>
    %21 = vector.shape_cast %20 : vector<256x256xbf16> to vector<8x32x256xbf16>
    %22 = vector.extract_strided_slice %11 {offsets = [0, 0, 0], sizes = [8, 16, 128], strides = [1, 1, 1]} : vector<8x16x256xbf16> to vector<8x16x128xbf16>
    %23 = vector.extract_strided_slice %19 {offsets = [0, 0, 0], sizes = [8, 32, 128], strides = [1, 1, 1]} : vector<8x32x256xbf16> to vector<8x32x128xbf16>
    %24 = vector.extract_strided_slice %21 {offsets = [0, 0, 0], sizes = [8, 32, 128], strides = [1, 1, 1]} : vector<8x32x256xbf16> to vector<8x32x128xbf16>
    "tpu.trace_start"() <{level = 10 : i32, message = "bld,bvd->blv"}> : () -> ()
    %cst_14 = arith.constant dense<0.000000e+00> : vector<8x16x32xf32>
    %25 = tpu.matmul %22, %23, %cst_14 {dimension_numbers = #tpu.dot_dimension_numbers<[2], [2], [1], [1], [0, 0, 0, 1, 1, 1], [0], [0]>} : vector<8x16x128xbf16>, vector<8x32x128xbf16>, vector<8x16x32xf32> -> vector<8x16x32xf32>
    "tpu.trace_stop"() : () -> ()
    %cst_15 = arith.constant dense<0xFF800000> : vector<8x16xf32>
    %26 = vector.multi_reduction <maximumf>, %25, %cst_15 [2] : vector<8x16x32xf32> to vector<8x16xf32>
    %27 = vector.shape_cast %26 : vector<8x16xf32> to vector<8x16x1xf32>
    %28 = vector.broadcast %27 : vector<8x16x1xf32> to vector<8x16x32xf32>
    %29 = arith.subf %25, %28 : vector<8x16x32xf32>
    %30 = math.exp %29 : vector<8x16x32xf32>
    %cst_16 = arith.constant dense<0.000000e+00> : vector<8x16xf32>
    %31 = vector.multi_reduction <add>, %30, %cst_16 [2] : vector<8x16x32xf32> to vector<8x16xf32>
    %32 = vector.shape_cast %31 : vector<8x16xf32> to vector<8x16x1xf32>
    %33 = tpu.reciprocal %32 {approx = true} : vector<8x16x1xf32> -> vector<8x16x1xf32>
    %34 = vector.broadcast %33 : vector<8x16x1xf32> to vector<8x16x32xf32>
    %35 = arith.mulf %30, %34 : vector<8x16x32xf32>
    %36 = arith.truncf %35 : vector<8x16x32xf32> to vector<8x16x32xbf16>
    "tpu.trace_start"() <{level = 10 : i32, message = "blv,bvd->bld"}> : () -> ()
    %cst_17 = arith.constant dense<0.000000e+00> : vector<8x16x128xf32>
    %37 = tpu.matmul %36, %24, %cst_17 {dimension_numbers = #tpu.dot_dimension_numbers<[2], [1], [1], [2], [0, 0, 0, 1, 1, 2], [0], [0]>} : vector<8x16x32xbf16>, vector<8x32x128xbf16>, vector<8x16x128xf32> -> vector<8x16x128xf32>
    "tpu.trace_stop"() : () -> ()
    %38 = arith.truncf %37 : vector<8x16x128xf32> to vector<8x16x128xbf16>
    %39 = vector.extract_strided_slice %11 {offsets = [0, 0, 128], sizes = [8, 16, 128], strides = [1, 1, 1]} : vector<8x16x256xbf16> to vector<8x16x128xbf16>
    %40 = vector.extract_strided_slice %19 {offsets = [0, 0, 128], sizes = [8, 32, 128], strides = [1, 1, 1]} : vector<8x32x256xbf16> to vector<8x32x128xbf16>
    %41 = vector.extract_strided_slice %21 {offsets = [0, 0, 128], sizes = [8, 32, 128], strides = [1, 1, 1]} : vector<8x32x256xbf16> to vector<8x32x128xbf16>
    "tpu.trace_start"() <{level = 10 : i32, message = "bld,bvd->blv"}> : () -> ()
    %cst_18 = arith.constant dense<0.000000e+00> : vector<8x16x32xf32>
    %42 = tpu.matmul %39, %40, %cst_18 {dimension_numbers = #tpu.dot_dimension_numbers<[2], [2], [1], [1], [0, 0, 0, 1, 1, 1], [0], [0]>} : vector<8x16x128xbf16>, vector<8x32x128xbf16>, vector<8x16x32xf32> -> vector<8x16x32xf32>
    "tpu.trace_stop"() : () -> ()
    %cst_19 = arith.constant dense<0xFF800000> : vector<8x16xf32>
    %43 = vector.multi_reduction <maximumf>, %42, %cst_19 [2] : vector<8x16x32xf32> to vector<8x16xf32>
    %44 = vector.shape_cast %43 : vector<8x16xf32> to vector<8x16x1xf32>
    %45 = vector.broadcast %44 : vector<8x16x1xf32> to vector<8x16x32xf32>
    %46 = arith.subf %42, %45 : vector<8x16x32xf32>
    %47 = math.exp %46 : vector<8x16x32xf32>
    %cst_20 = arith.constant dense<0.000000e+00> : vector<8x16xf32>
    %48 = vector.multi_reduction <add>, %47, %cst_20 [2] : vector<8x16x32xf32> to vector<8x16xf32>
    %49 = vector.shape_cast %48 : vector<8x16xf32> to vector<8x16x1xf32>
    %50 = tpu.reciprocal %49 {approx = true} : vector<8x16x1xf32> -> vector<8x16x1xf32>
    %51 = vector.broadcast %50 : vector<8x16x1xf32> to vector<8x16x32xf32>
    %52 = arith.mulf %47, %51 : vector<8x16x32xf32>
    %53 = arith.truncf %52 : vector<8x16x32xf32> to vector<8x16x32xbf16>
    "tpu.trace_start"() <{level = 10 : i32, message = "blv,bvd->bld"}> : () -> ()
    %cst_21 = arith.constant dense<0.000000e+00> : vector<8x16x128xf32>
    %54 = tpu.matmul %53, %41, %cst_21 {dimension_numbers = #tpu.dot_dimension_numbers<[2], [1], [1], [2], [0, 0, 0, 1, 1, 2], [0], [0]>} : vector<8x16x32xbf16>, vector<8x32x128xbf16>, vector<8x16x128xf32> -> vector<8x16x128xf32>
    "tpu.trace_stop"() : () -> ()
    %55 = arith.truncf %54 : vector<8x16x128xf32> to vector<8x16x128xbf16>
    %56 = tpu.concatenate %38, %55 in 2 : vector<8x16x128xbf16>, vector<8x16x128xbf16> -> vector<8x16x256xbf16>
    %57 = vector.shape_cast %56 : vector<8x16x256xbf16> to vector<128x256xbf16>
    %c0_22 = arith.constant 0 : index
    %c0_23 = arith.constant 0 : index
    %58 = vector.load %arg7[%c0_22, %c0_23] : memref<256x256xbf16, #tpu.memory_space<vmem>>, vector<256x256xbf16>
    %cst_24 = arith.constant dense<0.000000e+00> : vector<128x256xf32>
    %59 = tpu.matmul %57, %58, %cst_24 {dimension_numbers = #tpu.dot_dimension_numbers<[1], [0], [0], [1], [0, 0, 1, 1], [], []>} : vector<128x256xbf16>, vector<256x256xbf16>, vector<128x256xf32> -> vector<128x256xf32>
    %60 = arith.addf %1, %59 : vector<128x256xf32>
    %c0_25 = arith.constant 0 : index
    %c0_26 = arith.constant 0 : index
    %61 = vector.load %arg8[%c0_25, %c0_26] : memref<1x256xf32, #tpu.memory_space<vmem>>, vector<1x256xf32>
    %62 = vector.broadcast %61 : vector<1x256xf32> to vector<128x256xf32>
    %63 = arith.addf %60, %62 : vector<128x256xf32>
    %cst_27 = arith.constant dense<0.000000e+00> : vector<128xf32>
    %64 = vector.multi_reduction <add>, %63, %cst_27 [1] : vector<128x256xf32> to vector<128xf32>
    %65 = vector.shape_cast %64 : vector<128xf32> to vector<128x1xf32>
    %cst_28 = arith.constant 2.560000e+02 : f32
    %66 = vector.broadcast %cst_28 : f32 to vector<128x1xf32>
    %67 = arith.divf %65, %66 : vector<128x1xf32>
    %68 = vector.broadcast %67 : vector<128x1xf32> to vector<128x256xf32>
    %69 = arith.subf %63, %68 : vector<128x256xf32>
    %70 = arith.mulf %69, %69 : vector<128x256xf32>
    %cst_29 = arith.constant dense<0.000000e+00> : vector<128xf32>
    %71 = vector.multi_reduction <add>, %70, %cst_29 [1] : vector<128x256xf32> to vector<128xf32>
    %72 = vector.shape_cast %71 : vector<128xf32> to vector<128x1xf32>
    %cst_30 = arith.constant 2.560000e+02 : f32
    %73 = vector.broadcast %cst_30 : f32 to vector<128x1xf32>
    %74 = arith.divf %72, %73 : vector<128x1xf32>
    %75 = vector.broadcast %67 : vector<128x1xf32> to vector<128x256xf32>
    %76 = arith.subf %63, %75 : vector<128x256xf32>
    %cst_31 = arith.constant 9.99999974E-6 : f32
    %77 = vector.broadcast %cst_31 : f32 to vector<128x1xf32>
    %78 = arith.addf %74, %77 : vector<128x1xf32>
    %79 = math.rsqrt %78 : vector<128x1xf32>
    %80 = vector.broadcast %79 : vector<128x1xf32> to vector<128x256xf32>
    %81 = arith.mulf %76, %80 : vector<128x256xf32>
    %c0_32 = arith.constant 0 : index
    %c0_33 = arith.constant 0 : index
    %82 = vector.load %arg9[%c0_32, %c0_33] : memref<1x256xf32, #tpu.memory_space<vmem>>, vector<1x256xf32>
    %83 = vector.broadcast %82 : vector<1x256xf32> to vector<128x256xf32>
    %84 = arith.mulf %81, %83 : vector<128x256xf32>
    %c0_34 = arith.constant 0 : index
    %c0_35 = arith.constant 0 : index
    %85 = vector.load %arg10[%c0_34, %c0_35] : memref<1x256xf32, #tpu.memory_space<vmem>>, vector<1x256xf32>
    %86 = vector.broadcast %85 : vector<1x256xf32> to vector<128x256xf32>
    %87 = arith.addf %84, %86 : vector<128x256xf32>
    %88 = vector.shape_cast %87 : vector<128x256xf32> to vector<8x16x256xf32>
    %c0_36 = arith.constant 0 : index
    %c0_37 = arith.constant 0 : index
    %c0_38 = arith.constant 0 : index
    %89 = vector.load %arg11[%c0_36, %c0_37, %c0_38] : memref<8x16x256xf32, #tpu.memory_space<vmem>>, vector<8x16x256xf32>
    tpu.vector_store %arg11[%c0_36, %c0_37, %c0_38], %88 {strides = array<i32>} : memref<8x16x256xf32, #tpu.memory_space<vmem>>, vector<8x16x256xf32>,
    return
  }
  func.func @transform_0(%arg0: i32) -> (i32, i32, i32) {
    %c0_i32 = arith.constant 0 : i32
    %c0_i32_0 = arith.constant 0 : i32
    %c0_i32_1 = arith.constant 0 : i32
    return %arg0, %c0_i32, %c0_i32_0 : i32, i32, i32
  }
  func.func @transform_1(%arg0: i32) -> (i32, i32, i32) {
    %c0_i32 = arith.constant 0 : i32
    %c0_i32_0 = arith.constant 0 : i32
    %c0_i32_1 = arith.constant 0 : i32
    return %arg0, %c0_i32, %c0_i32_0 : i32, i32, i32
  }
  func.func @transform_2(%arg0: i32) -> (i32, i32) {
    %c0_i32 = arith.constant 0 : i32
    %c0_i32_0 = arith.constant 0 : i32
    %c0_i32_1 = arith.constant 0 : i32
    return %c0_i32, %c0_i32_0 : i32, i32
  }
  func.func @transform_3(%arg0: i32) -> (i32, i32) {
    %c0_i32 = arith.constant 0 : i32
    %c0_i32_0 = arith.constant 0 : i32
    %c0_i32_1 = arith.constant 0 : i32
    return %c0_i32, %c0_i32_0 : i32, i32
  }
  func.func @transform_4(%arg0: i32) -> (i32, i32) {
    %c0_i32 = arith.constant 0 : i32
    %c0_i32_0 = arith.constant 0 : i32
    %c0_i32_1 = arith.constant 0 : i32
    return %c0_i32, %c0_i32_0 : i32, i32
  }
  func.func @transform_5(%arg0: i32) -> (i32, i32) {
    %c0_i32 = arith.constant 0 : i32
    %c0_i32_0 = arith.constant 0 : i32
    %c0_i32_1 = arith.constant 0 : i32
    return %c0_i32, %c0_i32_0 : i32, i32
  }
  func.func @transform_6(%arg0: i32) -> (i32, i32) {
    %c0_i32 = arith.constant 0 : i32
    %c0_i32_0 = arith.constant 0 : i32
    %c0_i32_1 = arith.constant 0 : i32
    return %c0_i32, %c0_i32_0 : i32, i32
  }
  func.func @transform_7(%arg0: i32) -> (i32, i32) {
    %c0_i32 = arith.constant 0 : i32
    %c0_i32_0 = arith.constant 0 : i32
    %c0_i32_1 = arith.constant 0 : i32
    return %c0_i32, %c0_i32_0 : i32, i32
  }
  func.func @transform_8(%arg0: i32) -> (i32, i32) {
    %c0_i32 = arith.constant 0 : i32
    %c0_i32_0 = arith.constant 0 : i32
    %c0_i32_1 = arith.constant 0 : i32
    return %c0_i32, %c0_i32_0 : i32, i32
  }
  func.func @transform_9(%arg0: i32) -> (i32, i32) {
    %c0_i32 = arith.constant 0 : i32
    %c0_i32_0 = arith.constant 0 : i32
    %c0_i32_1 = arith.constant 0 : i32
    return %c0_i32, %c0_i32_0 : i32, i32
  }
  func.func @transform_10(%arg0: i32) -> (i32, i32, i32) {
    %c0_i32 = arith.constant 0 : i32
    %c0_i32_0 = arith.constant 0 : i32
    %c0_i32_1 = arith.constant 0 : i32
    return %arg0, %c0_i32, %c0_i32_0 : i32, i32, i32
  }
}

</mosaic_0001>

<llo_original>
// kernel: tpu_custom_call.1
$region0: #{tpu_custom_call.1}
  #allocation0 [shape = 'u32[]', space=smem, size = 0x4, offset = 0x4, fixed_abs, tag = 'smem constant byte address 0x4 - core index']
  #allocation1 [shape = 'u32[144,128]{1,0:T(1,128)}', space=vmem, size = 0x12000, scoped, tag = 'internal scratch']
  %s0 = inlined_call_operand.hbm [shape: f32[16,16,256], index: 0, kind: input, shape index: {}]
  %s1 = inlined_call_operand.hbm [shape: bf16[16,32,128], index: 1, kind: input, shape index: {}]
  %s2 = inlined_call_operand.hbm [shape: bf16[256,256], index: 2, kind: input, shape index: {}]
  %s3 = inlined_call_operand.vmem [shape: f32[1,256], index: 3, kind: input, shape index: {}]
  %s4 = inlined_call_operand.hbm [shape: bf16[128,512], index: 4, kind: input, shape index: {}]
  %s5 = inlined_call_operand.vmem [shape: f32[1,512], index: 5, kind: input, shape index: {}]
  %s6 = inlined_call_operand.hbm [shape: bf16[256,256], index: 6, kind: input, shape index: {}]
  %s7 = inlined_call_operand.vmem [shape: f32[1,256], index: 7, kind: input, shape index: {}]
  %s8 = inlined_call_operand.vmem [shape: f32[1,256], index: 8, kind: input, shape index: {}]
  %s9 = inlined_call_operand.vmem [shape: f32[1,256], index: 9, kind: input, shape index: {}]
  %s10 = inlined_call_operand.hbm [shape: f32[16,16,256], index: 10, kind: output, shape index: {}]
  %s11 = sld [smem:[#allocation0]]
  $region93: #{tpu_custom_call.1} parent=0
    _
  %s13 = ssub.s32 1, %s11
  %s14 = scalar_select 0, %s13, %s11
  $region1: #{tpu_custom_call.1} parent=0
    #allocation2 [shape = 'u8[262144]{0}', space=vmem, size = 0x40000, scoped, tag = 'input window, operand 0']
    #allocation3 [shape = 's32[2]{0}', space=sflag, size = 0x8, scoped, tag = 'scoped memory for tpu_custom_call.1']
    #allocation4 [shape = 's32[2]{0}', space=sflag, size = 0x8, scoped, tag = 'scoped memory for tpu_custom_call.1']
    #allocation5 [shape = 'u8[131072]{0}', space=vmem, size = 0x20000, scoped, tag = 'input window, operand 1']
    #allocation6 [shape = 's32[2]{0}', space=sflag, size = 0x8, scoped, tag = 'scoped memory for tpu_custom_call.1']
    #allocation7 [shape = 'u8[131072]{0}', space=vmem, size = 0x20000, scoped, tag = 'input window, operand 2, single buffered']
    #allocation8 [shape = 'u8[131072]{0}', space=vmem, size = 0x20000, scoped, tag = 'input window, operand 4, single buffered']
    #allocation9 [shape = 's32[1]{0}', space=sflag, size = 0x4, scoped, tag = 'scoped memory for tpu_custom_call.1']
    #allocation10 [shape = 'u8[131072]{0}', space=vmem, size = 0x20000, scoped, tag = 'input window, operand 6, single buffered']
    #allocation11 [shape = 'u8[262144]{0}', space=vmem, size = 0x40000, scoped, tag = 'output window, operand 0']
    %15 = vsyncpa [#allocation3], 0
    %s16 = scalar_lea.sflag [#allocation3], 1
    %17 = vsyncpa %s16, 0
    %18 = vsyncpa [#allocation6], 0
    %s19 = scalar_lea.sflag [#allocation6], 1
    %20 = vsyncpa %s19, 0
    %21 = vsyncpa [#allocation9], 0
    %22 = vsyncpa [#allocation4], 0
    %s23 = scalar_lea.sflag [#allocation4], 1
    %24 = vsyncpa %s23, 0
    loop: start=0, step=1, limit=4
    $region2: #{tpu_custom_call.1} parent=1 // loop_pre_header
      _
    $region3: #{tpu_custom_call.1} parent=1 // loop_header
      %s26 = sphi 0, %s30
      %p27 = scmp.ge.s32.totalorder %s26, 4
      %s36 = sphi 0, %s38
      %s39 = sphi 0, %s36
      %s40 = sphi 0, %s39
      %s56 = sphi 0, %s40
      %s62 = sphi 0, %s64
      %s65 = sphi 0, %s62
      %s66 = sphi 0, %s65
      %s82 = sphi 0, %s66
      %s86 = sphi 0, %s86
      %s88 = sphi 0, %s86
      %s89 = sphi 0, %s88
      %s103 = sphi 0, %s89
      %s107 = sphi 0, %s107
      %s109 = sphi 0, %s107
      %s110 = sphi 0, %s109
      %s124 = sphi 0, %s110
      %s128 = sphi 0, %s128
      %s130 = sphi 0, %s128
      %s131 = sphi 0, %s130
      %s145 = sphi 0, %s131
      %s149 = sphi 0, %s149
      %s151 = sphi 0, %s149
      %s152 = sphi 0, %s151
      %s166 = sphi 0, %s152
      %s170 = sphi 0, %s170
      %s172 = sphi 0, %s170
      %s173 = sphi 0, %s172
      %s187 = sphi 0, %s173
      %s191 = sphi 0, %s191
      %s193 = sphi 0, %s191
      %s194 = sphi 0, %s193
      %s208 = sphi 0, %s194
      %s212 = sphi 0, %s212
      %s214 = sphi 0, %s212
      %s215 = sphi 0, %s214
      %s229 = sphi 0, %s215
      %s233 = sphi 0, %s233
      %s235 = sphi 0, %s233
      %s236 = sphi 0, %s235
      %s250 = sphi 0, %s236
      %s256 = sphi 0, %s258
      %s259 = sphi 0, %s256
      %s260 = sphi 0, %s259
      %s276 = sphi 0, %s260
    $region4: #{tpu_custom_call.1} parent=1 // loop_header_branch
      %29 = sbr.rel (%p27) target = $region8
    $region5: #{tpu_custom_call.1} parent=1 // loop_body
      %s31 = ssub.s32 %s26, 1
      %s32 = ssub.s32 %s26, 2
      %s33 = sadd.s32 %s26, 1
      %s34 = ssub.s32 %s26, %s33
      %p35 = scmp.eq.s32.totalorder %s34, 0
      %s37 = sadd.s32 %s36, 1
      %s38 = scalar_select %p35, %s36, %s37
      %p41 = pneg %p35
      %p42 = scmp.eq.s32.totalorder %s26, 1
      %p43 = por %p41, %p42
      %p44 = scmp.ne.s32.totalorder %s36, %s39
      %p45 = scmp.eq.s32.totalorder %s26, 0
      %p46 = por %p44, %p45
      %p47 = scmp.ne.s32.totalorder %s36, %s39
      %p48 = scmp.eq.s32.totalorder %s31, 1
      %p49 = por %p47, %p48
      %p50 = scmp.ne.s32.totalorder %s39, %s40
      %p51 = scmp.eq.s32.totalorder %s31, 0
      %p52 = por %p50, %p51
      %p53 = scmp.ne.s32.totalorder %s39, %s40
      %p54 = scmp.eq.s32.totalorder %s32, 1
      %p55 = por %p53, %p54
      %p57 = scmp.ne.s32.totalorder %s40, %s56
      %p58 = scmp.eq.s32.totalorder %s32, 0
      %p59 = por %p57, %p58
      %s60 = ssub.s32 %s26, %s33
      %p61 = scmp.eq.s32.totalorder %s60, 0
      %s63 = sadd.s32 %s62, 1
      %s64 = scalar_select %p61, %s62, %s63
      %p67 = pneg %p61
      %p68 = scmp.eq.s32.totalorder %s26, 1
      %p69 = por %p67, %p68
      %p70 = scmp.ne.s32.totalorder %s62, %s65
      %p71 = scmp.eq.s32.totalorder %s26, 0
      %p72 = por %p70, %p71
      %p73 = scmp.ne.s32.totalorder %s62, %s65
      %p74 = scmp.eq.s32.totalorder %s31, 1
      %p75 = por %p73, %p74
      %p76 = scmp.ne.s32.totalorder %s65, %s66
      %p77 = scmp.eq.s32.totalorder %s31, 0
      %p78 = por %p76, %p77
      %p79 = scmp.ne.s32.totalorder %s65, %s66
      %p80 = scmp.eq.s32.totalorder %s32, 1
      %p81 = por %p79, %p80
      %p83 = scmp.ne.s32.totalorder %s66, %s82
      %p84 = scmp.eq.s32.totalorder %s32, 0
      %p85 = por %p83, %p84
      %s87 = sadd.s32 %s86, 1
      %p90 = scmp.eq.s32.totalorder %s26, 1
      %p91 = scmp.ne.s32.totalorder %s86, %s88
      %p92 = scmp.eq.s32.totalorder %s26, 0
      %p93 = por %p91, %p92
      %p94 = scmp.ne.s32.totalorder %s86, %s88
      %p95 = scmp.eq.s32.totalorder %s31, 1
      %p96 = por %p94, %p95
      %p97 = scmp.ne.s32.totalorder %s88, %s89
      %p98 = scmp.eq.s32.totalorder %s31, 0
      %p99 = por %p97, %p98
      %p100 = scmp.ne.s32.totalorder %s88, %s89
      %p101 = scmp.eq.s32.totalorder %s32, 1
      %p102 = por %p100, %p101
      %p104 = scmp.ne.s32.totalorder %s89, %s103
      %p105 = scmp.eq.s32.totalorder %s32, 0
      %p106 = por %p104, %p105
      %s108 = sadd.s32 %s107, 1
      %p111 = scmp.eq.s32.totalorder %s26, 1
      %p112 = scmp.ne.s32.totalorder %s107, %s109
      %p113 = scmp.eq.s32.totalorder %s26, 0
      %p114 = por %p112, %p113
      %p115 = scmp.ne.s32.totalorder %s107, %s109
      %p116 = scmp.eq.s32.totalorder %s31, 1
      %p117 = por %p115, %p116
      %p118 = scmp.ne.s32.totalorder %s109, %s110
      %p119 = scmp.eq.s32.totalorder %s31, 0
      %p120 = por %p118, %p119
      %p121 = scmp.ne.s32.totalorder %s109, %s110
      %p122 = scmp.eq.s32.totalorder %s32, 1
      %p123 = por %p121, %p122
      %p125 = scmp.ne.s32.totalorder %s110, %s124
      %p126 = scmp.eq.s32.totalorder %s32, 0
      %p127 = por %p125, %p126
      %s129 = sadd.s32 %s128, 1
      %p132 = scmp.eq.s32.totalorder %s26, 1
      %p133 = scmp.ne.s32.totalorder %s128, %s130
      %p134 = scmp.eq.s32.totalorder %s26, 0
      %p135 = por %p133, %p134
      %p136 = scmp.ne.s32.totalorder %s128, %s130
      %p137 = scmp.eq.s32.totalorder %s31, 1
      %p138 = por %p136, %p137
      %p139 = scmp.ne.s32.totalorder %s130, %s131
      %p140 = scmp.eq.s32.totalorder %s31, 0
      %p141 = por %p139, %p140
      %p142 = scmp.ne.s32.totalorder %s130, %s131
      %p143 = scmp.eq.s32.totalorder %s32, 1
      %p144 = por %p142, %p143
      %p146 = scmp.ne.s32.totalorder %s131, %s145
      %p147 = scmp.eq.s32.totalorder %s32, 0
      %p148 = por %p146, %p147
      %s150 = sadd.s32 %s149, 1
      %p153 = scmp.eq.s32.totalorder %s26, 1
      %p154 = scmp.ne.s32.totalorder %s149, %s151
      %p155 = scmp.eq.s32.totalorder %s26, 0
      %p156 = por %p154, %p155
      %p157 = scmp.ne.s32.totalorder %s149, %s151
      %p158 = scmp.eq.s32.totalorder %s31, 1
      %p159 = por %p157, %p158
      %p160 = scmp.ne.s32.totalorder %s151, %s152
      %p161 = scmp.eq.s32.totalorder %s31, 0
      %p162 = por %p160, %p161
      %p163 = scmp.ne.s32.totalorder %s151, %s152
      %p164 = scmp.eq.s32.totalorder %s32, 1
      %p165 = por %p163, %p164
      %p167 = scmp.ne.s32.totalorder %s152, %s166
      %p168 = scmp.eq.s32.totalorder %s32, 0
      %p169 = por %p167, %p168
      %s171 = sadd.s32 %s170, 1
      %p174 = scmp.eq.s32.totalorder %s26, 1
      %p175 = scmp.ne.s32.totalorder %s170, %s172
      %p176 = scmp.eq.s32.totalorder %s26, 0
      %p177 = por %p175, %p176
      %p178 = scmp.ne.s32.totalorder %s170, %s172
      %p179 = scmp.eq.s32.totalorder %s31, 1
      %p180 = por %p178, %p179
      %p181 = scmp.ne.s32.totalorder %s172, %s173
      %p182 = scmp.eq.s32.totalorder %s31, 0
      %p183 = por %p181, %p182
      %p184 = scmp.ne.s32.totalorder %s172, %s173
      %p185 = scmp.eq.s32.totalorder %s32, 1
      %p186 = por %p184, %p185
      %p188 = scmp.ne.s32.totalorder %s173, %s187
      %p189 = scmp.eq.s32.totalorder %s32, 0
      %p190 = por %p188, %p189
      %s192 = sadd.s32 %s191, 1
      %p195 = scmp.eq.s32.totalorder %s26, 1
      %p196 = scmp.ne.s32.totalorder %s191, %s193
      %p197 = scmp.eq.s32.totalorder %s26, 0
      %p198 = por %p196, %p197
      %p199 = scmp.ne.s32.totalorder %s191, %s193
      %p200 = scmp.eq.s32.totalorder %s31, 1
      %p201 = por %p199, %p200
      %p202 = scmp.ne.s32.totalorder %s193, %s194
      %p203 = scmp.eq.s32.totalorder %s31, 0
      %p204 = por %p202, %p203
      %p205 = scmp.ne.s32.totalorder %s193, %s194
      %p206 = scmp.eq.s32.totalorder %s32, 1
      %p207 = por %p205, %p206
      %p209 = scmp.ne.s32.totalorder %s194, %s208
      %p210 = scmp.eq.s32.totalorder %s32, 0
      %p211 = por %p209, %p210
      %s213 = sadd.s32 %s212, 1
      %p216 = scmp.eq.s32.totalorder %s26, 1
      %p217 = scmp.ne.s32.totalorder %s212, %s214
      %p218 = scmp.eq.s32.totalorder %s26, 0
      %p219 = por %p217, %p218
      %p220 = scmp.ne.s32.totalorder %s212, %s214
      %p221 = scmp.eq.s32.totalorder %s31, 1
      %p222 = por %p220, %p221
      %p223 = scmp.ne.s32.totalorder %s214, %s215
      %p224 = scmp.eq.s32.totalorder %s31, 0
      %p225 = por %p223, %p224
      %p226 = scmp.ne.s32.totalorder %s214, %s215
      %p227 = scmp.eq.s32.totalorder %s32, 1
      %p228 = por %p226, %p227
      %p230 = scmp.ne.s32.totalorder %s215, %s229
      %p231 = scmp.eq.s32.totalorder %s32, 0
      %p232 = por %p230, %p231
      %s234 = sadd.s32 %s233, 1
      %p237 = scmp.eq.s32.totalorder %s26, 1
      %p238 = scmp.ne.s32.totalorder %s233, %s235
      %p239 = scmp.eq.s32.totalorder %s26, 0
      %p240 = por %p238, %p239
      %p241 = scmp.ne.s32.totalorder %s233, %s235
      %p242 = scmp.eq.s32.totalorder %s31, 1
      %p243 = por %p241, %p242
      %p244 = scmp.ne.s32.totalorder %s235, %s236
      %p245 = scmp.eq.s32.totalorder %s31, 0
      %p246 = por %p244, %p245
      %p247 = scmp.ne.s32.totalorder %s235, %s236
      %p248 = scmp.eq.s32.totalorder %s32, 1
      %p249 = por %p247, %p248
      %p251 = scmp.ne.s32.totalorder %s236, %s250
      %p252 = scmp.eq.s32.totalorder %s32, 0
      %p253 = por %p251, %p252
      %s254 = ssub.s32 %s26, %s33
      %p255 = scmp.eq.s32.totalorder %s254, 0
      %s257 = sadd.s32 %s256, 1
      %s258 = scalar_select %p255, %s256, %s257
      %p261 = pneg %p255
      %p262 = scmp.eq.s32.totalorder %s26, 1
      %p263 = por %p261, %p262
      %p264 = scmp.ne.s32.totalorder %s256, %s259
      %p265 = scmp.eq.s32.totalorder %s26, 0
      %p266 = por %p264, %p265
      %p267 = scmp.ne.s32.totalorder %s256, %s259
      %p268 = scmp.eq.s32.totalorder %s31, 1
      %p269 = por %p267, %p268
      %p270 = scmp.ne.s32.totalorder %s259, %s260
      %p271 = scmp.eq.s32.totalorder %s31, 0
      %p272 = por %p270, %p271
      %p273 = scmp.ne.s32.totalorder %s259, %s260
      %p274 = scmp.eq.s32.totalorder %s32, 1
      %p275 = por %p273, %p274
      %p277 = scmp.ne.s32.totalorder %s260, %s276
      %p278 = scmp.eq.s32.totalorder %s32, 0
      %p279 = por %p277, %p278
      %p280 = scmp.le.s32.totalorder 1, %s26
      %p281 = scmp.lt.s32.totalorder %s26, 3
      %p282 = pnand %p280, %p281
      %p283 = pneg %p282
      // Predicated region
      $region9: #{tpu_custom_call.1} parent=5 // pred_check
        _
      $region10: #{tpu_custom_call.1} parent=5 // pred_check_branch
        %285 = sbr.rel (%p282) target = $region12
      $region11: #{tpu_custom_call.1} parent=5 // pred_region
        %s286 = ssub.s32 %s26, 1
        // Predicated region
        $region13: #{tpu_custom_call.1} parent=11 // pred_check
          %p287 = pneg %p99
        $region14: #{tpu_custom_call.1} parent=11 // pred_check_branch
          %289 = sbr.rel (%p287) target = $region16
        $region15: #{tpu_custom_call.1} parent=11 // pred_region
          %s291 = ssub.s32 4096, 4096
          %292 = vsyncadd [#allocation6], %s291
          %s293 = sshll.u32 [#allocation7], 4
          %s294 = int_to_ptr.vmem [resolvable:$true] %s293
          %299 = dma.hbm_to_vmem [thread:$0]  %s2, 4096, %s294, [#allocation6], 128, 128, 8
        $region16: #{tpu_custom_call.1} parent=11 // pred_fallthru
          _
        // Predicated region
        $region17: #{tpu_custom_call.1} parent=11 // pred_check
          %p300 = pneg %p120
        $region18: #{tpu_custom_call.1} parent=11 // pred_check_branch
          %302 = sbr.rel (%p300) target = $region20
        $region19: #{tpu_custom_call.1} parent=11 // pred_region
          _
        $region20: #{tpu_custom_call.1} parent=11 // pred_fallthru
          _
        // Predicated region
        $region21: #{tpu_custom_call.1} parent=11 // pred_check
          %p303 = pneg %p141
        $region22: #{tpu_custom_call.1} parent=11 // pred_check_branch
          %305 = sbr.rel (%p303) target = $region24
        $region23: #{tpu_custom_call.1} parent=11 // pred_region
          %s307 = ssub.s32 4096, 4096
          %308 = vsyncadd [#allocation9], %s307
          %s309 = sshll.u32 [#allocation8], 4
          %s310 = int_to_ptr.vmem [resolvable:$true] %s309
          %315 = dma.hbm_to_vmem [thread:$0]  %s4, 4096, %s310, [#allocation9], 256, 256, 16
        $region24: #{tpu_custom_call.1} parent=11 // pred_fallthru
          _
        // Predicated region
        $region25: #{tpu_custom_call.1} parent=11 // pred_check
          %p316 = pneg %p162
        $region26: #{tpu_custom_call.1} parent=11 // pred_check_branch
          %318 = sbr.rel (%p316) target = $region28
        $region27: #{tpu_custom_call.1} parent=11 // pred_region
          _
        $region28: #{tpu_custom_call.1} parent=11 // pred_fallthru
          _
        // Predicated region
        $region29: #{tpu_custom_call.1} parent=11 // pred_check
          %p319 = pneg %p183
        $region30: #{tpu_custom_call.1} parent=11 // pred_check_branch
          %321 = sbr.rel (%p319) target = $region32
        $region31: #{tpu_custom_call.1} parent=11 // pred_region
          %s323 = ssub.s32 4096, 4096
          %324 = vsyncadd [#allocation9], %s323
          %s325 = sshll.u32 [#allocation10], 4
          %s326 = int_to_ptr.vmem [resolvable:$true] %s325
          %331 = dma.hbm_to_vmem [thread:$0]  %s6, 4096, %s326, [#allocation9], 128, 128, 8
        $region32: #{tpu_custom_call.1} parent=11 // pred_fallthru
          _
        // Predicated region
        $region33: #{tpu_custom_call.1} parent=11 // pred_check
          %p332 = pneg %p204
        $region34: #{tpu_custom_call.1} parent=11 // pred_check_branch
          %334 = sbr.rel (%p332) target = $region36
        $region35: #{tpu_custom_call.1} parent=11 // pred_region
          _
        $region36: #{tpu_custom_call.1} parent=11 // pred_fallthru
          _
        // Predicated region
        $region37: #{tpu_custom_call.1} parent=11 // pred_check
          %p335 = pneg %p225
        $region38: #{tpu_custom_call.1} parent=11 // pred_check_branch
          %337 = sbr.rel (%p335) target = $region40
        $region39: #{tpu_custom_call.1} parent=11 // pred_region
          _
        $region40: #{tpu_custom_call.1} parent=11 // pred_fallthru
          _
        // Predicated region
        $region41: #{tpu_custom_call.1} parent=11 // pred_check
          %p338 = pneg %p246
        $region42: #{tpu_custom_call.1} parent=11 // pred_check_branch
          %340 = sbr.rel (%p338) target = $region44
        $region43: #{tpu_custom_call.1} parent=11 // pred_region
          _
        $region44: #{tpu_custom_call.1} parent=11 // pred_fallthru
          _
      $region12: #{tpu_custom_call.1} parent=5 // pred_fallthru
        _
      %p341 = scmp.lt.s32.totalorder %s26, 2
      // Predicated region
      $region45: #{tpu_custom_call.1} parent=5 // pred_check
        %p342 = pneg %p341
      $region46: #{tpu_custom_call.1} parent=5 // pred_check_branch
        %344 = sbr.rel (%p342) target = $region48
      $region47: #{tpu_custom_call.1} parent=5 // pred_region
        // Predicated region
        $region49: #{tpu_custom_call.1} parent=47 // pred_check
          %p345 = pneg %p46
        $region50: #{tpu_custom_call.1} parent=47 // pred_check_branch
          %347 = sbr.rel (%p345) target = $region52
        $region51: #{tpu_custom_call.1} parent=47 // pred_region
          %s348 = sand.u32 %s36, 1
          %s349 = scalar_lea.sflag [#allocation3], %s348
          %s350 = sand.u32 %s36, 1
          %s351 = smul.addr %s350, 256
          %s352 = scalar_lea.vmem [#allocation2], %s351
          %s353 = smul.u32 8, %s26
          %s355 = ssub.s32 4096, 4096
          %356 = vsyncadd %s349, %s355
          %s357 = smul.addr %s353, 4
          %s358 = smul.addr %s357, 128
          %s359 = scalar_lea.hbm %s0, %s358
          %s360 = sshll.u32 %s352, 4
          %s361 = int_to_ptr.vmem [resolvable:$true] %s360
          %366 = dma.hbm_to_vmem [thread:$0]  %s359, 4096, %s361, %s349, 256, 256, 16
        $region52: #{tpu_custom_call.1} parent=47 // pred_fallthru
          _
        // Predicated region
        $region53: #{tpu_custom_call.1} parent=47 // pred_check
          %p367 = pneg %p72
        $region54: #{tpu_custom_call.1} parent=47 // pred_check_branch
          %369 = sbr.rel (%p367) target = $region56
        $region55: #{tpu_custom_call.1} parent=47 // pred_region
          %s370 = sand.u32 %s26, 1
          %s371 = scalar_lea.sflag [#allocation6], %s370
          %s372 = sand.u32 %s62, 1
          %s373 = smul.addr %s372, 128
          %s374 = scalar_lea.vmem [#allocation5], %s373
          %s375 = smul.u32 8, %s26
          %s377 = ssub.s32 2048, 2048
          %378 = vsyncadd %s371, %s377
          %s379 = smul.addr %s375, 4
          %s380 = smul.addr %s379, 64
          %s381 = scalar_lea.hbm %s1, %s380
          %s382 = sshll.u32 %s374, 4
          %s383 = int_to_ptr.vmem [resolvable:$true] %s382
          %388 = dma.hbm_to_vmem [thread:$0]  %s381, 2048, %s383, %s371, 64, 64, 4
        $region56: #{tpu_custom_call.1} parent=47 // pred_fallthru
          _
      $region48: #{tpu_custom_call.1} parent=5 // pred_fallthru
        _
      %p389 = scmp.le.s32.totalorder 1, %s26
      %p390 = scmp.lt.s32.totalorder %s26, 3
      %p391 = pnand %p389, %p390
      %p392 = pneg %p391
      // Predicated region
      $region57: #{tpu_custom_call.1} parent=5 // pred_check
        _
      $region58: #{tpu_custom_call.1} parent=5 // pred_check_branch
        %394 = sbr.rel (%p391) target = $region60
      $region59: #{tpu_custom_call.1} parent=5 // pred_region
        %s395 = ssub.s32 %s26, 1
        %s396 = sand.u32 %s39, 1
        %s397 = scalar_lea.sflag [#allocation3], %s396
        %s398 = sand.u32 %s39, 1
        %s399 = smul.addr %s398, 256
        %s400 = scalar_lea.vmem [#allocation2], %s399
        // Predicated region
        $region61: #{tpu_custom_call.1} parent=59 // pred_check
          %p401 = pneg %p52
        $region62: #{tpu_custom_call.1} parent=59 // pred_check_branch
          %403 = sbr.rel (%p401) target = $region64
        $region63: #{tpu_custom_call.1} parent=59 // pred_region
          %404 = dma.done %s397, 4096
        $region64: #{tpu_custom_call.1} parent=59 // pred_fallthru
          _
        %s405 = sand.u32 %s31, 1
        %s406 = scalar_lea.sflag [#allocation6], %s405
        %s407 = sand.u32 %s65, 1
        %s408 = smul.addr %s407, 128
        %s409 = scalar_lea.vmem [#allocation5], %s408
        // Predicated region
        $region65: #{tpu_custom_call.1} parent=59 // pred_check
          %p410 = pneg %p78
        $region66: #{tpu_custom_call.1} parent=59 // pred_check_branch
          %412 = sbr.rel (%p410) target = $region68
        $region67: #{tpu_custom_call.1} parent=59 // pred_region
          %413 = dma.done %s406, 2048
        $region68: #{tpu_custom_call.1} parent=59 // pred_fallthru
          _
        // Predicated region
        $region69: #{tpu_custom_call.1} parent=59 // pred_check
          %p414 = pneg %p99
        $region70: #{tpu_custom_call.1} parent=59 // pred_check_branch
          %416 = sbr.rel (%p414) target = $region72
        $region71: #{tpu_custom_call.1} parent=59 // pred_region
          %417 = dma.done [#allocation6], 4096
        $region72: #{tpu_custom_call.1} parent=59 // pred_fallthru
          _
        // Predicated region
        $region73: #{tpu_custom_call.1} parent=59 // pred_check
          %p418 = pneg %p141
        $region74: #{tpu_custom_call.1} parent=59 // pred_check_branch
          %420 = sbr.rel (%p418) target = $region76
        $region75: #{tpu_custom_call.1} parent=59 // pred_region
          %421 = dma.done [#allocation9], 4096
        $region76: #{tpu_custom_call.1} parent=59 // pred_fallthru
          _
        // Predicated region
        $region77: #{tpu_custom_call.1} parent=59 // pred_check
          %p422 = pneg %p183
        $region78: #{tpu_custom_call.1} parent=59 // pred_check_branch
          %424 = sbr.rel (%p422) target = $region80
        $region79: #{tpu_custom_call.1} parent=59 // pred_region
          %425 = dma.done [#allocation9], 4096
        $region80: #{tpu_custom_call.1} parent=59 // pred_fallthru
          _
        %s426 = sand.u32 %s39, 1
        %s427 = scalar_lea.sflag [#allocation3], %s426
        %s428 = sand.u32 %s39, 1
        %s429 = smul.addr %s428, 256
        %s430 = scalar_lea.vmem [#allocation2], %s429
        %p431 = pneg %p52
        %p432 = pneg %p49
        %s433 = sand.u32 %s31, 1
        %s434 = scalar_lea.sflag [#allocation6], %s433
        %s435 = sand.u32 %s65, 1
        %s436 = smul.addr %s435, 128
        %s437 = scalar_lea.vmem [#allocation5], %s436
        %p438 = pneg %p78
        %p439 = pneg %p75
        %p440 = pneg %p99
        %p441 = pneg %p96
        %p442 = pneg %p120
        %p443 = pneg %p117
        %p444 = pneg %p141
        %p445 = pneg %p138
        %p446 = pneg %p162
        %p447 = pneg %p159
        %p448 = pneg %p183
        %p449 = pneg %p180
        %p450 = pneg %p204
        %p451 = pneg %p201
        %p452 = pneg %p225
        %p453 = pneg %p222
        %p454 = pneg %p246
        %p455 = pneg %p243
        %p456 = pneg %p272
        %p457 = pneg %p269
        %s458 = sand.u32 %s259, 1
        %s459 = scalar_lea.sflag [#allocation4], %s458
        %s460 = sand.u32 %s259, 1
        %s461 = smul.addr %s460, 256
        %s462 = scalar_lea.vmem [#allocation11], %s461
        %s463 = smul.u32 8, %s31
        %s464 = smul.u32 8, %s31
        %s465 = smul.u32 8, %s31
        %v467 = vld [vmem:[%s400] sm:$0xff]
        %v468 = vld [vmem:[%s400 + $0x8] sm:$0xff]
        %v469 = vld [vmem:[%s400 + $0x10] sm:$0xff]
        %v470 = vld [vmem:[%s400 + $0x18] sm:$0xff]
        %v471 = vld [vmem:[%s400 + $0x20] sm:$0xff]
        %v472 = vld [vmem:[%s400 + $0x28] sm:$0xff]
        %v473 = vld [vmem:[%s400 + $0x30] sm:$0xff]
        %v474 = vld [vmem:[%s400 + $0x38] sm:$0xff]
        %v475 = vld [vmem:[%s400 + $0x40] sm:$0xff]
        %v476 = vld [vmem:[%s400 + $0x48] sm:$0xff]
        %v477 = vld [vmem:[%s400 + $0x50] sm:$0xff]
        %v478 = vld [vmem:[%s400 + $0x58] sm:$0xff]
        %v479 = vld [vmem:[%s400 + $0x60] sm:$0xff]
        %v480 = vld [vmem:[%s400 + $0x68] sm:$0xff]
        %v481 = vld [vmem:[%s400 + $0x70] sm:$0xff]
        %v482 = vld [vmem:[%s400 + $0x78] sm:$0xff]
        %v483 = vld [vmem:[%s400 + $0x80] sm:$0xff]
        %v484 = vld [vmem:[%s400 + $0x88] sm:$0xff]
        %v485 = vld [vmem:[%s400 + $0x90] sm:$0xff]
        %v486 = vld [vmem:[%s400 + $0x98] sm:$0xff]
        %v487 = vld [vmem:[%s400 + $0xa0] sm:$0xff]
        %v488 = vld [vmem:[%s400 + $0xa8] sm:$0xff]
        %v489 = vld [vmem:[%s400 + $0xb0] sm:$0xff]
        %v490 = vld [vmem:[%s400 + $0xb8] sm:$0xff]
        %v491 = vld [vmem:[%s400 + $0xc0] sm:$0xff]
        %v492 = vld [vmem:[%s400 + $0xc8] sm:$0xff]
        %v493 = vld [vmem:[%s400 + $0xd0] sm:$0xff]
        %v494 = vld [vmem:[%s400 + $0xd8] sm:$0xff]
        %v495 = vld [vmem:[%s400 + $0xe0] sm:$0xff]
        %v496 = vld [vmem:[%s400 + $0xe8] sm:$0xff]
        %v497 = vld [vmem:[%s400 + $0xf0] sm:$0xff]
        %v498 = vld [vmem:[%s400 + $0xf8] sm:$0xff]
        %v499 = vpack.c.bf16 %v469, %v467
        %v500 = vpack.c.bf16 %v470, %v468
        %v501 = vpack.c.bf16 %v473, %v471
        %v502 = vpack.c.bf16 %v474, %v472
        %v503 = vpack.c.bf16 %v477, %v475
        %v504 = vpack.c.bf16 %v478, %v476
        %v505 = vpack.c.bf16 %v481, %v479
        %v506 = vpack.c.bf16 %v482, %v480
        %v507 = vpack.c.bf16 %v485, %v483
        %v508 = vpack.c.bf16 %v486, %v484
        %v509 = vpack.c.bf16 %v489, %v487
        %v510 = vpack.c.bf16 %v490, %v488
        %v511 = vpack.c.bf16 %v493, %v491
        %v512 = vpack.c.bf16 %v494, %v492
        %v513 = vpack.c.bf16 %v497, %v495
        %v514 = vpack.c.bf16 %v498, %v496
        %v515 = vld [vmem:[%s409] sm:$0xf]
        %v516 = vld [vmem:[%s409 + $0x4] sm:$0xf]
        %v517 = vld [vmem:[%s409 + $0x8] sm:$0xf]
        %v518 = vld [vmem:[%s409 + $0xc] sm:$0xf]
        %v519 = vld [vmem:[%s409 + $0x10] sm:$0xf]
        %v520 = vld [vmem:[%s409 + $0x14] sm:$0xf]
        %v521 = vld [vmem:[%s409 + $0x18] sm:$0xf]
        %v522 = vld [vmem:[%s409 + $0x1c] sm:$0xf]
        %v523 = vld [vmem:[%s409 + $0x20] sm:$0xf]
        %v524 = vld [vmem:[%s409 + $0x24] sm:$0xf]
        %v525 = vld [vmem:[%s409 + $0x28] sm:$0xf]
        %v526 = vld [vmem:[%s409 + $0x2c] sm:$0xf]
        %v527 = vld [vmem:[%s409 + $0x30] sm:$0xf]
        %v528 = vld [vmem:[%s409 + $0x34] sm:$0xf]
        %v529 = vld [vmem:[%s409 + $0x38] sm:$0xf]
        %v530 = vld [vmem:[%s409 + $0x3c] sm:$0xf]
        %v531 = vld [vmem:[%s409 + $0x40] sm:$0xf]
        %v532 = vld [vmem:[%s409 + $0x44] sm:$0xf]
        %v533 = vld [vmem:[%s409 + $0x48] sm:$0xf]
        %v534 = vld [vmem:[%s409 + $0x4c] sm:$0xf]
        %v535 = vld [vmem:[%s409 + $0x50] sm:$0xf]
        %v536 = vld [vmem:[%s409 + $0x54] sm:$0xf]
        %v537 = vld [vmem:[%s409 + $0x58] sm:$0xf]
        %v538 = vld [vmem:[%s409 + $0x5c] sm:$0xf]
        %v539 = vld [vmem:[%s409 + $0x60] sm:$0xf]
        %v540 = vld [vmem:[%s409 + $0x64] sm:$0xf]
        %v541 = vld [vmem:[%s409 + $0x68] sm:$0xf]
        %v542 = vld [vmem:[%s409 + $0x6c] sm:$0xf]
        %v543 = vld [vmem:[%s409 + $0x70] sm:$0xf]
        %v544 = vld [vmem:[%s409 + $0x74] sm:$0xf]
        %v545 = vld [vmem:[%s409 + $0x78] sm:$0xf]
        %v546 = vld [vmem:[%s409 + $0x7c] sm:$0xf]
        %v547 = vld [vmem:[#allocation7] sm:$0xff]
        %v548 = vld [vmem:[#allocation7 + $0x8] sm:$0xff]
        %v549 = vld [vmem:[#allocation7 + $0x10] sm:$0xff]
        %v550 = vld [vmem:[#allocation7 + $0x18] sm:$0xff]
        %v551 = vld [vmem:[#allocation7 + $0x20] sm:$0xff]
        %v552 = vld [vmem:[#allocation7 + $0x28] sm:$0xff]
        %v553 = vld [vmem:[#allocation7 + $0x30] sm:$0xff]
        %v554 = vld [vmem:[#allocation7 + $0x38] sm:$0xff]
        %v555 = vld [vmem:[#allocation7 + $0x40] sm:$0xff]
        %v556 = vld [vmem:[#allocation7 + $0x48] sm:$0xff]
        %v557 = vld [vmem:[#allocation7 + $0x50] sm:$0xff]
        %v558 = vld [vmem:[#allocation7 + $0x58] sm:$0xff]
        %v559 = vld [vmem:[#allocation7 + $0x60] sm:$0xff]
        %v560 = vld [vmem:[#allocation7 + $0x68] sm:$0xff]
        %v561 = vld [vmem:[#allocation7 + $0x70] sm:$0xff]
        %v562 = vld [vmem:[#allocation7 + $0x78] sm:$0xff]
        %v563 = vld [vmem:[#allocation7 + $0x80] sm:$0xff]
        %v564 = vld [vmem:[#allocation7 + $0x88] sm:$0xff]
        %v565 = vld [vmem:[#allocation7 + $0x90] sm:$0xff]
        %v566 = vld [vmem:[#allocation7 + $0x98] sm:$0xff]
        %v567 = vld [vmem:[#allocation7 + $0xa0] sm:$0xff]
        %v568 = vld [vmem:[#allocation7 + $0xa8] sm:$0xff]
        %v569 = vld [vmem:[#allocation7 + $0xb0] sm:$0xff]
        %v570 = vld [vmem:[#allocation7 + $0xb8] sm:$0xff]
        %v571 = vld [vmem:[#allocation7 + $0xc0] sm:$0xff]
        %v572 = vld [vmem:[#allocation7 + $0xc8] sm:$0xff]
        %v573 = vld [vmem:[#allocation7 + $0xd0] sm:$0xff]
        %v574 = vld [vmem:[#allocation7 + $0xd8] sm:$0xff]
        %v575 = vld [vmem:[#allocation7 + $0xe0] sm:$0xff]
        %v576 = vld [vmem:[#allocation7 + $0xe8] sm:$0xff]
        %v577 = vld [vmem:[#allocation7 + $0xf0] sm:$0xff]
        %v578 = vld [vmem:[#allocation7 + $0xf8] sm:$0xff]
        %v579 = vld [vmem:[%s3] sm:$0x3]
        %v581 = vlaneseq
        %v582 = vshrl.u32 %v581, 7
        %v583 = vsub.s32 0, %v582
        %v584 = vrot.slane %v579, %v583
        %v585 = vlaneseq
        %v586 = vshrl.u32 %v585, 7
        %v587 = vsub.s32 1, %v586
        %v588 = vrot.slane %v579, %v587
        %v623 = vunpack.c.l.b16 %v547
        %v624 = vunpack.c.h.b16 %v547
        %v625 = vunpack.c.l.b16 %v548
        %v626 = vunpack.c.h.b16 %v548
        %v627 = vunpack.c.l.b16 %v549
        %v628 = vunpack.c.h.b16 %v549
        %v629 = vunpack.c.l.b16 %v550
        %v630 = vunpack.c.h.b16 %v550
        %v631 = vunpack.c.l.b16 %v551
        %v632 = vunpack.c.h.b16 %v551
        %v633 = vunpack.c.l.b16 %v552
        %v634 = vunpack.c.h.b16 %v552
        %v635 = vunpack.c.l.b16 %v553
        %v636 = vunpack.c.h.b16 %v553
        %v637 = vunpack.c.l.b16 %v554
        %v638 = vunpack.c.h.b16 %v554
        %v639 = vunpack.c.l.b16 %v555
        %v640 = vunpack.c.h.b16 %v555
        %v641 = vunpack.c.l.b16 %v556
        %v642 = vunpack.c.h.b16 %v556
        %v643 = vunpack.c.l.b16 %v557
        %v644 = vunpack.c.h.b16 %v557
        %v645 = vunpack.c.l.b16 %v558
        %v646 = vunpack.c.h.b16 %v558
        %v647 = vunpack.c.l.b16 %v559
        %v648 = vunpack.c.h.b16 %v559
        %v649 = vunpack.c.l.b16 %v560
        %v650 = vunpack.c.h.b16 %v560
        %v651 = vunpack.c.l.b16 %v561
        %v652 = vunpack.c.h.b16 %v561
        %v653 = vunpack.c.l.b16 %v562
        %v654 = vunpack.c.h.b16 %v562
        %v655 = vunpack.c.l.b16 %v563
        %v656 = vunpack.c.h.b16 %v563
        %v657 = vunpack.c.l.b16 %v564
        %v658 = vunpack.c.h.b16 %v564
        %v659 = vunpack.c.l.b16 %v565
        %v660 = vunpack.c.h.b16 %v565
        %v661 = vunpack.c.l.b16 %v566
        %v662 = vunpack.c.h.b16 %v566
        %v663 = vunpack.c.l.b16 %v567
        %v664 = vunpack.c.h.b16 %v567
        %v665 = vunpack.c.l.b16 %v568
        %v666 = vunpack.c.h.b16 %v568
        %v667 = vunpack.c.l.b16 %v569
        %v668 = vunpack.c.h.b16 %v569
        %v669 = vunpack.c.l.b16 %v570
        %v670 = vunpack.c.h.b16 %v570
        %v671 = vunpack.c.l.b16 %v571
        %v672 = vunpack.c.h.b16 %v571
        %v673 = vunpack.c.l.b16 %v572
        %v674 = vunpack.c.h.b16 %v572
        %v675 = vunpack.c.l.b16 %v573
        %v676 = vunpack.c.h.b16 %v573
        %v677 = vunpack.c.l.b16 %v574
        %v678 = vunpack.c.h.b16 %v574
        %v679 = vunpack.c.l.b16 %v575
        %v680 = vunpack.c.h.b16 %v575
        %v681 = vunpack.c.l.b16 %v576
        %v682 = vunpack.c.h.b16 %v576
        %v683 = vunpack.c.l.b16 %v577
        %v684 = vunpack.c.h.b16 %v577
        %v685 = vunpack.c.l.b16 %v578
        %v686 = vunpack.c.h.b16 %v578
        %v687 = vpack.c.b16 %v625, %v623
        %v688 = vpack.c.b16 %v626, %v624
        %v689 = vpack.c.b16 %v629, %v627
        %v690 = vpack.c.b16 %v630, %v628
        %v691 = vpack.c.b16 %v633, %v631
        %v692 = vpack.c.b16 %v634, %v632
        %v693 = vpack.c.b16 %v637, %v635
        %v694 = vpack.c.b16 %v638, %v636
        %v695 = vpack.c.b16 %v641, %v639
        %v696 = vpack.c.b16 %v642, %v640
        %v697 = vpack.c.b16 %v645, %v643
        %v698 = vpack.c.b16 %v646, %v644
        %v699 = vpack.c.b16 %v649, %v647
        %v700 = vpack.c.b16 %v650, %v648
        %v701 = vpack.c.b16 %v653, %v651
        %v702 = vpack.c.b16 %v654, %v652
        %v703 = vpack.c.b16 %v657, %v655
        %v704 = vpack.c.b16 %v658, %v656
        %v705 = vpack.c.b16 %v661, %v659
        %v706 = vpack.c.b16 %v662, %v660
        %v707 = vpack.c.b16 %v665, %v663
        %v708 = vpack.c.b16 %v666, %v664
        %v709 = vpack.c.b16 %v669, %v667
        %v710 = vpack.c.b16 %v670, %v668
        %v711 = vpack.c.b16 %v673, %v671
        %v712 = vpack.c.b16 %v674, %v672
        %v713 = vpack.c.b16 %v677, %v675
        %v714 = vpack.c.b16 %v678, %v676
        %v715 = vpack.c.b16 %v681, %v679
        %v716 = vpack.c.b16 %v682, %v680
        %v717 = vpack.c.b16 %v685, %v683
        %v718 = vpack.c.b16 %v686, %v684
        %751 = vmatprep.subr.bf16.mxu0 %v702
        %752 = vmatpush1.bf16.msra.mxu0 %v701
        %753 = vmatprep.subr.bf16.mxu0 %v700
        %754 = vmatpush1.bf16.msra.mxu0 %v699
        %755 = vmatprep.subr.bf16.mxu0 %v698
        %756 = vmatpush1.bf16.msra.mxu0 %v697
        %757 = vmatprep.subr.bf16.mxu0 %v696
        %758 = vmatpush1.bf16.msra.mxu0 %v695
        %759 = vmatprep.subr.bf16.mxu0 %v694
        %760 = vmatpush1.bf16.msra.mxu0 %v693
        %761 = vmatprep.subr.bf16.mxu0 %v692
        %762 = vmatpush1.bf16.msra.mxu0 %v691
        %763 = vmatprep.subr.bf16.mxu0 %v690
        %764 = vmatpush1.bf16.msra.mxu0 %v689
        %765 = vmatprep.subr.bf16.mxu0 %v688
        %766 = vmatpush1.bf16.msra.mxu0 %v687
        %767 = vmatprep.subr.bf16.mxu0 %v718
        %768 = vmatpush2.bf16.msra.mxu0 %v717
        %769 = vmatprep.subr.bf16.mxu0 %v716
        %770 = vmatpush2.bf16.msra.mxu0 %v715
        %771 = vmatprep.subr.bf16.mxu0 %v714
        %772 = vmatpush2.bf16.msra.mxu0 %v713
        %773 = vmatprep.subr.bf16.mxu0 %v712
        %774 = vmatpush2.bf16.msra.mxu0 %v711
        %775 = vmatprep.subr.bf16.mxu0 %v710
        %776 = vmatpush2.bf16.msra.mxu0 %v709
        %777 = vmatprep.subr.bf16.mxu0 %v708
        %778 = vmatpush2.bf16.msra.mxu0 %v707
        %779 = vmatprep.subr.bf16.mxu0 %v706
        %780 = vmatpush2.bf16.msra.mxu0 %v705
        %781 = vmatprep.subr.bf16.mxu0 %v704
        %782 = vmatpush2.bf16.msra.mxu0 %v703
        %783 = vmatprep.mubr.bf16.mxu0 %v500
        %784 = vmatmul.mubr.bf16.gmra.mxu0 %v499
        %v785 = vpop.f32.mrf.mxu0
        %v786 = vadd.f32 %v584, %v785
        %v787 = vpop.f32.mrf.mxu0
        %v788 = vadd.f32 %v588, %v787
        %v789 = vpop.f32.mrf.mxu0
        %v790 = vadd.f32 %v584, %v789
        %v791 = vpop.f32.mrf.mxu0
        %v792 = vadd.f32 %v588, %v791
        %793 = vmatprep.mubr.bf16.mxu0 %v502
        %794 = vmatmul.mubr.bf16.gmra.mxu0 %v501
        %v795 = vpop.f32.mrf.mxu0
        %v796 = vadd.f32 %v584, %v795
        %v797 = vpop.f32.mrf.mxu0
        %v798 = vadd.f32 %v588, %v797
        %v799 = vpop.f32.mrf.mxu0
        %v800 = vadd.f32 %v584, %v799
        %v801 = vpop.f32.mrf.mxu0
        %v802 = vadd.f32 %v588, %v801
        %803 = vmatprep.mubr.bf16.mxu0 %v504
        %804 = vmatmul.mubr.bf16.gmra.mxu0 %v503
        %v805 = vpop.f32.mrf.mxu0
        %v806 = vadd.f32 %v584, %v805
        %v807 = vpop.f32.mrf.mxu0
        %v808 = vadd.f32 %v588, %v807
        %v809 = vpop.f32.mrf.mxu0
        %v810 = vadd.f32 %v584, %v809
        %v811 = vpop.f32.mrf.mxu0
        %v812 = vadd.f32 %v588, %v811
        %813 = vmatprep.mubr.bf16.mxu0 %v506
        %814 = vmatmul.mubr.bf16.gmra.mxu0 %v505
        %v815 = vpop.f32.mrf.mxu0
        %v816 = vadd.f32 %v584, %v815
        %v817 = vpop.f32.mrf.mxu0
        %v818 = vadd.f32 %v588, %v817
        %v819 = vpop.f32.mrf.mxu0
        %v820 = vadd.f32 %v584, %v819
        %v821 = vpop.f32.mrf.mxu0
        %v822 = vadd.f32 %v588, %v821
        %823 = vmatprep.mubr.bf16.mxu0 %v508
        %824 = vmatmul.mubr.bf16.gmra.mxu0 %v507
        %v825 = vpop.f32.mrf.mxu0
        %v826 = vadd.f32 %v584, %v825
        %v827 = vpop.f32.mrf.mxu0
        %v828 = vadd.f32 %v588, %v827
        %v829 = vpop.f32.mrf.mxu0
        %v830 = vadd.f32 %v584, %v829
        %v831 = vpop.f32.mrf.mxu0
        %v832 = vadd.f32 %v588, %v831
        %833 = vmatprep.mubr.bf16.mxu0 %v510
        %834 = vmatmul.mubr.bf16.gmra.mxu0 %v509
        %v835 = vpop.f32.mrf.mxu0
        %v836 = vadd.f32 %v584, %v835
        %v837 = vpop.f32.mrf.mxu0
        %v838 = vadd.f32 %v588, %v837
        %v839 = vpop.f32.mrf.mxu0
        %v840 = vadd.f32 %v584, %v839
        %v841 = vpop.f32.mrf.mxu0
        %v842 = vadd.f32 %v588, %v841
        %843 = vmatprep.mubr.bf16.mxu0 %v512
        %844 = vmatmul.mubr.bf16.gmra.mxu0 %v511
        %v845 = vpop.f32.mrf.mxu0
        %v846 = vadd.f32 %v584, %v845
        %v847 = vpop.f32.mrf.mxu0
        %v848 = vadd.f32 %v588, %v847
        %v849 = vpop.f32.mrf.mxu0
        %v850 = vadd.f32 %v584, %v849
        %v851 = vpop.f32.mrf.mxu0
        %v852 = vadd.f32 %v588, %v851
        %853 = vmatprep.mubr.bf16.mxu0 %v514
        %854 = vmatmul.mubr.bf16.gmra.mxu0 %v513
        %v855 = vpop.f32.mrf.mxu0
        %v856 = vadd.f32 %v584, %v855
        %v857 = vpop.f32.mrf.mxu0
        %v858 = vadd.f32 %v588, %v857
        %v859 = vpop.f32.mrf.mxu0
        %v860 = vadd.f32 %v584, %v859
        %v861 = vpop.f32.mrf.mxu0
        %v862 = vadd.f32 %v588, %v861
        %863 = vdwg.mxu0
        %v864 = vpack.c.bf16 %v790, %v786
        %v865 = vpack.c.bf16 %v792, %v788
        %v866 = vpack.c.bf16 %v800, %v796
        %v867 = vpack.c.bf16 %v802, %v798
        %v868 = vpack.c.bf16 %v810, %v806
        %v869 = vpack.c.bf16 %v812, %v808
        %v870 = vpack.c.bf16 %v820, %v816
        %v871 = vpack.c.bf16 %v822, %v818
        %v872 = vpack.c.bf16 %v830, %v826
        %v873 = vpack.c.bf16 %v832, %v828
        %v874 = vpack.c.bf16 %v840, %v836
        %v875 = vpack.c.bf16 %v842, %v838
        %v876 = vpack.c.bf16 %v850, %v846
        %v877 = vpack.c.bf16 %v852, %v848
        %v878 = vpack.c.bf16 %v860, %v856
        %v879 = vpack.c.bf16 %v862, %v858
        %v880 = vld [vmem:[#allocation8] sm:$0xff]
        %v881 = vld [vmem:[#allocation8 + $0x8] sm:$0xff]
        %v882 = vld [vmem:[#allocation8 + $0x10] sm:$0xff]
        %v883 = vld [vmem:[#allocation8 + $0x18] sm:$0xff]
        %v884 = vld [vmem:[#allocation8 + $0x20] sm:$0xff]
        %v885 = vld [vmem:[#allocation8 + $0x28] sm:$0xff]
        %v886 = vld [vmem:[#allocation8 + $0x30] sm:$0xff]
        %v887 = vld [vmem:[#allocation8 + $0x38] sm:$0xff]
        %v888 = vld [vmem:[#allocation8 + $0x40] sm:$0xff]
        %v889 = vld [vmem:[#allocation8 + $0x48] sm:$0xff]
        %v890 = vld [vmem:[#allocation8 + $0x50] sm:$0xff]
        %v891 = vld [vmem:[#allocation8 + $0x58] sm:$0xff]
        %v892 = vld [vmem:[#allocation8 + $0x60] sm:$0xff]
        %v893 = vld [vmem:[#allocation8 + $0x68] sm:$0xff]
        %v894 = vld [vmem:[#allocation8 + $0x70] sm:$0xff]
        %v895 = vld [vmem:[#allocation8 + $0x78] sm:$0xff]
        %v896 = vld [vmem:[#allocation8 + $0x80] sm:$0xff]
        %v897 = vld [vmem:[#allocation8 + $0x88] sm:$0xff]
        %v898 = vld [vmem:[#allocation8 + $0x90] sm:$0xff]
        %v899 = vld [vmem:[#allocation8 + $0x98] sm:$0xff]
        %v900 = vld [vmem:[#allocation8 + $0xa0] sm:$0xff]
        %v901 = vld [vmem:[#allocation8 + $0xa8] sm:$0xff]
        %v902 = vld [vmem:[#allocation8 + $0xb0] sm:$0xff]
        %v903 = vld [vmem:[#allocation8 + $0xb8] sm:$0xff]
        %v904 = vld [vmem:[#allocation8 + $0xc0] sm:$0xff]
        %v905 = vld [vmem:[#allocation8 + $0xc8] sm:$0xff]
        %v906 = vld [vmem:[#allocation8 + $0xd0] sm:$0xff]
        %v907 = vld [vmem:[#allocation8 + $0xd8] sm:$0xff]
        %v908 = vld [vmem:[#allocation8 + $0xe0] sm:$0xff]
        %v909 = vld [vmem:[#allocation8 + $0xe8] sm:$0xff]
        %v910 = vld [vmem:[#allocation8 + $0xf0] sm:$0xff]
        %v911 = vld [vmem:[#allocation8 + $0xf8] sm:$0xff]
        %v912 = vld [vmem:[%s5] sm:$0xf]
        %v914 = vlaneseq
        %v915 = vshrl.u32 %v914, 7
        %v916 = vsub.s32 0, %v915
        %v917 = vrot.slane %v912, %v916
        %v918 = vlaneseq
        %v919 = vshrl.u32 %v918, 7
        %v920 = vsub.s32 1, %v919
        %v921 = vrot.slane %v912, %v920
        %v922 = vlaneseq
        %v923 = vshrl.u32 %v922, 7
        %v924 = vsub.s32 2, %v923
        %v925 = vrot.slane %v912, %v924
        %v926 = vlaneseq
        %v927 = vshrl.u32 %v926, 7
        %v928 = vsub.s32 3, %v927
        %v929 = vrot.slane %v912, %v928
        %v966 = vunpack.c.l.b16 %v515
        %v967 = vunpack.c.l.b16 %v516
        %v968 = vunpack.c.l.b16 %v517
        %v969 = vunpack.c.l.b16 %v518
        %v970 = vunpack.c.l.b16 %v519
        %v971 = vunpack.c.l.b16 %v520
        %v972 = vunpack.c.l.b16 %v521
        %v973 = vunpack.c.l.b16 %v522
        %v974 = vunpack.c.l.b16 %v523
        %v975 = vunpack.c.l.b16 %v524
        %v976 = vunpack.c.l.b16 %v525
        %v977 = vunpack.c.l.b16 %v526
        %v978 = vunpack.c.l.b16 %v527
        %v979 = vunpack.c.l.b16 %v528
        %v980 = vunpack.c.l.b16 %v529
        %v981 = vunpack.c.l.b16 %v530
        %v982 = vunpack.c.l.b16 %v531
        %v983 = vunpack.c.l.b16 %v532
        %v984 = vunpack.c.l.b16 %v533
        %v985 = vunpack.c.l.b16 %v534
        %v986 = vunpack.c.l.b16 %v535
        %v987 = vunpack.c.l.b16 %v536
        %v988 = vunpack.c.l.b16 %v537
        %v989 = vunpack.c.l.b16 %v538
        %v990 = vunpack.c.l.b16 %v539
        %v991 = vunpack.c.l.b16 %v540
        %v992 = vunpack.c.l.b16 %v541
        %v993 = vunpack.c.l.b16 %v542
        %v994 = vunpack.c.l.b16 %v543
        %v995 = vunpack.c.l.b16 %v544
        %v996 = vunpack.c.l.b16 %v545
        %v997 = vunpack.c.l.b16 %v546
        %v998 = vpack.c.b16 %v967, %v966
        %v999 = vpack.c.b16 %v969, %v968
        %v1000 = vpack.c.b16 %v971, %v970
        %v1001 = vpack.c.b16 %v973, %v972
        %v1002 = vpack.c.b16 %v975, %v974
        %v1003 = vpack.c.b16 %v977, %v976
        %v1004 = vpack.c.b16 %v979, %v978
        %v1005 = vpack.c.b16 %v981, %v980
        %v1006 = vpack.c.b16 %v983, %v982
        %v1007 = vpack.c.b16 %v985, %v984
        %v1008 = vpack.c.b16 %v987, %v986
        %v1009 = vpack.c.b16 %v989, %v988
        %v1010 = vpack.c.b16 %v991, %v990
        %v1011 = vpack.c.b16 %v993, %v992
        %v1012 = vpack.c.b16 %v995, %v994
        %v1013 = vpack.c.b16 %v997, %v996
        %v1062 = vunpack.c.l.b16 %v880
        %v1063 = vunpack.c.h.b16 %v880
        %v1064 = vunpack.c.l.b16 %v881
        %v1065 = vunpack.c.h.b16 %v881
        %v1066 = vunpack.c.l.b16 %v882
        %v1067 = vunpack.c.h.b16 %v882
        %v1068 = vunpack.c.l.b16 %v883
        %v1069 = vunpack.c.h.b16 %v883
        %v1070 = vunpack.c.l.b16 %v884
        %v1071 = vunpack.c.h.b16 %v884
        %v1072 = vunpack.c.l.b16 %v885
        %v1073 = vunpack.c.h.b16 %v885
        %v1074 = vunpack.c.l.b16 %v886
        %v1075 = vunpack.c.h.b16 %v886
        %v1076 = vunpack.c.l.b16 %v887
        %v1077 = vunpack.c.h.b16 %v887
        %v1078 = vunpack.c.l.b16 %v888
        %v1079 = vunpack.c.h.b16 %v888
        %v1080 = vunpack.c.l.b16 %v889
        %v1081 = vunpack.c.h.b16 %v889
        %v1082 = vunpack.c.l.b16 %v890
        %v1083 = vunpack.c.h.b16 %v890
        %v1084 = vunpack.c.l.b16 %v891
        %v1085 = vunpack.c.h.b16 %v891
        %v1086 = vunpack.c.l.b16 %v892
        %v1087 = vunpack.c.h.b16 %v892
        %v1088 = vunpack.c.l.b16 %v893
        %v1089 = vunpack.c.h.b16 %v893
        %v1090 = vunpack.c.l.b16 %v894
        %v1091 = vunpack.c.h.b16 %v894
        %v1092 = vunpack.c.l.b16 %v895
        %v1093 = vunpack.c.h.b16 %v895
        %v1094 = vunpack.c.l.b16 %v896
        %v1095 = vunpack.c.h.b16 %v896
        %v1096 = vunpack.c.l.b16 %v897
        %v1097 = vunpack.c.h.b16 %v897
        %v1098 = vunpack.c.l.b16 %v898
        %v1099 = vunpack.c.h.b16 %v898
        %v1100 = vunpack.c.l.b16 %v899
        %v1101 = vunpack.c.h.b16 %v899
        %v1102 = vunpack.c.l.b16 %v900
        %v1103 = vunpack.c.h.b16 %v900
        %v1104 = vunpack.c.l.b16 %v901
        %v1105 = vunpack.c.h.b16 %v901
        %v1106 = vunpack.c.l.b16 %v902
        %v1107 = vunpack.c.h.b16 %v902
        %v1108 = vunpack.c.l.b16 %v903
        %v1109 = vunpack.c.h.b16 %v903
        %v1110 = vunpack.c.l.b16 %v904
        %v1111 = vunpack.c.h.b16 %v904
        %v1112 = vunpack.c.l.b16 %v905
        %v1113 = vunpack.c.h.b16 %v905
        %v1114 = vunpack.c.l.b16 %v906
        %v1115 = vunpack.c.h.b16 %v906
        %v1116 = vunpack.c.l.b16 %v907
        %v1117 = vunpack.c.h.b16 %v907
        %v1118 = vunpack.c.l.b16 %v908
        %v1119 = vunpack.c.h.b16 %v908
        %v1120 = vunpack.c.l.b16 %v909
        %v1121 = vunpack.c.h.b16 %v909
        %v1122 = vunpack.c.l.b16 %v910
        %v1123 = vunpack.c.h.b16 %v910
        %v1124 = vunpack.c.l.b16 %v911
        %v1125 = vunpack.c.h.b16 %v911
        %v1126 = vpack.c.b16 %v1066, %v1062
        %v1127 = vpack.c.b16 %v1067, %v1063
        %v1128 = vpack.c.b16 %v1068, %v1064
        %v1129 = vpack.c.b16 %v1069, %v1065
        %v1130 = vpack.c.b16 %v1074, %v1070
        %v1131 = vpack.c.b16 %v1075, %v1071
        %v1132 = vpack.c.b16 %v1076, %v1072
        %v1133 = vpack.c.b16 %v1077, %v1073
        %v1134 = vpack.c.b16 %v1082, %v1078
        %v1135 = vpack.c.b16 %v1083, %v1079
        %v1136 = vpack.c.b16 %v1084, %v1080
        %v1137 = vpack.c.b16 %v1085, %v1081
        %v1138 = vpack.c.b16 %v1090, %v1086
        %v1139 = vpack.c.b16 %v1091, %v1087
        %v1140 = vpack.c.b16 %v1092, %v1088
        %v1141 = vpack.c.b16 %v1093, %v1089
        %v1142 = vpack.c.b16 %v1098, %v1094
        %v1143 = vpack.c.b16 %v1099, %v1095
        %v1144 = vpack.c.b16 %v1100, %v1096
        %v1145 = vpack.c.b16 %v1101, %v1097
        %v1146 = vpack.c.b16 %v1106, %v1102
        %v1147 = vpack.c.b16 %v1107, %v1103
        %v1148 = vpack.c.b16 %v1108, %v1104
        %v1149 = vpack.c.b16 %v1109, %v1105
        %v1150 = vpack.c.b16 %v1114, %v1110
        %v1151 = vpack.c.b16 %v1115, %v1111
        %v1152 = vpack.c.b16 %v1116, %v1112
        %v1153 = vpack.c.b16 %v1117, %v1113
        %v1154 = vpack.c.b16 %v1122, %v1118
        %v1155 = vpack.c.b16 %v1123, %v1119
        %v1156 = vpack.c.b16 %v1124, %v1120
        %v1157 = vpack.c.b16 %v1125, %v1121
        %1190 = vmatprep.subr.bf16.mxu0 %v1155
        %1191 = vmatpush1.bf16.msra.mxu0 %v1154
        %1192 = vmatprep.subr.bf16.mxu0 %v1151
        %1193 = vmatpush1.bf16.msra.mxu0 %v1150
        %1194 = vmatprep.subr.bf16.mxu0 %v1147
        %1195 = vmatpush1.bf16.msra.mxu0 %v1146
        %1196 = vmatprep.subr.bf16.mxu0 %v1143
        %1197 = vmatpush1.bf16.msra.mxu0 %v1142
        %1198 = vmatprep.subr.bf16.mxu0 %v1139
        %1199 = vmatpush1.bf16.msra.mxu0 %v1138
        %1200 = vmatprep.subr.bf16.mxu0 %v1135
        %1201 = vmatpush1.bf16.msra.mxu0 %v1134
        %1202 = vmatprep.subr.bf16.mxu0 %v1131
        %1203 = vmatpush1.bf16.msra.mxu0 %v1130
        %1204 = vmatprep.subr.bf16.mxu0 %v1127
        %1205 = vmatpush1.bf16.msra.mxu0 %v1126
        %1206 = vmatprep.subr.bf16.mxu0 0
        %1207 = vmatpush2.bf16.msra.mxu0 0
        %1208 = vmatprep.subr.bf16.mxu0 0
        %1209 = vmatpush2.bf16.msra.mxu0 0
        %1210 = vmatprep.subr.bf16.mxu0 0
        %1211 = vmatpush2.bf16.msra.mxu0 0
        %1212 = vmatprep.subr.bf16.mxu0 0
        %1213 = vmatpush2.bf16.msra.mxu0 0
        %1214 = vmatprep.subr.bf16.mxu0 0
        %1215 = vmatpush2.bf16.msra.mxu0 0
        %1216 = vmatprep.subr.bf16.mxu0 0
        %1217 = vmatpush2.bf16.msra.mxu0 0
        %1218 = vmatprep.subr.bf16.mxu0 0
        %1219 = vmatpush2.bf16.msra.mxu0 0
        %1220 = vmatprep.subr.bf16.mxu0 0
        %1221 = vmatpush2.bf16.msra.mxu0 0
        %1222 = vmatprep.mubr.bf16.mxu0 0
        %1223 = vmatmul.mubr.bf16.gmra.mxu0 %v998
        %v1224 = vpop.f32.mrf.mxu0
        %v1225 = vadd.f32 %v917, %v1224
        %v1226 = vpop.f32.mrf.mxu0
        %v1227 = vadd.f32 %v921, %v1226
        %v1228 = vpop.f32.mrf.mxu0
        %v1229 = vadd.f32 %v917, %v1228
        %v1230 = vpop.f32.mrf.mxu0
        %v1231 = vadd.f32 %v921, %v1230
        %1232 = vmatprep.mubr.bf16.mxu0 0
        %1233 = vmatmul.mubr.bf16.gmra.mxu0 %v999
        %v1234 = vpop.f32.mrf.mxu0
        %v1235 = vadd.f32 %v917, %v1234
        %v1236 = vpop.f32.mrf.mxu0
        %v1237 = vadd.f32 %v921, %v1236
        %v1238 = vpop.f32.mrf.mxu0
        %v1239 = vadd.f32 %v917, %v1238
        %v1240 = vpop.f32.mrf.mxu0
        %v1241 = vadd.f32 %v921, %v1240
        %1242 = vmatprep.mubr.bf16.mxu0 0
        %1243 = vmatmul.mubr.bf16.gmra.mxu0 %v1000
        %v1244 = vpop.f32.mrf.mxu0
        %v1245 = vadd.f32 %v917, %v1244
        %v1246 = vpop.f32.mrf.mxu0
        %v1247 = vadd.f32 %v921, %v1246
        %v1248 = vpop.f32.mrf.mxu0
        %v1249 = vadd.f32 %v917, %v1248
        %v1250 = vpop.f32.mrf.mxu0
        %v1251 = vadd.f32 %v921, %v1250
        %1252 = vmatprep.mubr.bf16.mxu0 0
        %1253 = vmatmul.mubr.bf16.gmra.mxu0 %v1001
        %v1254 = vpop.f32.mrf.mxu0
        %v1255 = vadd.f32 %v917, %v1254
        %v1256 = vpop.f32.mrf.mxu0
        %v1257 = vadd.f32 %v921, %v1256
        %v1258 = vpop.f32.mrf.mxu0
        %v1259 = vadd.f32 %v917, %v1258
        %v1260 = vpop.f32.mrf.mxu0
        %v1261 = vadd.f32 %v921, %v1260
        %1262 = vmatprep.mubr.bf16.mxu0 0
        %1263 = vmatmul.mubr.bf16.gmra.mxu0 %v1002
        %v1264 = vpop.f32.mrf.mxu0
        %v1265 = vadd.f32 %v917, %v1264
        %v1266 = vpop.f32.mrf.mxu0
        %v1267 = vadd.f32 %v921, %v1266
        %v1268 = vpop.f32.mrf.mxu0
        %v1269 = vadd.f32 %v917, %v1268
        %v1270 = vpop.f32.mrf.mxu0
        %v1271 = vadd.f32 %v921, %v1270
        %1272 = vmatprep.mubr.bf16.mxu0 0
        %1273 = vmatmul.mubr.bf16.gmra.mxu0 %v1003
        %v1274 = vpop.f32.mrf.mxu0
        %v1275 = vadd.f32 %v917, %v1274
        %v1276 = vpop.f32.mrf.mxu0
        %v1277 = vadd.f32 %v921, %v1276
        %v1278 = vpop.f32.mrf.mxu0
        %v1279 = vadd.f32 %v917, %v1278
        %v1280 = vpop.f32.mrf.mxu0
        %v1281 = vadd.f32 %v921, %v1280
        %1282 = vmatprep.mubr.bf16.mxu0 0
        %1283 = vmatmul.mubr.bf16.gmra.mxu0 %v1004
        %v1284 = vpop.f32.mrf.mxu0
        %v1285 = vadd.f32 %v917, %v1284
        %v1286 = vpop.f32.mrf.mxu0
        %v1287 = vadd.f32 %v921, %v1286
        %v1288 = vpop.f32.mrf.mxu0
        %v1289 = vadd.f32 %v917, %v1288
        %v1290 = vpop.f32.mrf.mxu0
        %v1291 = vadd.f32 %v921, %v1290
        %1292 = vmatprep.mubr.bf16.mxu0 0
        %1293 = vmatmul.mubr.bf16.gmra.mxu0 %v1005
        %v1294 = vpop.f32.mrf.mxu0
        %v1295 = vadd.f32 %v917, %v1294
        %v1296 = vpop.f32.mrf.mxu0
        %v1297 = vadd.f32 %v921, %v1296
        %v1298 = vpop.f32.mrf.mxu0
        %v1299 = vadd.f32 %v917, %v1298
        %v1300 = vpop.f32.mrf.mxu0
        %v1301 = vadd.f32 %v921, %v1300
        %1302 = vmatprep.mubr.bf16.mxu0 0
        %1303 = vmatmul.mubr.bf16.gmra.mxu0 %v1006
        %v1304 = vpop.f32.mrf.mxu0
        %v1305 = vadd.f32 %v917, %v1304
        %v1306 = vpop.f32.mrf.mxu0
        %v1307 = vadd.f32 %v921, %v1306
        %v1308 = vpop.f32.mrf.mxu0
        %v1309 = vadd.f32 %v917, %v1308
        %v1310 = vpop.f32.mrf.mxu0
        %v1311 = vadd.f32 %v921, %v1310
        %1312 = vmatprep.mubr.bf16.mxu0 0
        %1313 = vmatmul.mubr.bf16.gmra.mxu0 %v1007
        %v1314 = vpop.f32.mrf.mxu0
        %v1315 = vadd.f32 %v917, %v1314
        %v1316 = vpop.f32.mrf.mxu0
        %v1317 = vadd.f32 %v921, %v1316
        %v1318 = vpop.f32.mrf.mxu0
        %v1319 = vadd.f32 %v917, %v1318
        %v1320 = vpop.f32.mrf.mxu0
        %v1321 = vadd.f32 %v921, %v1320
        %1322 = vmatprep.mubr.bf16.mxu0 0
        %1323 = vmatmul.mubr.bf16.gmra.mxu0 %v1008
        %v1324 = vpop.f32.mrf.mxu0
        %v1325 = vadd.f32 %v917, %v1324
        %v1326 = vpop.f32.mrf.mxu0
        %v1327 = vadd.f32 %v921, %v1326
        %v1328 = vpop.f32.mrf.mxu0
        %v1329 = vadd.f32 %v917, %v1328
        %v1330 = vpop.f32.mrf.mxu0
        %v1331 = vadd.f32 %v921, %v1330
        %1332 = vmatprep.mubr.bf16.mxu0 0
        %1333 = vmatmul.mubr.bf16.gmra.mxu0 %v1009
        %v1334 = vpop.f32.mrf.mxu0
        %v1335 = vadd.f32 %v917, %v1334
        %v1336 = vpop.f32.mrf.mxu0
        %v1337 = vadd.f32 %v921, %v1336
        %v1338 = vpop.f32.mrf.mxu0
        %v1339 = vadd.f32 %v917, %v1338
        %v1340 = vpop.f32.mrf.mxu0
        %v1341 = vadd.f32 %v921, %v1340
        %1342 = vmatprep.mubr.bf16.mxu0 0
        %1343 = vmatmul.mubr.bf16.gmra.mxu0 %v1010
        %v1344 = vpop.f32.mrf.mxu0
        %v1345 = vadd.f32 %v917, %v1344
        %v1346 = vpop.f32.mrf.mxu0
        %v1347 = vadd.f32 %v921, %v1346
        %v1348 = vpop.f32.mrf.mxu0
        %v1349 = vadd.f32 %v917, %v1348
        %v1350 = vpop.f32.mrf.mxu0
        %v1351 = vadd.f32 %v921, %v1350
        %1352 = vmatprep.mubr.bf16.mxu0 0
        %1353 = vmatmul.mubr.bf16.gmra.mxu0 %v1011
        %v1354 = vpop.f32.mrf.mxu0
        %v1355 = vadd.f32 %v917, %v1354
        %v1356 = vpop.f32.mrf.mxu0
        %v1357 = vadd.f32 %v921, %v1356
        %v1358 = vpop.f32.mrf.mxu0
        %v1359 = vadd.f32 %v917, %v1358
        %v1360 = vpop.f32.mrf.mxu0
        %v1361 = vadd.f32 %v921, %v1360
        %1362 = vmatprep.mubr.bf16.mxu0 0
        %1363 = vmatmul.mubr.bf16.gmra.mxu0 %v1012
        %v1364 = vpop.f32.mrf.mxu0
        %v1365 = vadd.f32 %v917, %v1364
        %v1366 = vpop.f32.mrf.mxu0
        %v1367 = vadd.f32 %v921, %v1366
        %v1368 = vpop.f32.mrf.mxu0
        %v1369 = vadd.f32 %v917, %v1368
        %v1370 = vpop.f32.mrf.mxu0
        %v1371 = vadd.f32 %v921, %v1370
        %1372 = vmatprep.mubr.bf16.mxu0 0
        %1373 = vmatmul.mubr.bf16.gmra.mxu0 %v1013
        %v1374 = vpop.f32.mrf.mxu0
        %v1375 = vadd.f32 %v917, %v1374
        %v1376 = vpop.f32.mrf.mxu0
        %v1377 = vadd.f32 %v921, %v1376
        %v1378 = vpop.f32.mrf.mxu0
        %v1379 = vadd.f32 %v917, %v1378
        %v1380 = vpop.f32.mrf.mxu0
        %v1381 = vadd.f32 %v921, %v1380
        %1382 = vdwg.mxu0
        %1383 = vmatprep.subr.bf16.mxu0 %v1157
        %1384 = vmatpush1.bf16.msra.mxu0 %v1156
        %1385 = vmatprep.subr.bf16.mxu0 %v1153
        %1386 = vmatpush1.bf16.msra.mxu0 %v1152
        %1387 = vmatprep.subr.bf16.mxu0 %v1149
        %1388 = vmatpush1.bf16.msra.mxu0 %v1148
        %1389 = vmatprep.subr.bf16.mxu0 %v1145
        %1390 = vmatpush1.bf16.msra.mxu0 %v1144
        %1391 = vmatprep.subr.bf16.mxu0 %v1141
        %1392 = vmatpush1.bf16.msra.mxu0 %v1140
        %1393 = vmatprep.subr.bf16.mxu0 %v1137
        %1394 = vmatpush1.bf16.msra.mxu0 %v1136
        %1395 = vmatprep.subr.bf16.mxu0 %v1133
        %1396 = vmatpush1.bf16.msra.mxu0 %v1132
        %1397 = vmatprep.subr.bf16.mxu0 %v1129
        %1398 = vmatpush1.bf16.msra.mxu0 %v1128
        %1399 = vmatprep.subr.bf16.mxu0 0
        %1400 = vmatpush2.bf16.msra.mxu0 0
        %1401 = vmatprep.subr.bf16.mxu0 0
        %1402 = vmatpush2.bf16.msra.mxu0 0
        %1403 = vmatprep.subr.bf16.mxu0 0
        %1404 = vmatpush2.bf16.msra.mxu0 0
        %1405 = vmatprep.subr.bf16.mxu0 0
        %1406 = vmatpush2.bf16.msra.mxu0 0
        %1407 = vmatprep.subr.bf16.mxu0 0
        %1408 = vmatpush2.bf16.msra.mxu0 0
        %1409 = vmatprep.subr.bf16.mxu0 0
        %1410 = vmatpush2.bf16.msra.mxu0 0
        %1411 = vmatprep.subr.bf16.mxu0 0
        %1412 = vmatpush2.bf16.msra.mxu0 0
        %1413 = vmatprep.subr.bf16.mxu0 0
        %1414 = vmatpush2.bf16.msra.mxu0 0
        %1415 = vmatprep.mubr.bf16.mxu0 0
        %1416 = vmatmul.mubr.bf16.gmra.mxu0 %v998
        %v1417 = vpop.f32.mrf.mxu0
        %v1418 = vadd.f32 %v925, %v1417
        %v1419 = vpop.f32.mrf.mxu0
        %v1420 = vadd.f32 %v929, %v1419
        %v1421 = vpop.f32.mrf.mxu0
        %v1422 = vadd.f32 %v925, %v1421
        %v1423 = vpop.f32.mrf.mxu0
        %v1424 = vadd.f32 %v929, %v1423
        %1425 = vmatprep.mubr.bf16.mxu0 0
        %1426 = vmatmul.mubr.bf16.gmra.mxu0 %v999
        %v1427 = vpop.f32.mrf.mxu0
        %v1428 = vadd.f32 %v925, %v1427
        %v1429 = vpop.f32.mrf.mxu0
        %v1430 = vadd.f32 %v929, %v1429
        %v1431 = vpop.f32.mrf.mxu0
        %v1432 = vadd.f32 %v925, %v1431
        %v1433 = vpop.f32.mrf.mxu0
        %v1434 = vadd.f32 %v929, %v1433
        %1435 = vmatprep.mubr.bf16.mxu0 0
        %1436 = vmatmul.mubr.bf16.gmra.mxu0 %v1000
        %v1437 = vpop.f32.mrf.mxu0
        %v1438 = vadd.f32 %v925, %v1437
        %v1439 = vpop.f32.mrf.mxu0
        %v1440 = vadd.f32 %v929, %v1439
        %v1441 = vpop.f32.mrf.mxu0
        %v1442 = vadd.f32 %v925, %v1441
        %v1443 = vpop.f32.mrf.mxu0
        %v1444 = vadd.f32 %v929, %v1443
        %1445 = vmatprep.mubr.bf16.mxu0 0
        %1446 = vmatmul.mubr.bf16.gmra.mxu0 %v1001
        %v1447 = vpop.f32.mrf.mxu0
        %v1448 = vadd.f32 %v925, %v1447
        %v1449 = vpop.f32.mrf.mxu0
        %v1450 = vadd.f32 %v929, %v1449
        %v1451 = vpop.f32.mrf.mxu0
        %v1452 = vadd.f32 %v925, %v1451
        %v1453 = vpop.f32.mrf.mxu0
        %v1454 = vadd.f32 %v929, %v1453
        %1455 = vmatprep.mubr.bf16.mxu0 0
        %1456 = vmatmul.mubr.bf16.gmra.mxu0 %v1002
        %v1457 = vpop.f32.mrf.mxu0
        %v1458 = vadd.f32 %v925, %v1457
        %v1459 = vpop.f32.mrf.mxu0
        %v1460 = vadd.f32 %v929, %v1459
        %v1461 = vpop.f32.mrf.mxu0
        %v1462 = vadd.f32 %v925, %v1461
        %v1463 = vpop.f32.mrf.mxu0
        %v1464 = vadd.f32 %v929, %v1463
        %1465 = vmatprep.mubr.bf16.mxu0 0
        %1466 = vmatmul.mubr.bf16.gmra.mxu0 %v1003
        %v1467 = vpop.f32.mrf.mxu0
        %v1468 = vadd.f32 %v925, %v1467
        %v1469 = vpop.f32.mrf.mxu0
        %v1470 = vadd.f32 %v929, %v1469
        %v1471 = vpop.f32.mrf.mxu0
        %v1472 = vadd.f32 %v925, %v1471
        %v1473 = vpop.f32.mrf.mxu0
        %v1474 = vadd.f32 %v929, %v1473
        %1475 = vmatprep.mubr.bf16.mxu0 0
        %1476 = vmatmul.mubr.bf16.gmra.mxu0 %v1004
        %v1477 = vpop.f32.mrf.mxu0
        %v1478 = vadd.f32 %v925, %v1477
        %v1479 = vpop.f32.mrf.mxu0
        %v1480 = vadd.f32 %v929, %v1479
        %v1481 = vpop.f32.mrf.mxu0
        %v1482 = vadd.f32 %v925, %v1481
        %v1483 = vpop.f32.mrf.mxu0
        %v1484 = vadd.f32 %v929, %v1483
        %1485 = vmatprep.mubr.bf16.mxu0 0
        %1486 = vmatmul.mubr.bf16.gmra.mxu0 %v1005
        %v1487 = vpop.f32.mrf.mxu0
        %v1488 = vadd.f32 %v925, %v1487
        %v1489 = vpop.f32.mrf.mxu0
        %v1490 = vadd.f32 %v929, %v1489
        %v1491 = vpop.f32.mrf.mxu0
        %v1492 = vadd.f32 %v925, %v1491
        %v1493 = vpop.f32.mrf.mxu0
        %v1494 = vadd.f32 %v929, %v1493
        %1495 = vmatprep.mubr.bf16.mxu0 0
        %1496 = vmatmul.mubr.bf16.gmra.mxu0 %v1006
        %v1497 = vpop.f32.mrf.mxu0
        %v1498 = vadd.f32 %v925, %v1497
        %v1499 = vpop.f32.mrf.mxu0
        %v1500 = vadd.f32 %v929, %v1499
        %v1501 = vpop.f32.mrf.mxu0
        %v1502 = vadd.f32 %v925, %v1501
        %v1503 = vpop.f32.mrf.mxu0
        %v1504 = vadd.f32 %v929, %v1503
        %1505 = vmatprep.mubr.bf16.mxu0 0
        %1506 = vmatmul.mubr.bf16.gmra.mxu0 %v1007
        %v1507 = vpop.f32.mrf.mxu0
        %v1508 = vadd.f32 %v925, %v1507
        %v1509 = vpop.f32.mrf.mxu0
        %v1510 = vadd.f32 %v929, %v1509
        %v1511 = vpop.f32.mrf.mxu0
        %v1512 = vadd.f32 %v925, %v1511
        %v1513 = vpop.f32.mrf.mxu0
        %v1514 = vadd.f32 %v929, %v1513
        %1515 = vmatprep.mubr.bf16.mxu0 0
        %1516 = vmatmul.mubr.bf16.gmra.mxu0 %v1008
        %v1517 = vpop.f32.mrf.mxu0
        %v1518 = vadd.f32 %v925, %v1517
        %v1519 = vpop.f32.mrf.mxu0
        %v1520 = vadd.f32 %v929, %v1519
        %v1521 = vpop.f32.mrf.mxu0
        %v1522 = vadd.f32 %v925, %v1521
        %v1523 = vpop.f32.mrf.mxu0
        %v1524 = vadd.f32 %v929, %v1523
        %1525 = vmatprep.mubr.bf16.mxu0 0
        %1526 = vmatmul.mubr.bf16.gmra.mxu0 %v1009
        %v1527 = vpop.f32.mrf.mxu0
        %v1528 = vadd.f32 %v925, %v1527
        %v1529 = vpop.f32.mrf.mxu0
        %v1530 = vadd.f32 %v929, %v1529
        %v1531 = vpop.f32.mrf.mxu0
        %v1532 = vadd.f32 %v925, %v1531
        %v1533 = vpop.f32.mrf.mxu0
        %v1534 = vadd.f32 %v929, %v1533
        %1535 = vmatprep.mubr.bf16.mxu0 0
        %1536 = vmatmul.mubr.bf16.gmra.mxu0 %v1010
        %v1537 = vpop.f32.mrf.mxu0
        %v1538 = vadd.f32 %v925, %v1537
        %v1539 = vpop.f32.mrf.mxu0
        %v1540 = vadd.f32 %v929, %v1539
        %v1541 = vpop.f32.mrf.mxu0
        %v1542 = vadd.f32 %v925, %v1541
        %v1543 = vpop.f32.mrf.mxu0
        %v1544 = vadd.f32 %v929, %v1543
        %1545 = vmatprep.mubr.bf16.mxu0 0
        %1546 = vmatmul.mubr.bf16.gmra.mxu0 %v1011
        %v1547 = vpop.f32.mrf.mxu0
        %v1548 = vadd.f32 %v925, %v1547
        %v1549 = vpop.f32.mrf.mxu0
        %v1550 = vadd.f32 %v929, %v1549
        %v1551 = vpop.f32.mrf.mxu0
        %v1552 = vadd.f32 %v925, %v1551
        %v1553 = vpop.f32.mrf.mxu0
        %v1554 = vadd.f32 %v929, %v1553
        %1555 = vmatprep.mubr.bf16.mxu0 0
        %1556 = vmatmul.mubr.bf16.gmra.mxu0 %v1012
        %v1557 = vpop.f32.mrf.mxu0
        %v1558 = vadd.f32 %v925, %v1557
        %v1559 = vpop.f32.mrf.mxu0
        %v1560 = vadd.f32 %v929, %v1559
        %v1561 = vpop.f32.mrf.mxu0
        %v1562 = vadd.f32 %v925, %v1561
        %v1563 = vpop.f32.mrf.mxu0
        %v1564 = vadd.f32 %v929, %v1563
        %1565 = vmatprep.mubr.bf16.mxu0 0
        %1566 = vmatmul.mubr.bf16.gmra.mxu0 %v1013
        %v1567 = vpop.f32.mrf.mxu0
        %v1568 = vadd.f32 %v925, %v1567
        %v1569 = vpop.f32.mrf.mxu0
        %v1570 = vadd.f32 %v929, %v1569
        %v1571 = vpop.f32.mrf.mxu0
        %v1572 = vadd.f32 %v925, %v1571
        %v1573 = vpop.f32.mrf.mxu0
        %v1574 = vadd.f32 %v929, %v1573
        %1575 = vdwg.mxu0
        %v1576 = vpack.c.bf16 %v1229, %v1225
        %v1577 = vpack.c.bf16 %v1231, %v1227
        %v1578 = vpack.c.bf16 %v1422, %v1418
        %v1579 = vpack.c.bf16 %v1424, %v1420
        %v1580 = vpack.c.bf16 %v1239, %v1235
        %v1581 = vpack.c.bf16 %v1241, %v1237
        %v1582 = vpack.c.bf16 %v1432, %v1428
        %v1583 = vpack.c.bf16 %v1434, %v1430
        %v1584 = vpack.c.bf16 %v1249, %v1245
        %v1585 = vpack.c.bf16 %v1251, %v1247
        %v1586 = vpack.c.bf16 %v1442, %v1438
        %v1587 = vpack.c.bf16 %v1444, %v1440
        %v1588 = vpack.c.bf16 %v1259, %v1255
        %v1589 = vpack.c.bf16 %v1261, %v1257
        %v1590 = vpack.c.bf16 %v1452, %v1448
        %v1591 = vpack.c.bf16 %v1454, %v1450
        %v1592 = vpack.c.bf16 %v1269, %v1265
        %v1593 = vpack.c.bf16 %v1271, %v1267
        %v1594 = vpack.c.bf16 %v1462, %v1458
        %v1595 = vpack.c.bf16 %v1464, %v1460
        %v1596 = vpack.c.bf16 %v1279, %v1275
        %v1597 = vpack.c.bf16 %v1281, %v1277
        %v1598 = vpack.c.bf16 %v1472, %v1468
        %v1599 = vpack.c.bf16 %v1474, %v1470
        %v1600 = vpack.c.bf16 %v1289, %v1285
        %v1601 = vpack.c.bf16 %v1291, %v1287
        %v1602 = vpack.c.bf16 %v1482, %v1478
        %v1603 = vpack.c.bf16 %v1484, %v1480
        %v1604 = vpack.c.bf16 %v1299, %v1295
        %v1605 = vpack.c.bf16 %v1301, %v1297
        %v1606 = vpack.c.bf16 %v1492, %v1488
        %v1607 = vpack.c.bf16 %v1494, %v1490
        %v1608 = vpack.c.bf16 %v1309, %v1305
        %v1609 = vpack.c.bf16 %v1311, %v1307
        %v1610 = vpack.c.bf16 %v1502, %v1498
        %v1611 = vpack.c.bf16 %v1504, %v1500
        %v1612 = vpack.c.bf16 %v1319, %v1315
        %v1613 = vpack.c.bf16 %v1321, %v1317
        %v1614 = vpack.c.bf16 %v1512, %v1508
        %v1615 = vpack.c.bf16 %v1514, %v1510
        %v1616 = vpack.c.bf16 %v1329, %v1325
        %v1617 = vpack.c.bf16 %v1331, %v1327
        %v1618 = vpack.c.bf16 %v1522, %v1518
        %v1619 = vpack.c.bf16 %v1524, %v1520
        %v1620 = vpack.c.bf16 %v1339, %v1335
        %v1621 = vpack.c.bf16 %v1341, %v1337
        %v1622 = vpack.c.bf16 %v1532, %v1528
        %v1623 = vpack.c.bf16 %v1534, %v1530
        %v1624 = vpack.c.bf16 %v1349, %v1345
        %v1625 = vpack.c.bf16 %v1351, %v1347
        %v1626 = vpack.c.bf16 %v1542, %v1538
        %v1627 = vpack.c.bf16 %v1544, %v1540
        %v1628 = vpack.c.bf16 %v1359, %v1355
        %v1629 = vpack.c.bf16 %v1361, %v1357
        %v1630 = vpack.c.bf16 %v1552, %v1548
        %v1631 = vpack.c.bf16 %v1554, %v1550
        %v1632 = vpack.c.bf16 %v1369, %v1365
        %v1633 = vpack.c.bf16 %v1371, %v1367
        %v1634 = vpack.c.bf16 %v1562, %v1558
        %v1635 = vpack.c.bf16 %v1564, %v1560
        %v1636 = vpack.c.bf16 %v1379, %v1375
        %v1637 = vpack.c.bf16 %v1381, %v1377
        %v1638 = vpack.c.bf16 %v1572, %v1568
        %v1639 = vpack.c.bf16 %v1574, %v1570
        %1640 = vmatprep.subr.bf16.mxu0 0
        %1641 = vmatpush1.bf16.xpose.msra.mxu0 0
        %1642 = vmatprep.subr.bf16.mxu0 0
        %1643 = vmatpush1.bf16.xpose.msra.mxu0 0
        %1644 = vmatprep.subr.bf16.mxu0 0
        %1645 = vmatpush1.bf16.xpose.msra.mxu0 0
        %1646 = vmatprep.subr.bf16.mxu0 0
        %1647 = vmatpush1.bf16.xpose.msra.mxu0 0
        %1648 = vmatprep.subr.bf16.mxu0 0
        %1649 = vmatpush1.bf16.xpose.msra.mxu0 0
        %1650 = vmatprep.subr.bf16.mxu0 0
        %1651 = vmatpush1.bf16.xpose.msra.mxu0 0
        %1652 = vmatprep.subr.bf16.mxu0 0
        %1653 = vmatpush1.bf16.xpose.msra.mxu0 %v1580
        %1654 = vmatprep.subr.bf16.mxu0 0
        %1655 = vmatpush1.bf16.xpose.msra.mxu0 %v1576
        %1656 = vmatprep.subr.bf16.mxu0 0
        %1657 = vmatpush2.bf16.xpose.msra.mxu0 0
        %1658 = vmatprep.subr.bf16.mxu0 0
        %1659 = vmatpush2.bf16.xpose.msra.mxu0 0
        %1660 = vmatprep.subr.bf16.mxu0 0
        %1661 = vmatpush2.bf16.xpose.msra.mxu0 0
        %1662 = vmatprep.subr.bf16.mxu0 0
        %1663 = vmatpush2.bf16.xpose.msra.mxu0 0
        %1664 = vmatprep.subr.bf16.mxu0 0
        %1665 = vmatpush2.bf16.xpose.msra.mxu0 0
        %1666 = vmatprep.subr.bf16.mxu0 0
        %1667 = vmatpush2.bf16.xpose.msra.mxu0 0
        %1668 = vmatprep.subr.bf16.mxu0 0
        %1669 = vmatpush2.bf16.xpose.msra.mxu0 0
        %1670 = vmatprep.subr.bf16.mxu0 0
        %1671 = vmatpush2.bf16.xpose.msra.mxu0 0
        %1672 = vmatprep.mubr.bf16.mxu0 0
        %1673 = vmatmul.mubr.bf16.gmra.mxu0 %v864
        %v1674 = vpop.f32.mrf.mxu0
        %v1675 = vadd.f32 0.0, %v1674
        %v1676 = vpop.f32.mrf.mxu0
        %v1677 = vpop.f32.mrf.mxu0
        %v1678 = vadd.f32 0.0, %v1677
        %v1679 = vpop.f32.mrf.mxu0
        %1680 = vdwg.mxu0
        %1681 = vmatprep.subr.bf16.mxu0 0
        %1682 = vmatpush1.bf16.xpose.msra.mxu0 0
        %1683 = vmatprep.subr.bf16.mxu0 0
        %1684 = vmatpush1.bf16.xpose.msra.mxu0 0
        %1685 = vmatprep.subr.bf16.mxu0 0
        %1686 = vmatpush1.bf16.xpose.msra.mxu0 0
        %1687 = vmatprep.subr.bf16.mxu0 0
        %1688 = vmatpush1.bf16.xpose.msra.mxu0 0
        %1689 = vmatprep.subr.bf16.mxu0 0
        %1690 = vmatpush1.bf16.xpose.msra.mxu0 0
        %1691 = vmatprep.subr.bf16.mxu0 0
        %1692 = vmatpush1.bf16.xpose.msra.mxu0 0
        %1693 = vmatprep.subr.bf16.mxu0 0
        %1694 = vmatpush1.bf16.xpose.msra.mxu0 %v1588
        %1695 = vmatprep.subr.bf16.mxu0 0
        %1696 = vmatpush1.bf16.xpose.msra.mxu0 %v1584
        %1697 = vmatprep.subr.bf16.mxu0 0
        %1698 = vmatpush2.bf16.xpose.msra.mxu0 0
        %1699 = vmatprep.subr.bf16.mxu0 0
        %1700 = vmatpush2.bf16.xpose.msra.mxu0 0
        %1701 = vmatprep.subr.bf16.mxu0 0
        %1702 = vmatpush2.bf16.xpose.msra.mxu0 0
        %1703 = vmatprep.subr.bf16.mxu0 0
        %1704 = vmatpush2.bf16.xpose.msra.mxu0 0
        %1705 = vmatprep.subr.bf16.mxu0 0
        %1706 = vmatpush2.bf16.xpose.msra.mxu0 0
        %1707 = vmatprep.subr.bf16.mxu0 0
        %1708 = vmatpush2.bf16.xpose.msra.mxu0 0
        %1709 = vmatprep.subr.bf16.mxu0 0
        %1710 = vmatpush2.bf16.xpose.msra.mxu0 0
        %1711 = vmatprep.subr.bf16.mxu0 0
        %1712 = vmatpush2.bf16.xpose.msra.mxu0 0
        %1713 = vmatprep.mubr.bf16.mxu0 0
        %1714 = vmatmul.mubr.bf16.gmra.mxu0 %v866
        %v1715 = vpop.f32.mrf.mxu0
        %v1716 = vadd.f32 0.0, %v1715
        %v1717 = vpop.f32.mrf.mxu0
        %v1718 = vpop.f32.mrf.mxu0
        %v1719 = vadd.f32 0.0, %v1718
        %v1720 = vpop.f32.mrf.mxu0
        %1721 = vdwg.mxu0
        %1722 = vmatprep.subr.bf16.mxu0 0
        %1723 = vmatpush1.bf16.xpose.msra.mxu0 0
        %1724 = vmatprep.subr.bf16.mxu0 0
        %1725 = vmatpush1.bf16.xpose.msra.mxu0 0
        %1726 = vmatprep.subr.bf16.mxu0 0
        %1727 = vmatpush1.bf16.xpose.msra.mxu0 0
        %1728 = vmatprep.subr.bf16.mxu0 0
        %1729 = vmatpush1.bf16.xpose.msra.mxu0 0
        %1730 = vmatprep.subr.bf16.mxu0 0
        %1731 = vmatpush1.bf16.xpose.msra.mxu0 0
        %1732 = vmatprep.subr.bf16.mxu0 0
        %1733 = vmatpush1.bf16.xpose.msra.mxu0 0
        %1734 = vmatprep.subr.bf16.mxu0 0
        %1735 = vmatpush1.bf16.xpose.msra.mxu0 %v1596
        %1736 = vmatprep.subr.bf16.mxu0 0
        %1737 = vmatpush1.bf16.xpose.msra.mxu0 %v1592
        %1738 = vmatprep.subr.bf16.mxu0 0
        %1739 = vmatpush2.bf16.xpose.msra.mxu0 0
        %1740 = vmatprep.subr.bf16.mxu0 0
        %1741 = vmatpush2.bf16.xpose.msra.mxu0 0
        %1742 = vmatprep.subr.bf16.mxu0 0
        %1743 = vmatpush2.bf16.xpose.msra.mxu0 0
        %1744 = vmatprep.subr.bf16.mxu0 0
        %1745 = vmatpush2.bf16.xpose.msra.mxu0 0
        %1746 = vmatprep.subr.bf16.mxu0 0
        %1747 = vmatpush2.bf16.xpose.msra.mxu0 0
        %1748 = vmatprep.subr.bf16.mxu0 0
        %1749 = vmatpush2.bf16.xpose.msra.mxu0 0
        %1750 = vmatprep.subr.bf16.mxu0 0
        %1751 = vmatpush2.bf16.xpose.msra.mxu0 0
        %1752 = vmatprep.subr.bf16.mxu0 0
        %1753 = vmatpush2.bf16.xpose.msra.mxu0 0
        %1754 = vmatprep.mubr.bf16.mxu0 0
        %1755 = vmatmul.mubr.bf16.gmra.mxu0 %v868
        %v1756 = vpop.f32.mrf.mxu0
        %v1757 = vadd.f32 0.0, %v1756
        %v1758 = vpop.f32.mrf.mxu0
        %v1759 = vpop.f32.mrf.mxu0
        %v1760 = vadd.f32 0.0, %v1759
        %v1761 = vpop.f32.mrf.mxu0
        %1762 = vdwg.mxu0
        %1763 = vmatprep.subr.bf16.mxu0 0
        %1764 = vmatpush1.bf16.xpose.msra.mxu0 0
        %1765 = vmatprep.subr.bf16.mxu0 0
        %1766 = vmatpush1.bf16.xpose.msra.mxu0 0
        %1767 = vmatprep.subr.bf16.mxu0 0
        %1768 = vmatpush1.bf16.xpose.msra.mxu0 0
        %1769 = vmatprep.subr.bf16.mxu0 0
        %1770 = vmatpush1.bf16.xpose.msra.mxu0 0
        %1771 = vmatprep.subr.bf16.mxu0 0
        %1772 = vmatpush1.bf16.xpose.msra.mxu0 0
        %1773 = vmatprep.subr.bf16.mxu0 0
        %1774 = vmatpush1.bf16.xpose.msra.mxu0 0
        %1775 = vmatprep.subr.bf16.mxu0 0
        %1776 = vmatpush1.bf16.xpose.msra.mxu0 %v1604
        %1777 = vmatprep.subr.bf16.mxu0 0
        %1778 = vmatpush1.bf16.xpose.msra.mxu0 %v1600
        %1779 = vmatprep.subr.bf16.mxu0 0
        %1780 = vmatpush2.bf16.xpose.msra.mxu0 0
        %1781 = vmatprep.subr.bf16.mxu0 0
        %1782 = vmatpush2.bf16.xpose.msra.mxu0 0
        %1783 = vmatprep.subr.bf16.mxu0 0
        %1784 = vmatpush2.bf16.xpose.msra.mxu0 0
        %1785 = vmatprep.subr.bf16.mxu0 0
        %1786 = vmatpush2.bf16.xpose.msra.mxu0 0
        %1787 = vmatprep.subr.bf16.mxu0 0
        %1788 = vmatpush2.bf16.xpose.msra.mxu0 0
        %1789 = vmatprep.subr.bf16.mxu0 0
        %1790 = vmatpush2.bf16.xpose.msra.mxu0 0
        %1791 = vmatprep.subr.bf16.mxu0 0
        %1792 = vmatpush2.bf16.xpose.msra.mxu0 0
        %1793 = vmatprep.subr.bf16.mxu0 0
        %1794 = vmatpush2.bf16.xpose.msra.mxu0 0
        %1795 = vmatprep.mubr.bf16.mxu0 0
        %1796 = vmatmul.mubr.bf16.gmra.mxu0 %v870
        %v1797 = vpop.f32.mrf.mxu0
        %v1798 = vadd.f32 0.0, %v1797
        %v1799 = vpop.f32.mrf.mxu0
        %v1800 = vpop.f32.mrf.mxu0
        %v1801 = vadd.f32 0.0, %v1800
        %v1802 = vpop.f32.mrf.mxu0
        %1803 = vdwg.mxu0
        %1804 = vmatprep.subr.bf16.mxu0 0
        %1805 = vmatpush1.bf16.xpose.msra.mxu0 0
        %1806 = vmatprep.subr.bf16.mxu0 0
        %1807 = vmatpush1.bf16.xpose.msra.mxu0 0
        %1808 = vmatprep.subr.bf16.mxu0 0
        %1809 = vmatpush1.bf16.xpose.msra.mxu0 0
        %1810 = vmatprep.subr.bf16.mxu0 0
        %1811 = vmatpush1.bf16.xpose.msra.mxu0 0
        %1812 = vmatprep.subr.bf16.mxu0 0
        %1813 = vmatpush1.bf16.xpose.msra.mxu0 0
        %1814 = vmatprep.subr.bf16.mxu0 0
        %1815 = vmatpush1.bf16.xpose.msra.mxu0 0
        %1816 = vmatprep.subr.bf16.mxu0 0
        %1817 = vmatpush1.bf16.xpose.msra.mxu0 %v1612
        %1818 = vmatprep.subr.bf16.mxu0 0
        %1819 = vmatpush1.bf16.xpose.msra.mxu0 %v1608
        %1820 = vmatprep.subr.bf16.mxu0 0
        %1821 = vmatpush2.bf16.xpose.msra.mxu0 0
        %1822 = vmatprep.subr.bf16.mxu0 0
        %1823 = vmatpush2.bf16.xpose.msra.mxu0 0
        %1824 = vmatprep.subr.bf16.mxu0 0
        %1825 = vmatpush2.bf16.xpose.msra.mxu0 0
        %1826 = vmatprep.subr.bf16.mxu0 0
        %1827 = vmatpush2.bf16.xpose.msra.mxu0 0
        %1828 = vmatprep.subr.bf16.mxu0 0
        %1829 = vmatpush2.bf16.xpose.msra.mxu0 0
        %1830 = vmatprep.subr.bf16.mxu0 0
        %1831 = vmatpush2.bf16.xpose.msra.mxu0 0
        %1832 = vmatprep.subr.bf16.mxu0 0
        %1833 = vmatpush2.bf16.xpose.msra.mxu0 0
        %1834 = vmatprep.subr.bf16.mxu0 0
        %1835 = vmatpush2.bf16.xpose.msra.mxu0 0
        %1836 = vmatprep.mubr.bf16.mxu0 0
        %1837 = vmatmul.mubr.bf16.gmra.mxu0 %v872
        %v1838 = vpop.f32.mrf.mxu0
        %v1839 = vadd.f32 0.0, %v1838
        %v1840 = vpop.f32.mrf.mxu0
        %v1841 = vpop.f32.mrf.mxu0
        %v1842 = vadd.f32 0.0, %v1841
        %v1843 = vpop.f32.mrf.mxu0
        %1844 = vdwg.mxu0
        %1845 = vmatprep.subr.bf16.mxu0 0
        %1846 = vmatpush1.bf16.xpose.msra.mxu0 0
        %1847 = vmatprep.subr.bf16.mxu0 0
        %1848 = vmatpush1.bf16.xpose.msra.mxu0 0
        %1849 = vmatprep.subr.bf16.mxu0 0
        %1850 = vmatpush1.bf16.xpose.msra.mxu0 0
        %1851 = vmatprep.subr.bf16.mxu0 0
        %1852 = vmatpush1.bf16.xpose.msra.mxu0 0
        %1853 = vmatprep.subr.bf16.mxu0 0
        %1854 = vmatpush1.bf16.xpose.msra.mxu0 0
        %1855 = vmatprep.subr.bf16.mxu0 0
        %1856 = vmatpush1.bf16.xpose.msra.mxu0 0
        %1857 = vmatprep.subr.bf16.mxu0 0
        %1858 = vmatpush1.bf16.xpose.msra.mxu0 %v1620
        %1859 = vmatprep.subr.bf16.mxu0 0
        %1860 = vmatpush1.bf16.xpose.msra.mxu0 %v1616
        %1861 = vmatprep.subr.bf16.mxu0 0
        %1862 = vmatpush2.bf16.xpose.msra.mxu0 0
        %1863 = vmatprep.subr.bf16.mxu0 0
        %1864 = vmatpush2.bf16.xpose.msra.mxu0 0
        %1865 = vmatprep.subr.bf16.mxu0 0
        %1866 = vmatpush2.bf16.xpose.msra.mxu0 0
        %1867 = vmatprep.subr.bf16.mxu0 0
        %1868 = vmatpush2.bf16.xpose.msra.mxu0 0
        %1869 = vmatprep.subr.bf16.mxu0 0
        %1870 = vmatpush2.bf16.xpose.msra.mxu0 0
        %1871 = vmatprep.subr.bf16.mxu0 0
        %1872 = vmatpush2.bf16.xpose.msra.mxu0 0
        %1873 = vmatprep.subr.bf16.mxu0 0
        %1874 = vmatpush2.bf16.xpose.msra.mxu0 0
        %1875 = vmatprep.subr.bf16.mxu0 0
        %1876 = vmatpush2.bf16.xpose.msra.mxu0 0
        %1877 = vmatprep.mubr.bf16.mxu0 0
        %1878 = vmatmul.mubr.bf16.gmra.mxu0 %v874
        %v1879 = vpop.f32.mrf.mxu0
        %v1880 = vadd.f32 0.0, %v1879
        %v1881 = vpop.f32.mrf.mxu0
        %v1882 = vpop.f32.mrf.mxu0
        %v1883 = vadd.f32 0.0, %v1882
        %v1884 = vpop.f32.mrf.mxu0
        %1885 = vdwg.mxu0
        %1886 = vmatprep.subr.bf16.mxu0 0
        %1887 = vmatpush1.bf16.xpose.msra.mxu0 0
        %1888 = vmatprep.subr.bf16.mxu0 0
        %1889 = vmatpush1.bf16.xpose.msra.mxu0 0
        %1890 = vmatprep.subr.bf16.mxu0 0
        %1891 = vmatpush1.bf16.xpose.msra.mxu0 0
        %1892 = vmatprep.subr.bf16.mxu0 0
        %1893 = vmatpush1.bf16.xpose.msra.mxu0 0
        %1894 = vmatprep.subr.bf16.mxu0 0
        %1895 = vmatpush1.bf16.xpose.msra.mxu0 0
        %1896 = vmatprep.subr.bf16.mxu0 0
        %1897 = vmatpush1.bf16.xpose.msra.mxu0 0
        %1898 = vmatprep.subr.bf16.mxu0 0
        %1899 = vmatpush1.bf16.xpose.msra.mxu0 %v1628
        %1900 = vmatprep.subr.bf16.mxu0 0
        %1901 = vmatpush1.bf16.xpose.msra.mxu0 %v1624
        %1902 = vmatprep.subr.bf16.mxu0 0
        %1903 = vmatpush2.bf16.xpose.msra.mxu0 0
        %1904 = vmatprep.subr.bf16.mxu0 0
        %1905 = vmatpush2.bf16.xpose.msra.mxu0 0
        %1906 = vmatprep.subr.bf16.mxu0 0
        %1907 = vmatpush2.bf16.xpose.msra.mxu0 0
        %1908 = vmatprep.subr.bf16.mxu0 0
        %1909 = vmatpush2.bf16.xpose.msra.mxu0 0
        %1910 = vmatprep.subr.bf16.mxu0 0
        %1911 = vmatpush2.bf16.xpose.msra.mxu0 0
        %1912 = vmatprep.subr.bf16.mxu0 0
        %1913 = vmatpush2.bf16.xpose.msra.mxu0 0
        %1914 = vmatprep.subr.bf16.mxu0 0
        %1915 = vmatpush2.bf16.xpose.msra.mxu0 0
        %1916 = vmatprep.subr.bf16.mxu0 0
        %1917 = vmatpush2.bf16.xpose.msra.mxu0 0
        %1918 = vmatprep.mubr.bf16.mxu0 0
        %1919 = vmatmul.mubr.bf16.gmra.mxu0 %v876
        %v1920 = vpop.f32.mrf.mxu0
        %v1921 = vadd.f32 0.0, %v1920
        %v1922 = vpop.f32.mrf.mxu0
        %v1923 = vpop.f32.mrf.mxu0
        %v1924 = vadd.f32 0.0, %v1923
        %v1925 = vpop.f32.mrf.mxu0
        %1926 = vdwg.mxu0
        %1927 = vmatprep.subr.bf16.mxu0 0
        %1928 = vmatpush1.bf16.xpose.msra.mxu0 0
        %1929 = vmatprep.subr.bf16.mxu0 0
        %1930 = vmatpush1.bf16.xpose.msra.mxu0 0
        %1931 = vmatprep.subr.bf16.mxu0 0
        %1932 = vmatpush1.bf16.xpose.msra.mxu0 0
        %1933 = vmatprep.subr.bf16.mxu0 0
        %1934 = vmatpush1.bf16.xpose.msra.mxu0 0
        %1935 = vmatprep.subr.bf16.mxu0 0
        %1936 = vmatpush1.bf16.xpose.msra.mxu0 0
        %1937 = vmatprep.subr.bf16.mxu0 0
        %1938 = vmatpush1.bf16.xpose.msra.mxu0 0
        %1939 = vmatprep.subr.bf16.mxu0 0
        %1940 = vmatpush1.bf16.xpose.msra.mxu0 %v1636
        %1941 = vmatprep.subr.bf16.mxu0 0
        %1942 = vmatpush1.bf16.xpose.msra.mxu0 %v1632
        %1943 = vmatprep.subr.bf16.mxu0 0
        %1944 = vmatpush2.bf16.xpose.msra.mxu0 0
        %1945 = vmatprep.subr.bf16.mxu0 0
        %1946 = vmatpush2.bf16.xpose.msra.mxu0 0
        %1947 = vmatprep.subr.bf16.mxu0 0
        %1948 = vmatpush2.bf16.xpose.msra.mxu0 0
        %1949 = vmatprep.subr.bf16.mxu0 0
        %1950 = vmatpush2.bf16.xpose.msra.mxu0 0
        %1951 = vmatprep.subr.bf16.mxu0 0
        %1952 = vmatpush2.bf16.xpose.msra.mxu0 0
        %1953 = vmatprep.subr.bf16.mxu0 0
        %1954 = vmatpush2.bf16.xpose.msra.mxu0 0
        %1955 = vmatprep.subr.bf16.mxu0 0
        %1956 = vmatpush2.bf16.xpose.msra.mxu0 0
        %1957 = vmatprep.subr.bf16.mxu0 0
        %1958 = vmatpush2.bf16.xpose.msra.mxu0 0
        %1959 = vmatprep.mubr.bf16.mxu0 0
        %1960 = vmatmul.mubr.bf16.gmra.mxu0 %v878
        %v1961 = vpop.f32.mrf.mxu0
        %v1962 = vadd.f32 0.0, %v1961
        %v1963 = vpop.f32.mrf.mxu0
        %v1964 = vpop.f32.mrf.mxu0
        %v1965 = vadd.f32 0.0, %v1964
        %v1966 = vpop.f32.mrf.mxu0
        %1967 = vdwg.mxu0
        %vm1968 = vcmask 261120
        %v1969 = vsel %vm1968, %v1675, -inf
        %1970 = vmax.xlane.f32.xlu0 %v1969
        %v1971 = vpop.xlane.xlu0 %1970
        %v1972 = vsel %vm1968, %v1678, -inf
        %1973 = vmax.xlane.f32.xlu0 %v1972
        %v1974 = vpop.xlane.xlu0 %1973
        %v1975 = vsel %vm1968, %v1716, -inf
        %1976 = vmax.xlane.f32.xlu0 %v1975
        %v1977 = vpop.xlane.xlu0 %1976
        %v1978 = vsel %vm1968, %v1719, -inf
        %1979 = vmax.xlane.f32.xlu0 %v1978
        %v1980 = vpop.xlane.xlu0 %1979
        %v1981 = vsel %vm1968, %v1757, -inf
        %1982 = vmax.xlane.f32.xlu0 %v1981
        %v1983 = vpop.xlane.xlu0 %1982
        %v1984 = vsel %vm1968, %v1760, -inf
        %1985 = vmax.xlane.f32.xlu0 %v1984
        %v1986 = vpop.xlane.xlu0 %1985
        %v1987 = vsel %vm1968, %v1798, -inf
        %1988 = vmax.xlane.f32.xlu0 %v1987
        %v1989 = vpop.xlane.xlu0 %1988
        %v1990 = vsel %vm1968, %v1801, -inf
        %1991 = vmax.xlane.f32.xlu0 %v1990
        %v1992 = vpop.xlane.xlu0 %1991
        %v1993 = vsel %vm1968, %v1839, -inf
        %1994 = vmax.xlane.f32.xlu0 %v1993
        %v1995 = vpop.xlane.xlu0 %1994
        %v1996 = vsel %vm1968, %v1842, -inf
        %1997 = vmax.xlane.f32.xlu0 %v1996
        %v1998 = vpop.xlane.xlu0 %1997
        %v1999 = vsel %vm1968, %v1880, -inf
        %2000 = vmax.xlane.f32.xlu0 %v1999
        %v2001 = vpop.xlane.xlu0 %2000
        %v2002 = vsel %vm1968, %v1883, -inf
        %2003 = vmax.xlane.f32.xlu0 %v2002
        %v2004 = vpop.xlane.xlu0 %2003
        %v2005 = vsel %vm1968, %v1921, -inf
        %2006 = vmax.xlane.f32.xlu0 %v2005
        %v2007 = vpop.xlane.xlu0 %2006
        %v2008 = vsel %vm1968, %v1924, -inf
        %2009 = vmax.xlane.f32.xlu0 %v2008
        %v2010 = vpop.xlane.xlu0 %2009
        %v2011 = vsel %vm1968, %v1962, -inf
        %2012 = vmax.xlane.f32.xlu0 %v2011
        %v2013 = vpop.xlane.xlu0 %2012
        %v2014 = vsel %vm1968, %v1965, -inf
        %2015 = vmax.xlane.f32.xlu0 %v2014
        %v2016 = vpop.xlane.xlu0 %2015
        %v2017 = vsub.f32 %v1675, %v1971
        %v2018 = vsub.f32 %v1678, %v1974
        %v2019 = vsub.f32 %v1716, %v1977
        %v2020 = vsub.f32 %v1719, %v1980
        %v2021 = vsub.f32 %v1757, %v1983
        %v2022 = vsub.f32 %v1760, %v1986
        %v2023 = vsub.f32 %v1798, %v1989
        %v2024 = vsub.f32 %v1801, %v1992
        %v2025 = vsub.f32 %v1839, %v1995
        %v2026 = vsub.f32 %v1842, %v1998
        %v2027 = vsub.f32 %v1880, %v2001
        %v2028 = vsub.f32 %v1883, %v2004
        %v2029 = vsub.f32 %v1921, %v2007
        %v2030 = vsub.f32 %v1924, %v2010
        %v2031 = vsub.f32 %v1962, %v2013
        %v2032 = vsub.f32 %v1965, %v2016
        %v2033 = vmul.f32 %v2017, 1.442695
        %v2034 = vpow.pop %v2033
        %v2035 = vmul.f32 %v2018, 1.442695
        %v2036 = vpow.pop %v2035
        %v2037 = vmul.f32 %v2019, 1.442695
        %v2038 = vpow.pop %v2037
        %v2039 = vmul.f32 %v2020, 1.442695
        %v2040 = vpow.pop %v2039
        %v2041 = vmul.f32 %v2021, 1.442695
        %v2042 = vpow.pop %v2041
        %v2043 = vmul.f32 %v2022, 1.442695
        %v2044 = vpow.pop %v2043
        %v2045 = vmul.f32 %v2023, 1.442695
        %v2046 = vpow.pop %v2045
        %v2047 = vmul.f32 %v2024, 1.442695
        %v2048 = vpow.pop %v2047
        %v2049 = vmul.f32 %v2025, 1.442695
        %v2050 = vpow.pop %v2049
        %v2051 = vmul.f32 %v2026, 1.442695
        %v2052 = vpow.pop %v2051
        %v2053 = vmul.f32 %v2027, 1.442695
        %v2054 = vpow.pop %v2053
        %v2055 = vmul.f32 %v2028, 1.442695
        %v2056 = vpow.pop %v2055
        %v2057 = vmul.f32 %v2029, 1.442695
        %v2058 = vpow.pop %v2057
        %v2059 = vmul.f32 %v2030, 1.442695
        %v2060 = vpow.pop %v2059
        %v2061 = vmul.f32 %v2031, 1.442695
        %v2062 = vpow.pop %v2061
        %v2063 = vmul.f32 %v2032, 1.442695
        %v2064 = vpow.pop %v2063
        %v2065 = vsel %vm1968, %v2034, 0.0
        %2066 = vadd.xlane.f32.xlu0 %v2065
        %v2067 = vpop.xlane.xlu0 %2066
        %v2068 = vsel %vm1968, %v2036, 0.0
        %2069 = vadd.xlane.f32.xlu0 %v2068
        %v2070 = vpop.xlane.xlu0 %2069
        %v2071 = vsel %vm1968, %v2038, 0.0
        %2072 = vadd.xlane.f32.xlu0 %v2071
        %v2073 = vpop.xlane.xlu0 %2072
        %v2074 = vsel %vm1968, %v2040, 0.0
        %2075 = vadd.xlane.f32.xlu0 %v2074
        %v2076 = vpop.xlane.xlu0 %2075
        %v2077 = vsel %vm1968, %v2042, 0.0
        %2078 = vadd.xlane.f32.xlu0 %v2077
        %v2079 = vpop.xlane.xlu0 %2078
        %v2080 = vsel %vm1968, %v2044, 0.0
        %2081 = vadd.xlane.f32.xlu0 %v2080
        %v2082 = vpop.xlane.xlu0 %2081
        %v2083 = vsel %vm1968, %v2046, 0.0
        %2084 = vadd.xlane.f32.xlu0 %v2083
        %v2085 = vpop.xlane.xlu0 %2084
        %v2086 = vsel %vm1968, %v2048, 0.0
        %2087 = vadd.xlane.f32.xlu0 %v2086
        %v2088 = vpop.xlane.xlu0 %2087
        %v2089 = vsel %vm1968, %v2050, 0.0
        %2090 = vadd.xlane.f32.xlu0 %v2089
        %v2091 = vpop.xlane.xlu0 %2090
        %v2092 = vsel %vm1968, %v2052, 0.0
        %2093 = vadd.xlane.f32.xlu0 %v2092
        %v2094 = vpop.xlane.xlu0 %2093
        %v2095 = vsel %vm1968, %v2054, 0.0
        %2096 = vadd.xlane.f32.xlu0 %v2095
        %v2097 = vpop.xlane.xlu0 %2096
        %v2098 = vsel %vm1968, %v2056, 0.0
        %2099 = vadd.xlane.f32.xlu0 %v2098
        %v2100 = vpop.xlane.xlu0 %2099
        %v2101 = vsel %vm1968, %v2058, 0.0
        %2102 = vadd.xlane.f32.xlu0 %v2101
        %v2103 = vpop.xlane.xlu0 %2102
        %v2104 = vsel %vm1968, %v2060, 0.0
        %2105 = vadd.xlane.f32.xlu0 %v2104
        %v2106 = vpop.xlane.xlu0 %2105
        %v2107 = vsel %vm1968, %v2062, 0.0
        %2108 = vadd.xlane.f32.xlu0 %v2107
        %v2109 = vpop.xlane.xlu0 %2108
        %v2110 = vsel %vm1968, %v2064, 0.0
        %2111 = vadd.xlane.f32.xlu0 %v2110
        %v2112 = vpop.xlane.xlu0 %2111
        %v2113 = vrcp.pop %v2067
        %v2114 = vrcp.pop %v2070
        %v2115 = vrcp.pop %v2073
        %v2116 = vrcp.pop %v2076
        %v2117 = vrcp.pop %v2079
        %v2118 = vrcp.pop %v2082
        %v2119 = vrcp.pop %v2085
        %v2120 = vrcp.pop %v2088
        %v2121 = vrcp.pop %v2091
        %v2122 = vrcp.pop %v2094
        %v2123 = vrcp.pop %v2097
        %v2124 = vrcp.pop %v2100
        %v2125 = vrcp.pop %v2103
        %v2126 = vrcp.pop %v2106
        %v2127 = vrcp.pop %v2109
        %v2128 = vrcp.pop %v2112
        %v2129 = vmul.f32 %v2034, %v2113
        %v2130 = vmul.f32 %v2036, %v2114
        %v2131 = vmul.f32 %v2038, %v2115
        %v2132 = vmul.f32 %v2040, %v2116
        %v2133 = vmul.f32 %v2042, %v2117
        %v2134 = vmul.f32 %v2044, %v2118
        %v2135 = vmul.f32 %v2046, %v2119
        %v2136 = vmul.f32 %v2048, %v2120
        %v2137 = vmul.f32 %v2050, %v2121
        %v2138 = vmul.f32 %v2052, %v2122
        %v2139 = vmul.f32 %v2054, %v2123
        %v2140 = vmul.f32 %v2056, %v2124
        %v2141 = vmul.f32 %v2058, %v2125
        %v2142 = vmul.f32 %v2060, %v2126
        %v2143 = vmul.f32 %v2062, %v2127
        %v2144 = vmul.f32 %v2064, %v2128
        %v2145 = vpack.c.bf16 %v2130, %v2129
        %v2146 = vpack.c.bf16 %v2132, %v2131
        %v2147 = vpack.c.bf16 %v2134, %v2133
        %v2148 = vpack.c.bf16 %v2136, %v2135
        %v2149 = vpack.c.bf16 %v2138, %v2137
        %v2150 = vpack.c.bf16 %v2140, %v2139
        %v2151 = vpack.c.bf16 %v2142, %v2141
        %v2152 = vpack.c.bf16 %v2144, %v2143
        %v2154 = vsel %vm1968, %v2145, 0
        %2156 = vmatprep.subr.bf16.mxu0 0
        %2157 = vmatpush1.bf16.msra.mxu0 0
        %2158 = vmatprep.subr.bf16.mxu0 0
        %2159 = vmatpush1.bf16.msra.mxu0 0
        %2160 = vmatprep.subr.bf16.mxu0 0
        %2161 = vmatpush1.bf16.msra.mxu0 0
        %2162 = vmatprep.subr.bf16.mxu0 0
        %2163 = vmatpush1.bf16.msra.mxu0 0
        %2164 = vmatprep.subr.bf16.mxu0 0
        %2165 = vmatpush1.bf16.msra.mxu0 0
        %2166 = vmatprep.subr.bf16.mxu0 0
        %2167 = vmatpush1.bf16.msra.mxu0 0
        %2168 = vmatprep.subr.bf16.mxu0 0
        %2169 = vmatpush1.bf16.msra.mxu0 %v1582
        %2170 = vmatprep.subr.bf16.mxu0 0
        %2171 = vmatpush1.bf16.msra.mxu0 %v1578
        %2172 = vmatprep.subr.bf16.mxu0 0
        %2173 = vmatpush2.bf16.msra.mxu0 0
        %2174 = vmatprep.subr.bf16.mxu0 0
        %2175 = vmatpush2.bf16.msra.mxu0 0
        %2176 = vmatprep.subr.bf16.mxu0 0
        %2177 = vmatpush2.bf16.msra.mxu0 0
        %2178 = vmatprep.subr.bf16.mxu0 0
        %2179 = vmatpush2.bf16.msra.mxu0 0
        %2180 = vmatprep.subr.bf16.mxu0 0
        %2181 = vmatpush2.bf16.msra.mxu0 0
        %2182 = vmatprep.subr.bf16.mxu0 0
        %2183 = vmatpush2.bf16.msra.mxu0 0
        %2184 = vmatprep.subr.bf16.mxu0 0
        %2185 = vmatpush2.bf16.msra.mxu0 0
        %2186 = vmatprep.subr.bf16.mxu0 0
        %2187 = vmatpush2.bf16.msra.mxu0 0
        %2188 = vmatprep.mubr.bf16.mxu0 0
        %2189 = vmatmul.mubr.bf16.gmra.mxu0 %v2154
        %v2190 = vpop.f32.mrf.mxu0
        %v2191 = vadd.f32 0.0, %v2190
        %v2192 = vpop.f32.mrf.mxu0
        %v2193 = vpop.f32.mrf.mxu0
        %v2194 = vadd.f32 0.0, %v2193
        %v2195 = vpop.f32.mrf.mxu0
        %2196 = vdwg.mxu0
        %v2198 = vsel %vm1968, %v2146, 0
        %2200 = vmatprep.subr.bf16.mxu0 0
        %2201 = vmatpush1.bf16.msra.mxu0 0
        %2202 = vmatprep.subr.bf16.mxu0 0
        %2203 = vmatpush1.bf16.msra.mxu0 0
        %2204 = vmatprep.subr.bf16.mxu0 0
        %2205 = vmatpush1.bf16.msra.mxu0 0
        %2206 = vmatprep.subr.bf16.mxu0 0
        %2207 = vmatpush1.bf16.msra.mxu0 0
        %2208 = vmatprep.subr.bf16.mxu0 0
        %2209 = vmatpush1.bf16.msra.mxu0 0
        %2210 = vmatprep.subr.bf16.mxu0 0
        %2211 = vmatpush1.bf16.msra.mxu0 0
        %2212 = vmatprep.subr.bf16.mxu0 0
        %2213 = vmatpush1.bf16.msra.mxu0 %v1590
        %2214 = vmatprep.subr.bf16.mxu0 0
        %2215 = vmatpush1.bf16.msra.mxu0 %v1586
        %2216 = vmatprep.subr.bf16.mxu0 0
        %2217 = vmatpush2.bf16.msra.mxu0 0
        %2218 = vmatprep.subr.bf16.mxu0 0
        %2219 = vmatpush2.bf16.msra.mxu0 0
        %2220 = vmatprep.subr.bf16.mxu0 0
        %2221 = vmatpush2.bf16.msra.mxu0 0
        %2222 = vmatprep.subr.bf16.mxu0 0
        %2223 = vmatpush2.bf16.msra.mxu0 0
        %2224 = vmatprep.subr.bf16.mxu0 0
        %2225 = vmatpush2.bf16.msra.mxu0 0
        %2226 = vmatprep.subr.bf16.mxu0 0
        %2227 = vmatpush2.bf16.msra.mxu0 0
        %2228 = vmatprep.subr.bf16.mxu0 0
        %2229 = vmatpush2.bf16.msra.mxu0 0
        %2230 = vmatprep.subr.bf16.mxu0 0
        %2231 = vmatpush2.bf16.msra.mxu0 0
        %2232 = vmatprep.mubr.bf16.mxu0 0
        %2233 = vmatmul.mubr.bf16.gmra.mxu0 %v2198
        %v2234 = vpop.f32.mrf.mxu0
        %v2235 = vadd.f32 0.0, %v2234
        %v2236 = vpop.f32.mrf.mxu0
        %v2237 = vpop.f32.mrf.mxu0
        %v2238 = vadd.f32 0.0, %v2237
        %v2239 = vpop.f32.mrf.mxu0
        %2240 = vdwg.mxu0
        %v2242 = vsel %vm1968, %v2147, 0
        %2244 = vmatprep.subr.bf16.mxu0 0
        %2245 = vmatpush1.bf16.msra.mxu0 0
        %2246 = vmatprep.subr.bf16.mxu0 0
        %2247 = vmatpush1.bf16.msra.mxu0 0
        %2248 = vmatprep.subr.bf16.mxu0 0
        %2249 = vmatpush1.bf16.msra.mxu0 0
        %2250 = vmatprep.subr.bf16.mxu0 0
        %2251 = vmatpush1.bf16.msra.mxu0 0
        %2252 = vmatprep.subr.bf16.mxu0 0
        %2253 = vmatpush1.bf16.msra.mxu0 0
        %2254 = vmatprep.subr.bf16.mxu0 0
        %2255 = vmatpush1.bf16.msra.mxu0 0
        %2256 = vmatprep.subr.bf16.mxu0 0
        %2257 = vmatpush1.bf16.msra.mxu0 %v1598
        %2258 = vmatprep.subr.bf16.mxu0 0
        %2259 = vmatpush1.bf16.msra.mxu0 %v1594
        %2260 = vmatprep.subr.bf16.mxu0 0
        %2261 = vmatpush2.bf16.msra.mxu0 0
        %2262 = vmatprep.subr.bf16.mxu0 0
        %2263 = vmatpush2.bf16.msra.mxu0 0
        %2264 = vmatprep.subr.bf16.mxu0 0
        %2265 = vmatpush2.bf16.msra.mxu0 0
        %2266 = vmatprep.subr.bf16.mxu0 0
        %2267 = vmatpush2.bf16.msra.mxu0 0
        %2268 = vmatprep.subr.bf16.mxu0 0
        %2269 = vmatpush2.bf16.msra.mxu0 0
        %2270 = vmatprep.subr.bf16.mxu0 0
        %2271 = vmatpush2.bf16.msra.mxu0 0
        %2272 = vmatprep.subr.bf16.mxu0 0
        %2273 = vmatpush2.bf16.msra.mxu0 0
        %2274 = vmatprep.subr.bf16.mxu0 0
        %2275 = vmatpush2.bf16.msra.mxu0 0
        %2276 = vmatprep.mubr.bf16.mxu0 0
        %2277 = vmatmul.mubr.bf16.gmra.mxu0 %v2242
        %v2278 = vpop.f32.mrf.mxu0
        %v2279 = vadd.f32 0.0, %v2278
        %v2280 = vpop.f32.mrf.mxu0
        %v2281 = vpop.f32.mrf.mxu0
        %v2282 = vadd.f32 0.0, %v2281
        %v2283 = vpop.f32.mrf.mxu0
        %2284 = vdwg.mxu0
        %v2286 = vsel %vm1968, %v2148, 0
        %2288 = vmatprep.subr.bf16.mxu0 0
        %2289 = vmatpush1.bf16.msra.mxu0 0
        %2290 = vmatprep.subr.bf16.mxu0 0
        %2291 = vmatpush1.bf16.msra.mxu0 0
        %2292 = vmatprep.subr.bf16.mxu0 0
        %2293 = vmatpush1.bf16.msra.mxu0 0
        %2294 = vmatprep.subr.bf16.mxu0 0
        %2295 = vmatpush1.bf16.msra.mxu0 0
        %2296 = vmatprep.subr.bf16.mxu0 0
        %2297 = vmatpush1.bf16.msra.mxu0 0
        %2298 = vmatprep.subr.bf16.mxu0 0
        %2299 = vmatpush1.bf16.msra.mxu0 0
        %2300 = vmatprep.subr.bf16.mxu0 0
        %2301 = vmatpush1.bf16.msra.mxu0 %v1606
        %2302 = vmatprep.subr.bf16.mxu0 0
        %2303 = vmatpush1.bf16.msra.mxu0 %v1602
        %2304 = vmatprep.subr.bf16.mxu0 0
        %2305 = vmatpush2.bf16.msra.mxu0 0
        %2306 = vmatprep.subr.bf16.mxu0 0
        %2307 = vmatpush2.bf16.msra.mxu0 0
        %2308 = vmatprep.subr.bf16.mxu0 0
        %2309 = vmatpush2.bf16.msra.mxu0 0
        %2310 = vmatprep.subr.bf16.mxu0 0
        %2311 = vmatpush2.bf16.msra.mxu0 0
        %2312 = vmatprep.subr.bf16.mxu0 0
        %2313 = vmatpush2.bf16.msra.mxu0 0
        %2314 = vmatprep.subr.bf16.mxu0 0
        %2315 = vmatpush2.bf16.msra.mxu0 0
        %2316 = vmatprep.subr.bf16.mxu0 0
        %2317 = vmatpush2.bf16.msra.mxu0 0
        %2318 = vmatprep.subr.bf16.mxu0 0
        %2319 = vmatpush2.bf16.msra.mxu0 0
        %2320 = vmatprep.mubr.bf16.mxu0 0
        %2321 = vmatmul.mubr.bf16.gmra.mxu0 %v2286
        %v2322 = vpop.f32.mrf.mxu0
        %v2323 = vadd.f32 0.0, %v2322
        %v2324 = vpop.f32.mrf.mxu0
        %v2325 = vpop.f32.mrf.mxu0
        %v2326 = vadd.f32 0.0, %v2325
        %v2327 = vpop.f32.mrf.mxu0
        %2328 = vdwg.mxu0
        %v2330 = vsel %vm1968, %v2149, 0
        %2332 = vmatprep.subr.bf16.mxu0 0
        %2333 = vmatpush1.bf16.msra.mxu0 0
        %2334 = vmatprep.subr.bf16.mxu0 0
        %2335 = vmatpush1.bf16.msra.mxu0 0
        %2336 = vmatprep.subr.bf16.mxu0 0
        %2337 = vmatpush1.bf16.msra.mxu0 0
        %2338 = vmatprep.subr.bf16.mxu0 0
        %2339 = vmatpush1.bf16.msra.mxu0 0
        %2340 = vmatprep.subr.bf16.mxu0 0
        %2341 = vmatpush1.bf16.msra.mxu0 0
        %2342 = vmatprep.subr.bf16.mxu0 0
        %2343 = vmatpush1.bf16.msra.mxu0 0
        %2344 = vmatprep.subr.bf16.mxu0 0
        %2345 = vmatpush1.bf16.msra.mxu0 %v1614
        %2346 = vmatprep.subr.bf16.mxu0 0
        %2347 = vmatpush1.bf16.msra.mxu0 %v1610
        %2348 = vmatprep.subr.bf16.mxu0 0
        %2349 = vmatpush2.bf16.msra.mxu0 0
        %2350 = vmatprep.subr.bf16.mxu0 0
        %2351 = vmatpush2.bf16.msra.mxu0 0
        %2352 = vmatprep.subr.bf16.mxu0 0
        %2353 = vmatpush2.bf16.msra.mxu0 0
        %2354 = vmatprep.subr.bf16.mxu0 0
        %2355 = vmatpush2.bf16.msra.mxu0 0
        %2356 = vmatprep.subr.bf16.mxu0 0
        %2357 = vmatpush2.bf16.msra.mxu0 0
        %2358 = vmatprep.subr.bf16.mxu0 0
        %2359 = vmatpush2.bf16.msra.mxu0 0
        %2360 = vmatprep.subr.bf16.mxu0 0
        %2361 = vmatpush2.bf16.msra.mxu0 0
        %2362 = vmatprep.subr.bf16.mxu0 0
        %2363 = vmatpush2.bf16.msra.mxu0 0
        %2364 = vmatprep.mubr.bf16.mxu0 0
        %2365 = vmatmul.mubr.bf16.gmra.mxu0 %v2330
        %v2366 = vpop.f32.mrf.mxu0
        %v2367 = vadd.f32 0.0, %v2366
        %v2368 = vpop.f32.mrf.mxu0
        %v2369 = vpop.f32.mrf.mxu0
        %v2370 = vadd.f32 0.0, %v2369
        %v2371 = vpop.f32.mrf.mxu0
        %2372 = vdwg.mxu0
        %v2374 = vsel %vm1968, %v2150, 0
        %2376 = vmatprep.subr.bf16.mxu0 0
        %2377 = vmatpush1.bf16.msra.mxu0 0
        %2378 = vmatprep.subr.bf16.mxu0 0
        %2379 = vmatpush1.bf16.msra.mxu0 0
        %2380 = vmatprep.subr.bf16.mxu0 0
        %2381 = vmatpush1.bf16.msra.mxu0 0
        %2382 = vmatprep.subr.bf16.mxu0 0
        %2383 = vmatpush1.bf16.msra.mxu0 0
        %2384 = vmatprep.subr.bf16.mxu0 0
        %2385 = vmatpush1.bf16.msra.mxu0 0
        %2386 = vmatprep.subr.bf16.mxu0 0
        %2387 = vmatpush1.bf16.msra.mxu0 0
        %2388 = vmatprep.subr.bf16.mxu0 0
        %2389 = vmatpush1.bf16.msra.mxu0 %v1622
        %2390 = vmatprep.subr.bf16.mxu0 0
        %2391 = vmatpush1.bf16.msra.mxu0 %v1618
        %2392 = vmatprep.subr.bf16.mxu0 0
        %2393 = vmatpush2.bf16.msra.mxu0 0
        %2394 = vmatprep.subr.bf16.mxu0 0
        %2395 = vmatpush2.bf16.msra.mxu0 0
        %2396 = vmatprep.subr.bf16.mxu0 0
        %2397 = vmatpush2.bf16.msra.mxu0 0
        %2398 = vmatprep.subr.bf16.mxu0 0
        %2399 = vmatpush2.bf16.msra.mxu0 0
        %2400 = vmatprep.subr.bf16.mxu0 0
        %2401 = vmatpush2.bf16.msra.mxu0 0
        %2402 = vmatprep.subr.bf16.mxu0 0
        %2403 = vmatpush2.bf16.msra.mxu0 0
        %2404 = vmatprep.subr.bf16.mxu0 0
        %2405 = vmatpush2.bf16.msra.mxu0 0
        %2406 = vmatprep.subr.bf16.mxu0 0
        %2407 = vmatpush2.bf16.msra.mxu0 0
        %2408 = vmatprep.mubr.bf16.mxu0 0
        %2409 = vmatmul.mubr.bf16.gmra.mxu0 %v2374
        %v2410 = vpop.f32.mrf.mxu0
        %v2411 = vadd.f32 0.0, %v2410
        %v2412 = vpop.f32.mrf.mxu0
        %v2413 = vpop.f32.mrf.mxu0
        %v2414 = vadd.f32 0.0, %v2413
        %v2415 = vpop.f32.mrf.mxu0
        %2416 = vdwg.mxu0
        %v2418 = vsel %vm1968, %v2151, 0
        %2420 = vmatprep.subr.bf16.mxu0 0
        %2421 = vmatpush1.bf16.msra.mxu0 0
        %2422 = vmatprep.subr.bf16.mxu0 0
        %2423 = vmatpush1.bf16.msra.mxu0 0
        %2424 = vmatprep.subr.bf16.mxu0 0
        %2425 = vmatpush1.bf16.msra.mxu0 0
        %2426 = vmatprep.subr.bf16.mxu0 0
        %2427 = vmatpush1.bf16.msra.mxu0 0
        %2428 = vmatprep.subr.bf16.mxu0 0
        %2429 = vmatpush1.bf16.msra.mxu0 0
        %2430 = vmatprep.subr.bf16.mxu0 0
        %2431 = vmatpush1.bf16.msra.mxu0 0
        %2432 = vmatprep.subr.bf16.mxu0 0
        %2433 = vmatpush1.bf16.msra.mxu0 %v1630
        %2434 = vmatprep.subr.bf16.mxu0 0
        %2435 = vmatpush1.bf16.msra.mxu0 %v1626
        %2436 = vmatprep.subr.bf16.mxu0 0
        %2437 = vmatpush2.bf16.msra.mxu0 0
        %2438 = vmatprep.subr.bf16.mxu0 0
        %2439 = vmatpush2.bf16.msra.mxu0 0
        %2440 = vmatprep.subr.bf16.mxu0 0
        %2441 = vmatpush2.bf16.msra.mxu0 0
        %2442 = vmatprep.subr.bf16.mxu0 0
        %2443 = vmatpush2.bf16.msra.mxu0 0
        %2444 = vmatprep.subr.bf16.mxu0 0
        %2445 = vmatpush2.bf16.msra.mxu0 0
        %2446 = vmatprep.subr.bf16.mxu0 0
        %2447 = vmatpush2.bf16.msra.mxu0 0
        %2448 = vmatprep.subr.bf16.mxu0 0
        %2449 = vmatpush2.bf16.msra.mxu0 0
        %2450 = vmatprep.subr.bf16.mxu0 0
        %2451 = vmatpush2.bf16.msra.mxu0 0
        %2452 = vmatprep.mubr.bf16.mxu0 0
        %2453 = vmatmul.mubr.bf16.gmra.mxu0 %v2418
        %v2454 = vpop.f32.mrf.mxu0
        %v2455 = vadd.f32 0.0, %v2454
        %v2456 = vpop.f32.mrf.mxu0
        %v2457 = vpop.f32.mrf.mxu0
        %v2458 = vadd.f32 0.0, %v2457
        %v2459 = vpop.f32.mrf.mxu0
        %2460 = vdwg.mxu0
        %v2462 = vsel %vm1968, %v2152, 0
        %2464 = vmatprep.subr.bf16.mxu0 0
        %2465 = vmatpush1.bf16.msra.mxu0 0
        %2466 = vmatprep.subr.bf16.mxu0 0
        %2467 = vmatpush1.bf16.msra.mxu0 0
        %2468 = vmatprep.subr.bf16.mxu0 0
        %2469 = vmatpush1.bf16.msra.mxu0 0
        %2470 = vmatprep.subr.bf16.mxu0 0
        %2471 = vmatpush1.bf16.msra.mxu0 0
        %2472 = vmatprep.subr.bf16.mxu0 0
        %2473 = vmatpush1.bf16.msra.mxu0 0
        %2474 = vmatprep.subr.bf16.mxu0 0
        %2475 = vmatpush1.bf16.msra.mxu0 0
        %2476 = vmatprep.subr.bf16.mxu0 0
        %2477 = vmatpush1.bf16.msra.mxu0 %v1638
        %2478 = vmatprep.subr.bf16.mxu0 0
        %2479 = vmatpush1.bf16.msra.mxu0 %v1634
        %2480 = vmatprep.subr.bf16.mxu0 0
        %2481 = vmatpush2.bf16.msra.mxu0 0
        %2482 = vmatprep.subr.bf16.mxu0 0
        %2483 = vmatpush2.bf16.msra.mxu0 0
        %2484 = vmatprep.subr.bf16.mxu0 0
        %2485 = vmatpush2.bf16.msra.mxu0 0
        %2486 = vmatprep.subr.bf16.mxu0 0
        %2487 = vmatpush2.bf16.msra.mxu0 0
        %2488 = vmatprep.subr.bf16.mxu0 0
        %2489 = vmatpush2.bf16.msra.mxu0 0
        %2490 = vmatprep.subr.bf16.mxu0 0
        %2491 = vmatpush2.bf16.msra.mxu0 0
        %2492 = vmatprep.subr.bf16.mxu0 0
        %2493 = vmatpush2.bf16.msra.mxu0 0
        %2494 = vmatprep.subr.bf16.mxu0 0
        %2495 = vmatpush2.bf16.msra.mxu0 0
        %2496 = vmatprep.mubr.bf16.mxu0 0
        %2497 = vmatmul.mubr.bf16.gmra.mxu0 %v2462
        %v2498 = vpop.f32.mrf.mxu0
        %v2499 = vadd.f32 0.0, %v2498
        %v2500 = vpop.f32.mrf.mxu0
        %v2501 = vpop.f32.mrf.mxu0
        %v2502 = vadd.f32 0.0, %v2501
        %v2503 = vpop.f32.mrf.mxu0
        %2504 = vdwg.mxu0
        %v2505 = vpack.c.bf16 %v2194, %v2191
        %v2506 = vpack.c.bf16 %v2238, %v2235
        %v2507 = vpack.c.bf16 %v2282, %v2279
        %v2508 = vpack.c.bf16 %v2326, %v2323
        %v2509 = vpack.c.bf16 %v2370, %v2367
        %v2510 = vpack.c.bf16 %v2414, %v2411
        %v2511 = vpack.c.bf16 %v2458, %v2455
        %v2512 = vpack.c.bf16 %v2502, %v2499
        %2513 = vmatprep.subr.bf16.mxu0 0
        %2514 = vmatpush1.bf16.xpose.msra.mxu0 0
        %2515 = vmatprep.subr.bf16.mxu0 0
        %2516 = vmatpush1.bf16.xpose.msra.mxu0 0
        %2517 = vmatprep.subr.bf16.mxu0 0
        %2518 = vmatpush1.bf16.xpose.msra.mxu0 0
        %2519 = vmatprep.subr.bf16.mxu0 0
        %2520 = vmatpush1.bf16.xpose.msra.mxu0 0
        %2521 = vmatprep.subr.bf16.mxu0 0
        %2522 = vmatpush1.bf16.xpose.msra.mxu0 0
        %2523 = vmatprep.subr.bf16.mxu0 0
        %2524 = vmatpush1.bf16.xpose.msra.mxu0 0
        %2525 = vmatprep.subr.bf16.mxu0 0
        %2526 = vmatpush1.bf16.xpose.msra.mxu0 %v1581
        %2527 = vmatprep.subr.bf16.mxu0 0
        %2528 = vmatpush1.bf16.xpose.msra.mxu0 %v1577
        %2529 = vmatprep.subr.bf16.mxu0 0
        %2530 = vmatpush2.bf16.xpose.msra.mxu0 0
        %2531 = vmatprep.subr.bf16.mxu0 0
        %2532 = vmatpush2.bf16.xpose.msra.mxu0 0
        %2533 = vmatprep.subr.bf16.mxu0 0
        %2534 = vmatpush2.bf16.xpose.msra.mxu0 0
        %2535 = vmatprep.subr.bf16.mxu0 0
        %2536 = vmatpush2.bf16.xpose.msra.mxu0 0
        %2537 = vmatprep.subr.bf16.mxu0 0
        %2538 = vmatpush2.bf16.xpose.msra.mxu0 0
        %2539 = vmatprep.subr.bf16.mxu0 0
        %2540 = vmatpush2.bf16.xpose.msra.mxu0 0
        %2541 = vmatprep.subr.bf16.mxu0 0
        %2542 = vmatpush2.bf16.xpose.msra.mxu0 0
        %2543 = vmatprep.subr.bf16.mxu0 0
        %2544 = vmatpush2.bf16.xpose.msra.mxu0 0
        %2545 = vmatprep.mubr.bf16.mxu0 0
        %2546 = vmatmul.mubr.bf16.gmra.mxu0 %v865
        %v2547 = vpop.f32.mrf.mxu0
        %v2548 = vadd.f32 0.0, %v2547
        %v2549 = vpop.f32.mrf.mxu0
        %v2550 = vpop.f32.mrf.mxu0
        %v2551 = vadd.f32 0.0, %v2550
        %v2552 = vpop.f32.mrf.mxu0
        %2553 = vdwg.mxu0
        %2554 = vmatprep.subr.bf16.mxu0 0
        %2555 = vmatpush1.bf16.xpose.msra.mxu0 0
        %2556 = vmatprep.subr.bf16.mxu0 0
        %2557 = vmatpush1.bf16.xpose.msra.mxu0 0
        %2558 = vmatprep.subr.bf16.mxu0 0
        %2559 = vmatpush1.bf16.xpose.msra.mxu0 0
        %2560 = vmatprep.subr.bf16.mxu0 0
        %2561 = vmatpush1.bf16.xpose.msra.mxu0 0
        %2562 = vmatprep.subr.bf16.mxu0 0
        %2563 = vmatpush1.bf16.xpose.msra.mxu0 0
        %2564 = vmatprep.subr.bf16.mxu0 0
        %2565 = vmatpush1.bf16.xpose.msra.mxu0 0
        %2566 = vmatprep.subr.bf16.mxu0 0
        %2567 = vmatpush1.bf16.xpose.msra.mxu0 %v1589
        %2568 = vmatprep.subr.bf16.mxu0 0
        %2569 = vmatpush1.bf16.xpose.msra.mxu0 %v1585
        %2570 = vmatprep.subr.bf16.mxu0 0
        %2571 = vmatpush2.bf16.xpose.msra.mxu0 0
        %2572 = vmatprep.subr.bf16.mxu0 0
        %2573 = vmatpush2.bf16.xpose.msra.mxu0 0
        %2574 = vmatprep.subr.bf16.mxu0 0
        %2575 = vmatpush2.bf16.xpose.msra.mxu0 0
        %2576 = vmatprep.subr.bf16.mxu0 0
        %2577 = vmatpush2.bf16.xpose.msra.mxu0 0
        %2578 = vmatprep.subr.bf16.mxu0 0
        %2579 = vmatpush2.bf16.xpose.msra.mxu0 0
        %2580 = vmatprep.subr.bf16.mxu0 0
        %2581 = vmatpush2.bf16.xpose.msra.mxu0 0
        %2582 = vmatprep.subr.bf16.mxu0 0
        %2583 = vmatpush2.bf16.xpose.msra.mxu0 0
        %2584 = vmatprep.subr.bf16.mxu0 0
        %2585 = vmatpush2.bf16.xpose.msra.mxu0 0
        %2586 = vmatprep.mubr.bf16.mxu0 0
        %2587 = vmatmul.mubr.bf16.gmra.mxu0 %v867
        %v2588 = vpop.f32.mrf.mxu0
        %v2589 = vadd.f32 0.0, %v2588
        %v2590 = vpop.f32.mrf.mxu0
        %v2591 = vpop.f32.mrf.mxu0
        %v2592 = vadd.f32 0.0, %v2591
        %v2593 = vpop.f32.mrf.mxu0
        %2594 = vdwg.mxu0
        %2595 = vmatprep.subr.bf16.mxu0 0
        %2596 = vmatpush1.bf16.xpose.msra.mxu0 0
        %2597 = vmatprep.subr.bf16.mxu0 0
        %2598 = vmatpush1.bf16.xpose.msra.mxu0 0
        %2599 = vmatprep.subr.bf16.mxu0 0
        %2600 = vmatpush1.bf16.xpose.msra.mxu0 0
        %2601 = vmatprep.subr.bf16.mxu0 0
        %2602 = vmatpush1.bf16.xpose.msra.mxu0 0
        %2603 = vmatprep.subr.bf16.mxu0 0
        %2604 = vmatpush1.bf16.xpose.msra.mxu0 0
        %2605 = vmatprep.subr.bf16.mxu0 0
        %2606 = vmatpush1.bf16.xpose.msra.mxu0 0
        %2607 = vmatprep.subr.bf16.mxu0 0
        %2608 = vmatpush1.bf16.xpose.msra.mxu0 %v1597
        %2609 = vmatprep.subr.bf16.mxu0 0
        %2610 = vmatpush1.bf16.xpose.msra.mxu0 %v1593
        %2611 = vmatprep.subr.bf16.mxu0 0
        %2612 = vmatpush2.bf16.xpose.msra.mxu0 0
        %2613 = vmatprep.subr.bf16.mxu0 0
        %2614 = vmatpush2.bf16.xpose.msra.mxu0 0
        %2615 = vmatprep.subr.bf16.mxu0 0
        %2616 = vmatpush2.bf16.xpose.msra.mxu0 0
        %2617 = vmatprep.subr.bf16.mxu0 0
        %2618 = vmatpush2.bf16.xpose.msra.mxu0 0
        %2619 = vmatprep.subr.bf16.mxu0 0
        %2620 = vmatpush2.bf16.xpose.msra.mxu0 0
        %2621 = vmatprep.subr.bf16.mxu0 0
        %2622 = vmatpush2.bf16.xpose.msra.mxu0 0
        %2623 = vmatprep.subr.bf16.mxu0 0
        %2624 = vmatpush2.bf16.xpose.msra.mxu0 0
        %2625 = vmatprep.subr.bf16.mxu0 0
        %2626 = vmatpush2.bf16.xpose.msra.mxu0 0
        %2627 = vmatprep.mubr.bf16.mxu0 0
        %2628 = vmatmul.mubr.bf16.gmra.mxu0 %v869
        %v2629 = vpop.f32.mrf.mxu0
        %v2630 = vadd.f32 0.0, %v2629
        %v2631 = vpop.f32.mrf.mxu0
        %v2632 = vpop.f32.mrf.mxu0
        %v2633 = vadd.f32 0.0, %v2632
        %v2634 = vpop.f32.mrf.mxu0
        %2635 = vdwg.mxu0
        %2636 = vmatprep.subr.bf16.mxu0 0
        %2637 = vmatpush1.bf16.xpose.msra.mxu0 0
        %2638 = vmatprep.subr.bf16.mxu0 0
        %2639 = vmatpush1.bf16.xpose.msra.mxu0 0
        %2640 = vmatprep.subr.bf16.mxu0 0
        %2641 = vmatpush1.bf16.xpose.msra.mxu0 0
        %2642 = vmatprep.subr.bf16.mxu0 0
        %2643 = vmatpush1.bf16.xpose.msra.mxu0 0
        %2644 = vmatprep.subr.bf16.mxu0 0
        %2645 = vmatpush1.bf16.xpose.msra.mxu0 0
        %2646 = vmatprep.subr.bf16.mxu0 0
        %2647 = vmatpush1.bf16.xpose.msra.mxu0 0
        %2648 = vmatprep.subr.bf16.mxu0 0
        %2649 = vmatpush1.bf16.xpose.msra.mxu0 %v1605
        %2650 = vmatprep.subr.bf16.mxu0 0
        %2651 = vmatpush1.bf16.xpose.msra.mxu0 %v1601
        %2652 = vmatprep.subr.bf16.mxu0 0
        %2653 = vmatpush2.bf16.xpose.msra.mxu0 0
        %2654 = vmatprep.subr.bf16.mxu0 0
        %2655 = vmatpush2.bf16.xpose.msra.mxu0 0
        %2656 = vmatprep.subr.bf16.mxu0 0
        %2657 = vmatpush2.bf16.xpose.msra.mxu0 0
        %2658 = vmatprep.subr.bf16.mxu0 0
        %2659 = vmatpush2.bf16.xpose.msra.mxu0 0
        %2660 = vmatprep.subr.bf16.mxu0 0
        %2661 = vmatpush2.bf16.xpose.msra.mxu0 0
        %2662 = vmatprep.subr.bf16.mxu0 0
        %2663 = vmatpush2.bf16.xpose.msra.mxu0 0
        %2664 = vmatprep.subr.bf16.mxu0 0
        %2665 = vmatpush2.bf16.xpose.msra.mxu0 0
        %2666 = vmatprep.subr.bf16.mxu0 0
        %2667 = vmatpush2.bf16.xpose.msra.mxu0 0
        %2668 = vmatprep.mubr.bf16.mxu0 0
        %2669 = vmatmul.mubr.bf16.gmra.mxu0 %v871
        %v2670 = vpop.f32.mrf.mxu0
        %v2671 = vadd.f32 0.0, %v2670
        %v2672 = vpop.f32.mrf.mxu0
        %v2673 = vpop.f32.mrf.mxu0
        %v2674 = vadd.f32 0.0, %v2673
        %v2675 = vpop.f32.mrf.mxu0
        %2676 = vdwg.mxu0
        %2677 = vmatprep.subr.bf16.mxu0 0
        %2678 = vmatpush1.bf16.xpose.msra.mxu0 0
        %2679 = vmatprep.subr.bf16.mxu0 0
        %2680 = vmatpush1.bf16.xpose.msra.mxu0 0
        %2681 = vmatprep.subr.bf16.mxu0 0
        %2682 = vmatpush1.bf16.xpose.msra.mxu0 0
        %2683 = vmatprep.subr.bf16.mxu0 0
        %2684 = vmatpush1.bf16.xpose.msra.mxu0 0
        %2685 = vmatprep.subr.bf16.mxu0 0
        %2686 = vmatpush1.bf16.xpose.msra.mxu0 0
        %2687 = vmatprep.subr.bf16.mxu0 0
        %2688 = vmatpush1.bf16.xpose.msra.mxu0 0
        %2689 = vmatprep.subr.bf16.mxu0 0
        %2690 = vmatpush1.bf16.xpose.msra.mxu0 %v1613
        %2691 = vmatprep.subr.bf16.mxu0 0
        %2692 = vmatpush1.bf16.xpose.msra.mxu0 %v1609
        %2693 = vmatprep.subr.bf16.mxu0 0
        %2694 = vmatpush2.bf16.xpose.msra.mxu0 0
        %2695 = vmatprep.subr.bf16.mxu0 0
        %2696 = vmatpush2.bf16.xpose.msra.mxu0 0
        %2697 = vmatprep.subr.bf16.mxu0 0
        %2698 = vmatpush2.bf16.xpose.msra.mxu0 0
        %2699 = vmatprep.subr.bf16.mxu0 0
        %2700 = vmatpush2.bf16.xpose.msra.mxu0 0
        %2701 = vmatprep.subr.bf16.mxu0 0
        %2702 = vmatpush2.bf16.xpose.msra.mxu0 0
        %2703 = vmatprep.subr.bf16.mxu0 0
        %2704 = vmatpush2.bf16.xpose.msra.mxu0 0
        %2705 = vmatprep.subr.bf16.mxu0 0
        %2706 = vmatpush2.bf16.xpose.msra.mxu0 0
        %2707 = vmatprep.subr.bf16.mxu0 0
        %2708 = vmatpush2.bf16.xpose.msra.mxu0 0
        %2709 = vmatprep.mubr.bf16.mxu0 0
        %2710 = vmatmul.mubr.bf16.gmra.mxu0 %v873
        %v2711 = vpop.f32.mrf.mxu0
        %v2712 = vadd.f32 0.0, %v2711
        %v2713 = vpop.f32.mrf.mxu0
        %v2714 = vpop.f32.mrf.mxu0
        %v2715 = vadd.f32 0.0, %v2714
        %v2716 = vpop.f32.mrf.mxu0
        %2717 = vdwg.mxu0
        %2718 = vmatprep.subr.bf16.mxu0 0
        %2719 = vmatpush1.bf16.xpose.msra.mxu0 0
        %2720 = vmatprep.subr.bf16.mxu0 0
        %2721 = vmatpush1.bf16.xpose.msra.mxu0 0
        %2722 = vmatprep.subr.bf16.mxu0 0
        %2723 = vmatpush1.bf16.xpose.msra.mxu0 0
        %2724 = vmatprep.subr.bf16.mxu0 0
        %2725 = vmatpush1.bf16.xpose.msra.mxu0 0
        %2726 = vmatprep.subr.bf16.mxu0 0
        %2727 = vmatpush1.bf16.xpose.msra.mxu0 0
        %2728 = vmatprep.subr.bf16.mxu0 0
        %2729 = vmatpush1.bf16.xpose.msra.mxu0 0
        %2730 = vmatprep.subr.bf16.mxu0 0
        %2731 = vmatpush1.bf16.xpose.msra.mxu0 %v1621
        %2732 = vmatprep.subr.bf16.mxu0 0
        %2733 = vmatpush1.bf16.xpose.msra.mxu0 %v1617
        %2734 = vmatprep.subr.bf16.mxu0 0
        %2735 = vmatpush2.bf16.xpose.msra.mxu0 0
        %2736 = vmatprep.subr.bf16.mxu0 0
        %2737 = vmatpush2.bf16.xpose.msra.mxu0 0
        %2738 = vmatprep.subr.bf16.mxu0 0
        %2739 = vmatpush2.bf16.xpose.msra.mxu0 0
        %2740 = vmatprep.subr.bf16.mxu0 0
        %2741 = vmatpush2.bf16.xpose.msra.mxu0 0
        %2742 = vmatprep.subr.bf16.mxu0 0
        %2743 = vmatpush2.bf16.xpose.msra.mxu0 0
        %2744 = vmatprep.subr.bf16.mxu0 0
        %2745 = vmatpush2.bf16.xpose.msra.mxu0 0
        %2746 = vmatprep.subr.bf16.mxu0 0
        %2747 = vmatpush2.bf16.xpose.msra.mxu0 0
        %2748 = vmatprep.subr.bf16.mxu0 0
        %2749 = vmatpush2.bf16.xpose.msra.mxu0 0
        %2750 = vmatprep.mubr.bf16.mxu0 0
        %2751 = vmatmul.mubr.bf16.gmra.mxu0 %v875
        %v2752 = vpop.f32.mrf.mxu0
        %v2753 = vadd.f32 0.0, %v2752
        %v2754 = vpop.f32.mrf.mxu0
        %v2755 = vpop.f32.mrf.mxu0
        %v2756 = vadd.f32 0.0, %v2755
        %v2757 = vpop.f32.mrf.mxu0
        %2758 = vdwg.mxu0
        %2759 = vmatprep.subr.bf16.mxu0 0
        %2760 = vmatpush1.bf16.xpose.msra.mxu0 0
        %2761 = vmatprep.subr.bf16.mxu0 0
        %2762 = vmatpush1.bf16.xpose.msra.mxu0 0
        %2763 = vmatprep.subr.bf16.mxu0 0
        %2764 = vmatpush1.bf16.xpose.msra.mxu0 0
        %2765 = vmatprep.subr.bf16.mxu0 0
        %2766 = vmatpush1.bf16.xpose.msra.mxu0 0
        %2767 = vmatprep.subr.bf16.mxu0 0
        %2768 = vmatpush1.bf16.xpose.msra.mxu0 0
        %2769 = vmatprep.subr.bf16.mxu0 0
        %2770 = vmatpush1.bf16.xpose.msra.mxu0 0
        %2771 = vmatprep.subr.bf16.mxu0 0
        %2772 = vmatpush1.bf16.xpose.msra.mxu0 %v1629
        %2773 = vmatprep.subr.bf16.mxu0 0
        %2774 = vmatpush1.bf16.xpose.msra.mxu0 %v1625
        %2775 = vmatprep.subr.bf16.mxu0 0
        %2776 = vmatpush2.bf16.xpose.msra.mxu0 0
        %2777 = vmatprep.subr.bf16.mxu0 0
        %2778 = vmatpush2.bf16.xpose.msra.mxu0 0
        %2779 = vmatprep.subr.bf16.mxu0 0
        %2780 = vmatpush2.bf16.xpose.msra.mxu0 0
        %2781 = vmatprep.subr.bf16.mxu0 0
        %2782 = vmatpush2.bf16.xpose.msra.mxu0 0
        %2783 = vmatprep.subr.bf16.mxu0 0
        %2784 = vmatpush2.bf16.xpose.msra.mxu0 0
        %2785 = vmatprep.subr.bf16.mxu0 0
        %2786 = vmatpush2.bf16.xpose.msra.mxu0 0
        %2787 = vmatprep.subr.bf16.mxu0 0
        %2788 = vmatpush2.bf16.xpose.msra.mxu0 0
        %2789 = vmatprep.subr.bf16.mxu0 0
        %2790 = vmatpush2.bf16.xpose.msra.mxu0 0
        %2791 = vmatprep.mubr.bf16.mxu0 0
        %2792 = vmatmul.mubr.bf16.gmra.mxu0 %v877
        %v2793 = vpop.f32.mrf.mxu0
        %v2794 = vadd.f32 0.0, %v2793
        %v2795 = vpop.f32.mrf.mxu0
        %v2796 = vpop.f32.mrf.mxu0
        %v2797 = vadd.f32 0.0, %v2796
        %v2798 = vpop.f32.mrf.mxu0
        %2799 = vdwg.mxu0
        %2800 = vmatprep.subr.bf16.mxu0 0
        %2801 = vmatpush1.bf16.xpose.msra.mxu0 0
        %2802 = vmatprep.subr.bf16.mxu0 0
        %2803 = vmatpush1.bf16.xpose.msra.mxu0 0
        %2804 = vmatprep.subr.bf16.mxu0 0
        %2805 = vmatpush1.bf16.xpose.msra.mxu0 0
        %2806 = vmatprep.subr.bf16.mxu0 0
        %2807 = vmatpush1.bf16.xpose.msra.mxu0 0
        %2808 = vmatprep.subr.bf16.mxu0 0
        %2809 = vmatpush1.bf16.xpose.msra.mxu0 0
        %2810 = vmatprep.subr.bf16.mxu0 0
        %2811 = vmatpush1.bf16.xpose.msra.mxu0 0
        %2812 = vmatprep.subr.bf16.mxu0 0
        %2813 = vmatpush1.bf16.xpose.msra.mxu0 %v1637
        %2814 = vmatprep.subr.bf16.mxu0 0
        %2815 = vmatpush1.bf16.xpose.msra.mxu0 %v1633
        %2816 = vmatprep.subr.bf16.mxu0 0
        %2817 = vmatpush2.bf16.xpose.msra.mxu0 0
        %2818 = vmatprep.subr.bf16.mxu0 0
        %2819 = vmatpush2.bf16.xpose.msra.mxu0 0
        %2820 = vmatprep.subr.bf16.mxu0 0
        %2821 = vmatpush2.bf16.xpose.msra.mxu0 0
        %2822 = vmatprep.subr.bf16.mxu0 0
        %2823 = vmatpush2.bf16.xpose.msra.mxu0 0
        %2824 = vmatprep.subr.bf16.mxu0 0
        %2825 = vmatpush2.bf16.xpose.msra.mxu0 0
        %2826 = vmatprep.subr.bf16.mxu0 0
        %2827 = vmatpush2.bf16.xpose.msra.mxu0 0
        %2828 = vmatprep.subr.bf16.mxu0 0
        %2829 = vmatpush2.bf16.xpose.msra.mxu0 0
        %2830 = vmatprep.subr.bf16.mxu0 0
        %2831 = vmatpush2.bf16.xpose.msra.mxu0 0
        %2832 = vmatprep.mubr.bf16.mxu0 0
        %2833 = vmatmul.mubr.bf16.gmra.mxu0 %v879
        %v2834 = vpop.f32.mrf.mxu0
        %v2835 = vadd.f32 0.0, %v2834
        %v2836 = vpop.f32.mrf.mxu0
        %v2837 = vpop.f32.mrf.mxu0
        %v2838 = vadd.f32 0.0, %v2837
        %v2839 = vpop.f32.mrf.mxu0
        %2840 = vdwg.mxu0
        %v2841 = vsel %vm1968, %v2548, -inf
        %2842 = vmax.xlane.f32.xlu0 %v2841
        %v2843 = vpop.xlane.xlu0 %2842
        %v2844 = vsel %vm1968, %v2551, -inf
        %2845 = vmax.xlane.f32.xlu0 %v2844
        %v2846 = vpop.xlane.xlu0 %2845
        %v2847 = vsel %vm1968, %v2589, -inf
        %2848 = vmax.xlane.f32.xlu0 %v2847
        %v2849 = vpop.xlane.xlu0 %2848
        %v2850 = vsel %vm1968, %v2592, -inf
        %2851 = vmax.xlane.f32.xlu0 %v2850
        %v2852 = vpop.xlane.xlu0 %2851
        %v2853 = vsel %vm1968, %v2630, -inf
        %2854 = vmax.xlane.f32.xlu0 %v2853
        %v2855 = vpop.xlane.xlu0 %2854
        %v2856 = vsel %vm1968, %v2633, -inf
        %2857 = vmax.xlane.f32.xlu0 %v2856
        %v2858 = vpop.xlane.xlu0 %2857
        %v2859 = vsel %vm1968, %v2671, -inf
        %2860 = vmax.xlane.f32.xlu0 %v2859
        %v2861 = vpop.xlane.xlu0 %2860
        %v2862 = vsel %vm1968, %v2674, -inf
        %2863 = vmax.xlane.f32.xlu0 %v2862
        %v2864 = vpop.xlane.xlu0 %2863
        %v2865 = vsel %vm1968, %v2712, -inf
        %2866 = vmax.xlane.f32.xlu0 %v2865
        %v2867 = vpop.xlane.xlu0 %2866
        %v2868 = vsel %vm1968, %v2715, -inf
        %2869 = vmax.xlane.f32.xlu0 %v2868
        %v2870 = vpop.xlane.xlu0 %2869
        %v2871 = vsel %vm1968, %v2753, -inf
        %2872 = vmax.xlane.f32.xlu0 %v2871
        %v2873 = vpop.xlane.xlu0 %2872
        %v2874 = vsel %vm1968, %v2756, -inf
        %2875 = vmax.xlane.f32.xlu0 %v2874
        %v2876 = vpop.xlane.xlu0 %2875
        %v2877 = vsel %vm1968, %v2794, -inf
        %2878 = vmax.xlane.f32.xlu0 %v2877
        %v2879 = vpop.xlane.xlu0 %2878
        %v2880 = vsel %vm1968, %v2797, -inf
        %2881 = vmax.xlane.f32.xlu0 %v2880
        %v2882 = vpop.xlane.xlu0 %2881
        %v2883 = vsel %vm1968, %v2835, -inf
        %2884 = vmax.xlane.f32.xlu0 %v2883
        %v2885 = vpop.xlane.xlu0 %2884
        %v2886 = vsel %vm1968, %v2838, -inf
        %2887 = vmax.xlane.f32.xlu0 %v2886
        %v2888 = vpop.xlane.xlu0 %2887
        %v2889 = vsub.f32 %v2548, %v2843
        %v2890 = vsub.f32 %v2551, %v2846
        %v2891 = vsub.f32 %v2589, %v2849
        %v2892 = vsub.f32 %v2592, %v2852
        %v2893 = vsub.f32 %v2630, %v2855
        %v2894 = vsub.f32 %v2633, %v2858
        %v2895 = vsub.f32 %v2671, %v2861
        %v2896 = vsub.f32 %v2674, %v2864
        %v2897 = vsub.f32 %v2712, %v2867
        %v2898 = vsub.f32 %v2715, %v2870
        %v2899 = vsub.f32 %v2753, %v2873
        %v2900 = vsub.f32 %v2756, %v2876
        %v2901 = vsub.f32 %v2794, %v2879
        %v2902 = vsub.f32 %v2797, %v2882
        %v2903 = vsub.f32 %v2835, %v2885
        %v2904 = vsub.f32 %v2838, %v2888
        %v2905 = vmul.f32 %v2889, 1.442695
        %v2906 = vpow.pop %v2905
        %v2907 = vmul.f32 %v2890, 1.442695
        %v2908 = vpow.pop %v2907
        %v2909 = vmul.f32 %v2891, 1.442695
        %v2910 = vpow.pop %v2909
        %v2911 = vmul.f32 %v2892, 1.442695
        %v2912 = vpow.pop %v2911
        %v2913 = vmul.f32 %v2893, 1.442695
        %v2914 = vpow.pop %v2913
        %v2915 = vmul.f32 %v2894, 1.442695
        %v2916 = vpow.pop %v2915
        %v2917 = vmul.f32 %v2895, 1.442695
        %v2918 = vpow.pop %v2917
        %v2919 = vmul.f32 %v2896, 1.442695
        %v2920 = vpow.pop %v2919
        %v2921 = vmul.f32 %v2897, 1.442695
        %v2922 = vpow.pop %v2921
        %v2923 = vmul.f32 %v2898, 1.442695
        %v2924 = vpow.pop %v2923
        %v2925 = vmul.f32 %v2899, 1.442695
        %v2926 = vpow.pop %v2925
        %v2927 = vmul.f32 %v2900, 1.442695
        %v2928 = vpow.pop %v2927
        %v2929 = vmul.f32 %v2901, 1.442695
        %v2930 = vpow.pop %v2929
        %v2931 = vmul.f32 %v2902, 1.442695
        %v2932 = vpow.pop %v2931
        %v2933 = vmul.f32 %v2903, 1.442695
        %v2934 = vpow.pop %v2933
        %v2935 = vmul.f32 %v2904, 1.442695
        %v2936 = vpow.pop %v2935
        %v2937 = vsel %vm1968, %v2906, 0.0
        %2938 = vadd.xlane.f32.xlu0 %v2937
        %v2939 = vpop.xlane.xlu0 %2938
        %v2940 = vsel %vm1968, %v2908, 0.0
        %2941 = vadd.xlane.f32.xlu0 %v2940
        %v2942 = vpop.xlane.xlu0 %2941
        %v2943 = vsel %vm1968, %v2910, 0.0
        %2944 = vadd.xlane.f32.xlu0 %v2943
        %v2945 = vpop.xlane.xlu0 %2944
        %v2946 = vsel %vm1968, %v2912, 0.0
        %2947 = vadd.xlane.f32.xlu0 %v2946
        %v2948 = vpop.xlane.xlu0 %2947
        %v2949 = vsel %vm1968, %v2914, 0.0
        %2950 = vadd.xlane.f32.xlu0 %v2949
        %v2951 = vpop.xlane.xlu0 %2950
        %v2952 = vsel %vm1968, %v2916, 0.0
        %2953 = vadd.xlane.f32.xlu0 %v2952
        %v2954 = vpop.xlane.xlu0 %2953
        %v2955 = vsel %vm1968, %v2918, 0.0
        %2956 = vadd.xlane.f32.xlu0 %v2955
        %v2957 = vpop.xlane.xlu0 %2956
        %v2958 = vsel %vm1968, %v2920, 0.0
        %2959 = vadd.xlane.f32.xlu0 %v2958
        %v2960 = vpop.xlane.xlu0 %2959
        %v2961 = vsel %vm1968, %v2922, 0.0
        %2962 = vadd.xlane.f32.xlu0 %v2961
        %v2963 = vpop.xlane.xlu0 %2962
        %v2964 = vsel %vm1968, %v2924, 0.0
        %2965 = vadd.xlane.f32.xlu0 %v2964
        %v2966 = vpop.xlane.xlu0 %2965
        %v2967 = vsel %vm1968, %v2926, 0.0
        %2968 = vadd.xlane.f32.xlu0 %v2967
        %v2969 = vpop.xlane.xlu0 %2968
        %v2970 = vsel %vm1968, %v2928, 0.0
        %2971 = vadd.xlane.f32.xlu0 %v2970
        %v2972 = vpop.xlane.xlu0 %2971
        %v2973 = vsel %vm1968, %v2930, 0.0
        %2974 = vadd.xlane.f32.xlu0 %v2973
        %v2975 = vpop.xlane.xlu0 %2974
        %v2976 = vsel %vm1968, %v2932, 0.0
        %2977 = vadd.xlane.f32.xlu0 %v2976
        %v2978 = vpop.xlane.xlu0 %2977
        %v2979 = vsel %vm1968, %v2934, 0.0
        %2980 = vadd.xlane.f32.xlu0 %v2979
        %v2981 = vpop.xlane.xlu0 %2980
        %v2982 = vsel %vm1968, %v2936, 0.0
        %2983 = vadd.xlane.f32.xlu0 %v2982
        %v2984 = vpop.xlane.xlu0 %2983
        %v2985 = vrcp.pop %v2939
        %v2986 = vrcp.pop %v2942
        %v2987 = vrcp.pop %v2945
        %v2988 = vrcp.pop %v2948
        %v2989 = vrcp.pop %v2951
        %v2990 = vrcp.pop %v2954
        %v2991 = vrcp.pop %v2957
        %v2992 = vrcp.pop %v2960
        %v2993 = vrcp.pop %v2963
        %v2994 = vrcp.pop %v2966
        %v2995 = vrcp.pop %v2969
        %v2996 = vrcp.pop %v2972
        %v2997 = vrcp.pop %v2975
        %v2998 = vrcp.pop %v2978
        %v2999 = vrcp.pop %v2981
        %v3000 = vrcp.pop %v2984
        %v3001 = vmul.f32 %v2906, %v2985
        %v3002 = vmul.f32 %v2908, %v2986
        %v3003 = vmul.f32 %v2910, %v2987
        %v3004 = vmul.f32 %v2912, %v2988
        %v3005 = vmul.f32 %v2914, %v2989
        %v3006 = vmul.f32 %v2916, %v2990
        %v3007 = vmul.f32 %v2918, %v2991
        %v3008 = vmul.f32 %v2920, %v2992
        %v3009 = vmul.f32 %v2922, %v2993
        %v3010 = vmul.f32 %v2924, %v2994
        %v3011 = vmul.f32 %v2926, %v2995
        %v3012 = vmul.f32 %v2928, %v2996
        %v3013 = vmul.f32 %v2930, %v2997
        %v3014 = vmul.f32 %v2932, %v2998
        %v3015 = vmul.f32 %v2934, %v2999
        %v3016 = vmul.f32 %v2936, %v3000
        %v3017 = vpack.c.bf16 %v3002, %v3001
        %v3018 = vpack.c.bf16 %v3004, %v3003
        %v3019 = vpack.c.bf16 %v3006, %v3005
        %v3020 = vpack.c.bf16 %v3008, %v3007
        %v3021 = vpack.c.bf16 %v3010, %v3009
        %v3022 = vpack.c.bf16 %v3012, %v3011
        %v3023 = vpack.c.bf16 %v3014, %v3013
        %v3024 = vpack.c.bf16 %v3016, %v3015
        %v3026 = vsel %vm1968, %v3017, 0
        %3028 = vmatprep.subr.bf16.mxu0 0
        %3029 = vmatpush1.bf16.msra.mxu0 0
        %3030 = vmatprep.subr.bf16.mxu0 0
        %3031 = vmatpush1.bf16.msra.mxu0 0
        %3032 = vmatprep.subr.bf16.mxu0 0
        %3033 = vmatpush1.bf16.msra.mxu0 0
        %3034 = vmatprep.subr.bf16.mxu0 0
        %3035 = vmatpush1.bf16.msra.mxu0 0
        %3036 = vmatprep.subr.bf16.mxu0 0
        %3037 = vmatpush1.bf16.msra.mxu0 0
        %3038 = vmatprep.subr.bf16.mxu0 0
        %3039 = vmatpush1.bf16.msra.mxu0 0
        %3040 = vmatprep.subr.bf16.mxu0 0
        %3041 = vmatpush1.bf16.msra.mxu0 %v1583
        %3042 = vmatprep.subr.bf16.mxu0 0
        %3043 = vmatpush1.bf16.msra.mxu0 %v1579
        %3044 = vmatprep.subr.bf16.mxu0 0
        %3045 = vmatpush2.bf16.msra.mxu0 0
        %3046 = vmatprep.subr.bf16.mxu0 0
        %3047 = vmatpush2.bf16.msra.mxu0 0
        %3048 = vmatprep.subr.bf16.mxu0 0
        %3049 = vmatpush2.bf16.msra.mxu0 0
        %3050 = vmatprep.subr.bf16.mxu0 0
        %3051 = vmatpush2.bf16.msra.mxu0 0
        %3052 = vmatprep.subr.bf16.mxu0 0
        %3053 = vmatpush2.bf16.msra.mxu0 0
        %3054 = vmatprep.subr.bf16.mxu0 0
        %3055 = vmatpush2.bf16.msra.mxu0 0
        %3056 = vmatprep.subr.bf16.mxu0 0
        %3057 = vmatpush2.bf16.msra.mxu0 0
        %3058 = vmatprep.subr.bf16.mxu0 0
        %3059 = vmatpush2.bf16.msra.mxu0 0
        %3060 = vmatprep.mubr.bf16.mxu0 0
        %3061 = vmatmul.mubr.bf16.gmra.mxu0 %v3026
        %v3062 = vpop.f32.mrf.mxu0
        %v3063 = vadd.f32 0.0, %v3062
        %v3064 = vpop.f32.mrf.mxu0
        %v3065 = vpop.f32.mrf.mxu0
        %v3066 = vadd.f32 0.0, %v3065
        %v3067 = vpop.f32.mrf.mxu0
        %3068 = vdwg.mxu0
        %v3070 = vsel %vm1968, %v3018, 0
        %3072 = vmatprep.subr.bf16.mxu0 0
        %3073 = vmatpush1.bf16.msra.mxu0 0
        %3074 = vmatprep.subr.bf16.mxu0 0
        %3075 = vmatpush1.bf16.msra.mxu0 0
        %3076 = vmatprep.subr.bf16.mxu0 0
        %3077 = vmatpush1.bf16.msra.mxu0 0
        %3078 = vmatprep.subr.bf16.mxu0 0
        %3079 = vmatpush1.bf16.msra.mxu0 0
        %3080 = vmatprep.subr.bf16.mxu0 0
        %3081 = vmatpush1.bf16.msra.mxu0 0
        %3082 = vmatprep.subr.bf16.mxu0 0
        %3083 = vmatpush1.bf16.msra.mxu0 0
        %3084 = vmatprep.subr.bf16.mxu0 0
        %3085 = vmatpush1.bf16.msra.mxu0 %v1591
        %3086 = vmatprep.subr.bf16.mxu0 0
        %3087 = vmatpush1.bf16.msra.mxu0 %v1587
        %3088 = vmatprep.subr.bf16.mxu0 0
        %3089 = vmatpush2.bf16.msra.mxu0 0
        %3090 = vmatprep.subr.bf16.mxu0 0
        %3091 = vmatpush2.bf16.msra.mxu0 0
        %3092 = vmatprep.subr.bf16.mxu0 0
        %3093 = vmatpush2.bf16.msra.mxu0 0
        %3094 = vmatprep.subr.bf16.mxu0 0
        %3095 = vmatpush2.bf16.msra.mxu0 0
        %3096 = vmatprep.subr.bf16.mxu0 0
        %3097 = vmatpush2.bf16.msra.mxu0 0
        %3098 = vmatprep.subr.bf16.mxu0 0
        %3099 = vmatpush2.bf16.msra.mxu0 0
        %3100 = vmatprep.subr.bf16.mxu0 0
        %3101 = vmatpush2.bf16.msra.mxu0 0
        %3102 = vmatprep.subr.bf16.mxu0 0
        %3103 = vmatpush2.bf16.msra.mxu0 0
        %3104 = vmatprep.mubr.bf16.mxu0 0
        %3105 = vmatmul.mubr.bf16.gmra.mxu0 %v3070
        %v3106 = vpop.f32.mrf.mxu0
        %v3107 = vadd.f32 0.0, %v3106
        %v3108 = vpop.f32.mrf.mxu0
        %v3109 = vpop.f32.mrf.mxu0
        %v3110 = vadd.f32 0.0, %v3109
        %v3111 = vpop.f32.mrf.mxu0
        %3112 = vdwg.mxu0
        %v3114 = vsel %vm1968, %v3019, 0
        %3116 = vmatprep.subr.bf16.mxu0 0
        %3117 = vmatpush1.bf16.msra.mxu0 0
        %3118 = vmatprep.subr.bf16.mxu0 0
        %3119 = vmatpush1.bf16.msra.mxu0 0
        %3120 = vmatprep.subr.bf16.mxu0 0
        %3121 = vmatpush1.bf16.msra.mxu0 0
        %3122 = vmatprep.subr.bf16.mxu0 0
        %3123 = vmatpush1.bf16.msra.mxu0 0
        %3124 = vmatprep.subr.bf16.mxu0 0
        %3125 = vmatpush1.bf16.msra.mxu0 0
        %3126 = vmatprep.subr.bf16.mxu0 0
        %3127 = vmatpush1.bf16.msra.mxu0 0
        %3128 = vmatprep.subr.bf16.mxu0 0
        %3129 = vmatpush1.bf16.msra.mxu0 %v1599
        %3130 = vmatprep.subr.bf16.mxu0 0
        %3131 = vmatpush1.bf16.msra.mxu0 %v1595
        %3132 = vmatprep.subr.bf16.mxu0 0
        %3133 = vmatpush2.bf16.msra.mxu0 0
        %3134 = vmatprep.subr.bf16.mxu0 0
        %3135 = vmatpush2.bf16.msra.mxu0 0
        %3136 = vmatprep.subr.bf16.mxu0 0
        %3137 = vmatpush2.bf16.msra.mxu0 0
        %3138 = vmatprep.subr.bf16.mxu0 0
        %3139 = vmatpush2.bf16.msra.mxu0 0
        %3140 = vmatprep.subr.bf16.mxu0 0
        %3141 = vmatpush2.bf16.msra.mxu0 0
        %3142 = vmatprep.subr.bf16.mxu0 0
        %3143 = vmatpush2.bf16.msra.mxu0 0
        %3144 = vmatprep.subr.bf16.mxu0 0
        %3145 = vmatpush2.bf16.msra.mxu0 0
        %3146 = vmatprep.subr.bf16.mxu0 0
        %3147 = vmatpush2.bf16.msra.mxu0 0
        %3148 = vmatprep.mubr.bf16.mxu0 0
        %3149 = vmatmul.mubr.bf16.gmra.mxu0 %v3114
        %v3150 = vpop.f32.mrf.mxu0
        %v3151 = vadd.f32 0.0, %v3150
        %v3152 = vpop.f32.mrf.mxu0
        %v3153 = vpop.f32.mrf.mxu0
        %v3154 = vadd.f32 0.0, %v3153
        %v3155 = vpop.f32.mrf.mxu0
        %3156 = vdwg.mxu0
        %v3158 = vsel %vm1968, %v3020, 0
        %3160 = vmatprep.subr.bf16.mxu0 0
        %3161 = vmatpush1.bf16.msra.mxu0 0
        %3162 = vmatprep.subr.bf16.mxu0 0
        %3163 = vmatpush1.bf16.msra.mxu0 0
        %3164 = vmatprep.subr.bf16.mxu0 0
        %3165 = vmatpush1.bf16.msra.mxu0 0
        %3166 = vmatprep.subr.bf16.mxu0 0
        %3167 = vmatpush1.bf16.msra.mxu0 0
        %3168 = vmatprep.subr.bf16.mxu0 0
        %3169 = vmatpush1.bf16.msra.mxu0 0
        %3170 = vmatprep.subr.bf16.mxu0 0
        %3171 = vmatpush1.bf16.msra.mxu0 0
        %3172 = vmatprep.subr.bf16.mxu0 0
        %3173 = vmatpush1.bf16.msra.mxu0 %v1607
        %3174 = vmatprep.subr.bf16.mxu0 0
        %3175 = vmatpush1.bf16.msra.mxu0 %v1603
        %3176 = vmatprep.subr.bf16.mxu0 0
        %3177 = vmatpush2.bf16.msra.mxu0 0
        %3178 = vmatprep.subr.bf16.mxu0 0
        %3179 = vmatpush2.bf16.msra.mxu0 0
        %3180 = vmatprep.subr.bf16.mxu0 0
        %3181 = vmatpush2.bf16.msra.mxu0 0
        %3182 = vmatprep.subr.bf16.mxu0 0
        %3183 = vmatpush2.bf16.msra.mxu0 0
        %3184 = vmatprep.subr.bf16.mxu0 0
        %3185 = vmatpush2.bf16.msra.mxu0 0
        %3186 = vmatprep.subr.bf16.mxu0 0
        %3187 = vmatpush2.bf16.msra.mxu0 0
        %3188 = vmatprep.subr.bf16.mxu0 0
        %3189 = vmatpush2.bf16.msra.mxu0 0
        %3190 = vmatprep.subr.bf16.mxu0 0
        %3191 = vmatpush2.bf16.msra.mxu0 0
        %3192 = vmatprep.mubr.bf16.mxu0 0
        %3193 = vmatmul.mubr.bf16.gmra.mxu0 %v3158
        %v3194 = vpop.f32.mrf.mxu0
        %v3195 = vadd.f32 0.0, %v3194
        %v3196 = vpop.f32.mrf.mxu0
        %v3197 = vpop.f32.mrf.mxu0
        %v3198 = vadd.f32 0.0, %v3197
        %v3199 = vpop.f32.mrf.mxu0
        %3200 = vdwg.mxu0
        %v3202 = vsel %vm1968, %v3021, 0
        %3204 = vmatprep.subr.bf16.mxu0 0
        %3205 = vmatpush1.bf16.msra.mxu0 0
        %3206 = vmatprep.subr.bf16.mxu0 0
        %3207 = vmatpush1.bf16.msra.mxu0 0
        %3208 = vmatprep.subr.bf16.mxu0 0
        %3209 = vmatpush1.bf16.msra.mxu0 0
        %3210 = vmatprep.subr.bf16.mxu0 0
        %3211 = vmatpush1.bf16.msra.mxu0 0
        %3212 = vmatprep.subr.bf16.mxu0 0
        %3213 = vmatpush1.bf16.msra.mxu0 0
        %3214 = vmatprep.subr.bf16.mxu0 0
        %3215 = vmatpush1.bf16.msra.mxu0 0
        %3216 = vmatprep.subr.bf16.mxu0 0
        %3217 = vmatpush1.bf16.msra.mxu0 %v1615
        %3218 = vmatprep.subr.bf16.mxu0 0
        %3219 = vmatpush1.bf16.msra.mxu0 %v1611
        %3220 = vmatprep.subr.bf16.mxu0 0
        %3221 = vmatpush2.bf16.msra.mxu0 0
        %3222 = vmatprep.subr.bf16.mxu0 0
        %3223 = vmatpush2.bf16.msra.mxu0 0
        %3224 = vmatprep.subr.bf16.mxu0 0
        %3225 = vmatpush2.bf16.msra.mxu0 0
        %3226 = vmatprep.subr.bf16.mxu0 0
        %3227 = vmatpush2.bf16.msra.mxu0 0
        %3228 = vmatprep.subr.bf16.mxu0 0
        %3229 = vmatpush2.bf16.msra.mxu0 0
        %3230 = vmatprep.subr.bf16.mxu0 0
        %3231 = vmatpush2.bf16.msra.mxu0 0
        %3232 = vmatprep.subr.bf16.mxu0 0
        %3233 = vmatpush2.bf16.msra.mxu0 0
        %3234 = vmatprep.subr.bf16.mxu0 0
        %3235 = vmatpush2.bf16.msra.mxu0 0
        %3236 = vmatprep.mubr.bf16.mxu0 0
        %3237 = vmatmul.mubr.bf16.gmra.mxu0 %v3202
        %v3238 = vpop.f32.mrf.mxu0
        %v3239 = vadd.f32 0.0, %v3238
        %v3240 = vpop.f32.mrf.mxu0
        %v3241 = vpop.f32.mrf.mxu0
        %v3242 = vadd.f32 0.0, %v3241
        %v3243 = vpop.f32.mrf.mxu0
        %3244 = vdwg.mxu0
        %v3246 = vsel %vm1968, %v3022, 0
        %3248 = vmatprep.subr.bf16.mxu0 0
        %3249 = vmatpush1.bf16.msra.mxu0 0
        %3250 = vmatprep.subr.bf16.mxu0 0
        %3251 = vmatpush1.bf16.msra.mxu0 0
        %3252 = vmatprep.subr.bf16.mxu0 0
        %3253 = vmatpush1.bf16.msra.mxu0 0
        %3254 = vmatprep.subr.bf16.mxu0 0
        %3255 = vmatpush1.bf16.msra.mxu0 0
        %3256 = vmatprep.subr.bf16.mxu0 0
        %3257 = vmatpush1.bf16.msra.mxu0 0
        %3258 = vmatprep.subr.bf16.mxu0 0
        %3259 = vmatpush1.bf16.msra.mxu0 0
        %3260 = vmatprep.subr.bf16.mxu0 0
        %3261 = vmatpush1.bf16.msra.mxu0 %v1623
        %3262 = vmatprep.subr.bf16.mxu0 0
        %3263 = vmatpush1.bf16.msra.mxu0 %v1619
        %3264 = vmatprep.subr.bf16.mxu0 0
        %3265 = vmatpush2.bf16.msra.mxu0 0
        %3266 = vmatprep.subr.bf16.mxu0 0
        %3267 = vmatpush2.bf16.msra.mxu0 0
        %3268 = vmatprep.subr.bf16.mxu0 0
        %3269 = vmatpush2.bf16.msra.mxu0 0
        %3270 = vmatprep.subr.bf16.mxu0 0
        %3271 = vmatpush2.bf16.msra.mxu0 0
        %3272 = vmatprep.subr.bf16.mxu0 0
        %3273 = vmatpush2.bf16.msra.mxu0 0
        %3274 = vmatprep.subr.bf16.mxu0 0
        %3275 = vmatpush2.bf16.msra.mxu0 0
        %3276 = vmatprep.subr.bf16.mxu0 0
        %3277 = vmatpush2.bf16.msra.mxu0 0
        %3278 = vmatprep.subr.bf16.mxu0 0
        %3279 = vmatpush2.bf16.msra.mxu0 0
        %3280 = vmatprep.mubr.bf16.mxu0 0
        %3281 = vmatmul.mubr.bf16.gmra.mxu0 %v3246
        %v3282 = vpop.f32.mrf.mxu0
        %v3283 = vadd.f32 0.0, %v3282
        %v3284 = vpop.f32.mrf.mxu0
        %v3285 = vpop.f32.mrf.mxu0
        %v3286 = vadd.f32 0.0, %v3285
        %v3287 = vpop.f32.mrf.mxu0
        %3288 = vdwg.mxu0
        %v3290 = vsel %vm1968, %v3023, 0
        %3292 = vmatprep.subr.bf16.mxu0 0
        %3293 = vmatpush1.bf16.msra.mxu0 0
        %3294 = vmatprep.subr.bf16.mxu0 0
        %3295 = vmatpush1.bf16.msra.mxu0 0
        %3296 = vmatprep.subr.bf16.mxu0 0
        %3297 = vmatpush1.bf16.msra.mxu0 0
        %3298 = vmatprep.subr.bf16.mxu0 0
        %3299 = vmatpush1.bf16.msra.mxu0 0
        %3300 = vmatprep.subr.bf16.mxu0 0
        %3301 = vmatpush1.bf16.msra.mxu0 0
        %3302 = vmatprep.subr.bf16.mxu0 0
        %3303 = vmatpush1.bf16.msra.mxu0 0
        %3304 = vmatprep.subr.bf16.mxu0 0
        %3305 = vmatpush1.bf16.msra.mxu0 %v1631
        %3306 = vmatprep.subr.bf16.mxu0 0
        %3307 = vmatpush1.bf16.msra.mxu0 %v1627
        %3308 = vmatprep.subr.bf16.mxu0 0
        %3309 = vmatpush2.bf16.msra.mxu0 0
        %3310 = vmatprep.subr.bf16.mxu0 0
        %3311 = vmatpush2.bf16.msra.mxu0 0
        %3312 = vmatprep.subr.bf16.mxu0 0
        %3313 = vmatpush2.bf16.msra.mxu0 0
        %3314 = vmatprep.subr.bf16.mxu0 0
        %3315 = vmatpush2.bf16.msra.mxu0 0
        %3316 = vmatprep.subr.bf16.mxu0 0
        %3317 = vmatpush2.bf16.msra.mxu0 0
        %3318 = vmatprep.subr.bf16.mxu0 0
        %3319 = vmatpush2.bf16.msra.mxu0 0
        %3320 = vmatprep.subr.bf16.mxu0 0
        %3321 = vmatpush2.bf16.msra.mxu0 0
        %3322 = vmatprep.subr.bf16.mxu0 0
        %3323 = vmatpush2.bf16.msra.mxu0 0
        %3324 = vmatprep.mubr.bf16.mxu0 0
        %3325 = vmatmul.mubr.bf16.gmra.mxu0 %v3290
        %v3326 = vpop.f32.mrf.mxu0
        %v3327 = vadd.f32 0.0, %v3326
        %v3328 = vpop.f32.mrf.mxu0
        %v3329 = vpop.f32.mrf.mxu0
        %v3330 = vadd.f32 0.0, %v3329
        %v3331 = vpop.f32.mrf.mxu0
        %3332 = vdwg.mxu0
        %v3334 = vsel %vm1968, %v3024, 0
        %3336 = vmatprep.subr.bf16.mxu0 0
        %3337 = vmatpush1.bf16.msra.mxu0 0
        %3338 = vmatprep.subr.bf16.mxu0 0
        %3339 = vmatpush1.bf16.msra.mxu0 0
        %3340 = vmatprep.subr.bf16.mxu0 0
        %3341 = vmatpush1.bf16.msra.mxu0 0
        %3342 = vmatprep.subr.bf16.mxu0 0
        %3343 = vmatpush1.bf16.msra.mxu0 0
        %3344 = vmatprep.subr.bf16.mxu0 0
        %3345 = vmatpush1.bf16.msra.mxu0 0
        %3346 = vmatprep.subr.bf16.mxu0 0
        %3347 = vmatpush1.bf16.msra.mxu0 0
        %3348 = vmatprep.subr.bf16.mxu0 0
        %3349 = vmatpush1.bf16.msra.mxu0 %v1639
        %3350 = vmatprep.subr.bf16.mxu0 0
        %3351 = vmatpush1.bf16.msra.mxu0 %v1635
        %3352 = vmatprep.subr.bf16.mxu0 0
        %3353 = vmatpush2.bf16.msra.mxu0 0
        %3354 = vmatprep.subr.bf16.mxu0 0
        %3355 = vmatpush2.bf16.msra.mxu0 0
        %3356 = vmatprep.subr.bf16.mxu0 0
        %3357 = vmatpush2.bf16.msra.mxu0 0
        %3358 = vmatprep.subr.bf16.mxu0 0
        %3359 = vmatpush2.bf16.msra.mxu0 0
        %3360 = vmatprep.subr.bf16.mxu0 0
        %3361 = vmatpush2.bf16.msra.mxu0 0
        %3362 = vmatprep.subr.bf16.mxu0 0
        %3363 = vmatpush2.bf16.msra.mxu0 0
        %3364 = vmatprep.subr.bf16.mxu0 0
        %3365 = vmatpush2.bf16.msra.mxu0 0
        %3366 = vmatprep.subr.bf16.mxu0 0
        %3367 = vmatpush2.bf16.msra.mxu0 0
        %3368 = vmatprep.mubr.bf16.mxu0 0
        %3369 = vmatmul.mubr.bf16.gmra.mxu0 %v3334
        %v3370 = vpop.f32.mrf.mxu0
        %v3371 = vadd.f32 0.0, %v3370
        %v3372 = vpop.f32.mrf.mxu0
        %v3373 = vpop.f32.mrf.mxu0
        %v3374 = vadd.f32 0.0, %v3373
        %v3375 = vpop.f32.mrf.mxu0
        %3376 = vdwg.mxu0
        %v3377 = vpack.c.bf16 %v3066, %v3063
        %v3378 = vpack.c.bf16 %v3110, %v3107
        %v3379 = vpack.c.bf16 %v3154, %v3151
        %v3380 = vpack.c.bf16 %v3198, %v3195
        %v3381 = vpack.c.bf16 %v3242, %v3239
        %v3382 = vpack.c.bf16 %v3286, %v3283
        %v3383 = vpack.c.bf16 %v3330, %v3327
        %v3384 = vpack.c.bf16 %v3374, %v3371
        %v3385 = vld [vmem:[#allocation10] sm:$0xff]
        %v3386 = vld [vmem:[#allocation10 + $0x8] sm:$0xff]
        %v3387 = vld [vmem:[#allocation10 + $0x10] sm:$0xff]
        %v3388 = vld [vmem:[#allocation10 + $0x18] sm:$0xff]
        %v3389 = vld [vmem:[#allocation10 + $0x20] sm:$0xff]
        %v3390 = vld [vmem:[#allocation10 + $0x28] sm:$0xff]
        %v3391 = vld [vmem:[#allocation10 + $0x30] sm:$0xff]
        %v3392 = vld [vmem:[#allocation10 + $0x38] sm:$0xff]
        %v3393 = vld [vmem:[#allocation10 + $0x40] sm:$0xff]
        %v3394 = vld [vmem:[#allocation10 + $0x48] sm:$0xff]
        %v3395 = vld [vmem:[#allocation10 + $0x50] sm:$0xff]
        %v3396 = vld [vmem:[#allocation10 + $0x58] sm:$0xff]
        %v3397 = vld [vmem:[#allocation10 + $0x60] sm:$0xff]
        %v3398 = vld [vmem:[#allocation10 + $0x68] sm:$0xff]
        %v3399 = vld [vmem:[#allocation10 + $0x70] sm:$0xff]
        %v3400 = vld [vmem:[#allocation10 + $0x78] sm:$0xff]
        %v3401 = vld [vmem:[#allocation10 + $0x80] sm:$0xff]
        %v3402 = vld [vmem:[#allocation10 + $0x88] sm:$0xff]
        %v3403 = vld [vmem:[#allocation10 + $0x90] sm:$0xff]
        %v3404 = vld [vmem:[#allocation10 + $0x98] sm:$0xff]
        %v3405 = vld [vmem:[#allocation10 + $0xa0] sm:$0xff]
        %v3406 = vld [vmem:[#allocation10 + $0xa8] sm:$0xff]
        %v3407 = vld [vmem:[#allocation10 + $0xb0] sm:$0xff]
        %v3408 = vld [vmem:[#allocation10 + $0xb8] sm:$0xff]
        %v3409 = vld [vmem:[#allocation10 + $0xc0] sm:$0xff]
        %v3410 = vld [vmem:[#allocation10 + $0xc8] sm:$0xff]
        %v3411 = vld [vmem:[#allocation10 + $0xd0] sm:$0xff]
        %v3412 = vld [vmem:[#allocation10 + $0xd8] sm:$0xff]
        %v3413 = vld [vmem:[#allocation10 + $0xe0] sm:$0xff]
        %v3414 = vld [vmem:[#allocation10 + $0xe8] sm:$0xff]
        %v3415 = vld [vmem:[#allocation10 + $0xf0] sm:$0xff]
        %v3416 = vld [vmem:[#allocation10 + $0xf8] sm:$0xff]
        %v3449 = vunpack.c.l.b16 %v3385
        %v3450 = vunpack.c.h.b16 %v3385
        %v3451 = vunpack.c.l.b16 %v3386
        %v3452 = vunpack.c.h.b16 %v3386
        %v3453 = vunpack.c.l.b16 %v3387
        %v3454 = vunpack.c.h.b16 %v3387
        %v3455 = vunpack.c.l.b16 %v3388
        %v3456 = vunpack.c.h.b16 %v3388
        %v3457 = vunpack.c.l.b16 %v3389
        %v3458 = vunpack.c.h.b16 %v3389
        %v3459 = vunpack.c.l.b16 %v3390
        %v3460 = vunpack.c.h.b16 %v3390
        %v3461 = vunpack.c.l.b16 %v3391
        %v3462 = vunpack.c.h.b16 %v3391
        %v3463 = vunpack.c.l.b16 %v3392
        %v3464 = vunpack.c.h.b16 %v3392
        %v3465 = vunpack.c.l.b16 %v3393
        %v3466 = vunpack.c.h.b16 %v3393
        %v3467 = vunpack.c.l.b16 %v3394
        %v3468 = vunpack.c.h.b16 %v3394
        %v3469 = vunpack.c.l.b16 %v3395
        %v3470 = vunpack.c.h.b16 %v3395
        %v3471 = vunpack.c.l.b16 %v3396
        %v3472 = vunpack.c.h.b16 %v3396
        %v3473 = vunpack.c.l.b16 %v3397
        %v3474 = vunpack.c.h.b16 %v3397
        %v3475 = vunpack.c.l.b16 %v3398
        %v3476 = vunpack.c.h.b16 %v3398
        %v3477 = vunpack.c.l.b16 %v3399
        %v3478 = vunpack.c.h.b16 %v3399
        %v3479 = vunpack.c.l.b16 %v3400
        %v3480 = vunpack.c.h.b16 %v3400
        %v3481 = vunpack.c.l.b16 %v3401
        %v3482 = vunpack.c.h.b16 %v3401
        %v3483 = vunpack.c.l.b16 %v3402
        %v3484 = vunpack.c.h.b16 %v3402
        %v3485 = vunpack.c.l.b16 %v3403
        %v3486 = vunpack.c.h.b16 %v3403
        %v3487 = vunpack.c.l.b16 %v3404
        %v3488 = vunpack.c.h.b16 %v3404
        %v3489 = vunpack.c.l.b16 %v3405
        %v3490 = vunpack.c.h.b16 %v3405
        %v3491 = vunpack.c.l.b16 %v3406
        %v3492 = vunpack.c.h.b16 %v3406
        %v3493 = vunpack.c.l.b16 %v3407
        %v3494 = vunpack.c.h.b16 %v3407
        %v3495 = vunpack.c.l.b16 %v3408
        %v3496 = vunpack.c.h.b16 %v3408
        %v3497 = vunpack.c.l.b16 %v3409
        %v3498 = vunpack.c.h.b16 %v3409
        %v3499 = vunpack.c.l.b16 %v3410
        %v3500 = vunpack.c.h.b16 %v3410
        %v3501 = vunpack.c.l.b16 %v3411
        %v3502 = vunpack.c.h.b16 %v3411
        %v3503 = vunpack.c.l.b16 %v3412
        %v3504 = vunpack.c.h.b16 %v3412
        %v3505 = vunpack.c.l.b16 %v3413
        %v3506 = vunpack.c.h.b16 %v3413
        %v3507 = vunpack.c.l.b16 %v3414
        %v3508 = vunpack.c.h.b16 %v3414
        %v3509 = vunpack.c.l.b16 %v3415
        %v3510 = vunpack.c.h.b16 %v3415
        %v3511 = vunpack.c.l.b16 %v3416
        %v3512 = vunpack.c.h.b16 %v3416
        %v3513 = vpack.c.b16 %v3451, %v3449
        %v3514 = vpack.c.b16 %v3452, %v3450
        %v3515 = vpack.c.b16 %v3455, %v3453
        %v3516 = vpack.c.b16 %v3456, %v3454
        %v3517 = vpack.c.b16 %v3459, %v3457
        %v3518 = vpack.c.b16 %v3460, %v3458
        %v3519 = vpack.c.b16 %v3463, %v3461
        %v3520 = vpack.c.b16 %v3464, %v3462
        %v3521 = vpack.c.b16 %v3467, %v3465
        %v3522 = vpack.c.b16 %v3468, %v3466
        %v3523 = vpack.c.b16 %v3471, %v3469
        %v3524 = vpack.c.b16 %v3472, %v3470
        %v3525 = vpack.c.b16 %v3475, %v3473
        %v3526 = vpack.c.b16 %v3476, %v3474
        %v3527 = vpack.c.b16 %v3479, %v3477
        %v3528 = vpack.c.b16 %v3480, %v3478
        %v3529 = vpack.c.b16 %v3483, %v3481
        %v3530 = vpack.c.b16 %v3484, %v3482
        %v3531 = vpack.c.b16 %v3487, %v3485
        %v3532 = vpack.c.b16 %v3488, %v3486
        %v3533 = vpack.c.b16 %v3491, %v3489
        %v3534 = vpack.c.b16 %v3492, %v3490
        %v3535 = vpack.c.b16 %v3495, %v3493
        %v3536 = vpack.c.b16 %v3496, %v3494
        %v3537 = vpack.c.b16 %v3499, %v3497
        %v3538 = vpack.c.b16 %v3500, %v3498
        %v3539 = vpack.c.b16 %v3503, %v3501
        %v3540 = vpack.c.b16 %v3504, %v3502
        %v3541 = vpack.c.b16 %v3507, %v3505
        %v3542 = vpack.c.b16 %v3508, %v3506
        %v3543 = vpack.c.b16 %v3511, %v3509
        %v3544 = vpack.c.b16 %v3512, %v3510
        %3577 = vmatprep.subr.bf16.mxu0 %v3528
        %3578 = vmatpush1.bf16.msra.mxu0 %v3527
        %3579 = vmatprep.subr.bf16.mxu0 %v3526
        %3580 = vmatpush1.bf16.msra.mxu0 %v3525
        %3581 = vmatprep.subr.bf16.mxu0 %v3524
        %3582 = vmatpush1.bf16.msra.mxu0 %v3523
        %3583 = vmatprep.subr.bf16.mxu0 %v3522
        %3584 = vmatpush1.bf16.msra.mxu0 %v3521
        %3585 = vmatprep.subr.bf16.mxu0 %v3520
        %3586 = vmatpush1.bf16.msra.mxu0 %v3519
        %3587 = vmatprep.subr.bf16.mxu0 %v3518
        %3588 = vmatpush1.bf16.msra.mxu0 %v3517
        %3589 = vmatprep.subr.bf16.mxu0 %v3516
        %3590 = vmatpush1.bf16.msra.mxu0 %v3515
        %3591 = vmatprep.subr.bf16.mxu0 %v3514
        %3592 = vmatpush1.bf16.msra.mxu0 %v3513
        %3593 = vmatprep.subr.bf16.mxu0 %v3544
        %3594 = vmatpush2.bf16.msra.mxu0 %v3543
        %3595 = vmatprep.subr.bf16.mxu0 %v3542
        %3596 = vmatpush2.bf16.msra.mxu0 %v3541
        %3597 = vmatprep.subr.bf16.mxu0 %v3540
        %3598 = vmatpush2.bf16.msra.mxu0 %v3539
        %3599 = vmatprep.subr.bf16.mxu0 %v3538
        %3600 = vmatpush2.bf16.msra.mxu0 %v3537
        %3601 = vmatprep.subr.bf16.mxu0 %v3536
        %3602 = vmatpush2.bf16.msra.mxu0 %v3535
        %3603 = vmatprep.subr.bf16.mxu0 %v3534
        %3604 = vmatpush2.bf16.msra.mxu0 %v3533
        %3605 = vmatprep.subr.bf16.mxu0 %v3532
        %3606 = vmatpush2.bf16.msra.mxu0 %v3531
        %3607 = vmatprep.subr.bf16.mxu0 %v3530
        %3608 = vmatpush2.bf16.msra.mxu0 %v3529
        %3609 = vmatprep.mubr.bf16.mxu0 %v3377
        %3610 = vmatmul.mubr.bf16.gmra.mxu0 %v2505
        %v3611 = vpop.f32.mrf.mxu0
        %v3612 = vadd.f32 0.0, %v3611
        %v3613 = vpop.f32.mrf.mxu0
        %v3614 = vadd.f32 0.0, %v3613
        %v3615 = vpop.f32.mrf.mxu0
        %v3616 = vadd.f32 0.0, %v3615
        %v3617 = vpop.f32.mrf.mxu0
        %v3618 = vadd.f32 0.0, %v3617
        %3619 = vmatprep.mubr.bf16.mxu0 %v3378
        %3620 = vmatmul.mubr.bf16.gmra.mxu0 %v2506
        %v3621 = vpop.f32.mrf.mxu0
        %v3622 = vadd.f32 0.0, %v3621
        %v3623 = vpop.f32.mrf.mxu0
        %v3624 = vadd.f32 0.0, %v3623
        %v3625 = vpop.f32.mrf.mxu0
        %v3626 = vadd.f32 0.0, %v3625
        %v3627 = vpop.f32.mrf.mxu0
        %v3628 = vadd.f32 0.0, %v3627
        %3629 = vmatprep.mubr.bf16.mxu0 %v3379
        %3630 = vmatmul.mubr.bf16.gmra.mxu0 %v2507
        %v3631 = vpop.f32.mrf.mxu0
        %v3632 = vadd.f32 0.0, %v3631
        %v3633 = vpop.f32.mrf.mxu0
        %v3634 = vadd.f32 0.0, %v3633
        %v3635 = vpop.f32.mrf.mxu0
        %v3636 = vadd.f32 0.0, %v3635
        %v3637 = vpop.f32.mrf.mxu0
        %v3638 = vadd.f32 0.0, %v3637
        %3639 = vmatprep.mubr.bf16.mxu0 %v3380
        %3640 = vmatmul.mubr.bf16.gmra.mxu0 %v2508
        %v3641 = vpop.f32.mrf.mxu0
        %v3642 = vadd.f32 0.0, %v3641
        %v3643 = vpop.f32.mrf.mxu0
        %v3644 = vadd.f32 0.0, %v3643
        %v3645 = vpop.f32.mrf.mxu0
        %v3646 = vadd.f32 0.0, %v3645
        %v3647 = vpop.f32.mrf.mxu0
        %v3648 = vadd.f32 0.0, %v3647
        %3649 = vmatprep.mubr.bf16.mxu0 %v3381
        %3650 = vmatmul.mubr.bf16.gmra.mxu0 %v2509
        %v3651 = vpop.f32.mrf.mxu0
        %v3652 = vadd.f32 0.0, %v3651
        %v3653 = vpop.f32.mrf.mxu0
        %v3654 = vadd.f32 0.0, %v3653
        %v3655 = vpop.f32.mrf.mxu0
        %v3656 = vadd.f32 0.0, %v3655
        %v3657 = vpop.f32.mrf.mxu0
        %v3658 = vadd.f32 0.0, %v3657
        %3659 = vmatprep.mubr.bf16.mxu0 %v3382
        %3660 = vmatmul.mubr.bf16.gmra.mxu0 %v2510
        %v3661 = vpop.f32.mrf.mxu0
        %v3662 = vadd.f32 0.0, %v3661
        %v3663 = vpop.f32.mrf.mxu0
        %v3664 = vadd.f32 0.0, %v3663
        %v3665 = vpop.f32.mrf.mxu0
        %v3666 = vadd.f32 0.0, %v3665
        %v3667 = vpop.f32.mrf.mxu0
        %v3668 = vadd.f32 0.0, %v3667
        %3669 = vmatprep.mubr.bf16.mxu0 %v3383
        %3670 = vmatmul.mubr.bf16.gmra.mxu0 %v2511
        %v3671 = vpop.f32.mrf.mxu0
        %v3672 = vadd.f32 0.0, %v3671
        %v3673 = vpop.f32.mrf.mxu0
        %v3674 = vadd.f32 0.0, %v3673
        %v3675 = vpop.f32.mrf.mxu0
        %v3676 = vadd.f32 0.0, %v3675
        %v3677 = vpop.f32.mrf.mxu0
        %v3678 = vadd.f32 0.0, %v3677
        %3679 = vmatprep.mubr.bf16.mxu0 %v3384
        %3680 = vmatmul.mubr.bf16.gmra.mxu0 %v2512
        %v3681 = vpop.f32.mrf.mxu0
        %v3682 = vadd.f32 0.0, %v3681
        %v3683 = vpop.f32.mrf.mxu0
        %v3684 = vadd.f32 0.0, %v3683
        %v3685 = vpop.f32.mrf.mxu0
        %v3686 = vadd.f32 0.0, %v3685
        %v3687 = vpop.f32.mrf.mxu0
        %v3688 = vadd.f32 0.0, %v3687
        %3689 = vdwg.mxu0
        %v3690 = vadd.f32 %v467, %v3612
        %v3691 = vadd.f32 %v468, %v3614
        %v3692 = vadd.f32 %v469, %v3616
        %v3693 = vadd.f32 %v470, %v3618
        %v3694 = vadd.f32 %v471, %v3622
        %v3695 = vadd.f32 %v472, %v3624
        %v3696 = vadd.f32 %v473, %v3626
        %v3697 = vadd.f32 %v474, %v3628
        %v3698 = vadd.f32 %v475, %v3632
        %v3699 = vadd.f32 %v476, %v3634
        %v3700 = vadd.f32 %v477, %v3636
        %v3701 = vadd.f32 %v478, %v3638
        %v3702 = vadd.f32 %v479, %v3642
        %v3703 = vadd.f32 %v480, %v3644
        %v3704 = vadd.f32 %v481, %v3646
        %v3705 = vadd.f32 %v482, %v3648
        %v3706 = vadd.f32 %v483, %v3652
        %v3707 = vadd.f32 %v484, %v3654
        %v3708 = vadd.f32 %v485, %v3656
        %v3709 = vadd.f32 %v486, %v3658
        %v3710 = vadd.f32 %v487, %v3662
        %v3711 = vadd.f32 %v488, %v3664
        %v3712 = vadd.f32 %v489, %v3666
        %v3713 = vadd.f32 %v490, %v3668
        %v3714 = vadd.f32 %v491, %v3672
        %v3715 = vadd.f32 %v492, %v3674
        %v3716 = vadd.f32 %v493, %v3676
        %v3717 = vadd.f32 %v494, %v3678
        %v3718 = vadd.f32 %v495, %v3682
        %v3719 = vadd.f32 %v496, %v3684
        %v3720 = vadd.f32 %v497, %v3686
        %v3721 = vadd.f32 %v498, %v3688
        %v3722 = vld [vmem:[%s7] sm:$0x3]
        %v3724 = vlaneseq
        %v3725 = vshrl.u32 %v3724, 7
        %v3726 = vsub.s32 0, %v3725
        %v3727 = vrot.slane %v3722, %v3726
        %v3728 = vlaneseq
        %v3729 = vshrl.u32 %v3728, 7
        %v3730 = vsub.s32 1, %v3729
        %v3731 = vrot.slane %v3722, %v3730
        %v3734 = vadd.f32 %v3690, %v3727
        %v3735 = vadd.f32 %v3691, %v3731
        %v3736 = vadd.f32 %v3692, %v3727
        %v3737 = vadd.f32 %v3693, %v3731
        %v3738 = vadd.f32 %v3694, %v3727
        %v3739 = vadd.f32 %v3695, %v3731
        %v3740 = vadd.f32 %v3696, %v3727
        %v3741 = vadd.f32 %v3697, %v3731
        %v3742 = vadd.f32 %v3698, %v3727
        %v3743 = vadd.f32 %v3699, %v3731
        %v3744 = vadd.f32 %v3700, %v3727
        %v3745 = vadd.f32 %v3701, %v3731
        %v3746 = vadd.f32 %v3702, %v3727
        %v3747 = vadd.f32 %v3703, %v3731
        %v3748 = vadd.f32 %v3704, %v3727
        %v3749 = vadd.f32 %v3705, %v3731
        %v3750 = vadd.f32 %v3706, %v3727
        %v3751 = vadd.f32 %v3707, %v3731
        %v3752 = vadd.f32 %v3708, %v3727
        %v3753 = vadd.f32 %v3709, %v3731
        %v3754 = vadd.f32 %v3710, %v3727
        %v3755 = vadd.f32 %v3711, %v3731
        %v3756 = vadd.f32 %v3712, %v3727
        %v3757 = vadd.f32 %v3713, %v3731
        %v3758 = vadd.f32 %v3714, %v3727
        %v3759 = vadd.f32 %v3715, %v3731
        %v3760 = vadd.f32 %v3716, %v3727
        %v3761 = vadd.f32 %v3717, %v3731
        %v3762 = vadd.f32 %v3718, %v3727
        %v3763 = vadd.f32 %v3719, %v3731
        %v3764 = vadd.f32 %v3720, %v3727
        %v3765 = vadd.f32 %v3721, %v3731
        %v3766 = vadd.f32 %v3734, %v3735
        %3767 = vadd.xlane.f32.xlu0 %v3766
        %v3768 = vpop.xlane.xlu0 %3767
        %v3769 = vadd.f32 %v3736, %v3737
        %3770 = vadd.xlane.f32.xlu0 %v3769
        %v3771 = vpop.xlane.xlu0 %3770
        %v3772 = vadd.f32 %v3738, %v3739
        %3773 = vadd.xlane.f32.xlu0 %v3772
        %v3774 = vpop.xlane.xlu0 %3773
        %v3775 = vadd.f32 %v3740, %v3741
        %3776 = vadd.xlane.f32.xlu0 %v3775
        %v3777 = vpop.xlane.xlu0 %3776
        %v3778 = vadd.f32 %v3742, %v3743
        %3779 = vadd.xlane.f32.xlu0 %v3778
        %v3780 = vpop.xlane.xlu0 %3779
        %v3781 = vadd.f32 %v3744, %v3745
        %3782 = vadd.xlane.f32.xlu0 %v3781
        %v3783 = vpop.xlane.xlu0 %3782
        %v3784 = vadd.f32 %v3746, %v3747
        %3785 = vadd.xlane.f32.xlu0 %v3784
        %v3786 = vpop.xlane.xlu0 %3785
        %v3787 = vadd.f32 %v3748, %v3749
        %3788 = vadd.xlane.f32.xlu0 %v3787
        %v3789 = vpop.xlane.xlu0 %3788
        %v3790 = vadd.f32 %v3750, %v3751
        %3791 = vadd.xlane.f32.xlu0 %v3790
        %v3792 = vpop.xlane.xlu0 %3791
        %v3793 = vadd.f32 %v3752, %v3753
        %3794 = vadd.xlane.f32.xlu0 %v3793
        %v3795 = vpop.xlane.xlu0 %3794
        %v3796 = vadd.f32 %v3754, %v3755
        %3797 = vadd.xlane.f32.xlu0 %v3796
        %v3798 = vpop.xlane.xlu0 %3797
        %v3799 = vadd.f32 %v3756, %v3757
        %3800 = vadd.xlane.f32.xlu0 %v3799
        %v3801 = vpop.xlane.xlu0 %3800
        %v3802 = vadd.f32 %v3758, %v3759
        %3803 = vadd.xlane.f32.xlu0 %v3802
        %v3804 = vpop.xlane.xlu0 %3803
        %v3805 = vadd.f32 %v3760, %v3761
        %3806 = vadd.xlane.f32.xlu0 %v3805
        %v3807 = vpop.xlane.xlu0 %3806
        %v3808 = vadd.f32 %v3762, %v3763
        %3809 = vadd.xlane.f32.xlu0 %v3808
        %v3810 = vpop.xlane.xlu0 %3809
        %v3811 = vadd.f32 %v3764, %v3765
        %3812 = vadd.xlane.f32.xlu0 %v3811
        %v3813 = vpop.xlane.xlu0 %3812
        %v3814 = vrcp.pop 256.0
        %v3815 = vmul.f32 %v3768, %v3814
        %v3816 = vmul.f32 %v3771, %v3814
        %v3817 = vmul.f32 %v3774, %v3814
        %v3818 = vmul.f32 %v3777, %v3814
        %v3819 = vmul.f32 %v3780, %v3814
        %v3820 = vmul.f32 %v3783, %v3814
        %v3821 = vmul.f32 %v3786, %v3814
        %v3822 = vmul.f32 %v3789, %v3814
        %v3823 = vmul.f32 %v3792, %v3814
        %v3824 = vmul.f32 %v3795, %v3814
        %v3825 = vmul.f32 %v3798, %v3814
        %v3826 = vmul.f32 %v3801, %v3814
        %v3827 = vmul.f32 %v3804, %v3814
        %v3828 = vmul.f32 %v3807, %v3814
        %v3829 = vmul.f32 %v3810, %v3814
        %v3830 = vmul.f32 %v3813, %v3814
        %v3831 = vsub.f32 %v3734, %v3815
        %v3832 = vsub.f32 %v3735, %v3815
        %v3833 = vsub.f32 %v3736, %v3816
        %v3834 = vsub.f32 %v3737, %v3816
        %v3835 = vsub.f32 %v3738, %v3817
        %v3836 = vsub.f32 %v3739, %v3817
        %v3837 = vsub.f32 %v3740, %v3818
        %v3838 = vsub.f32 %v3741, %v3818
        %v3839 = vsub.f32 %v3742, %v3819
        %v3840 = vsub.f32 %v3743, %v3819
        %v3841 = vsub.f32 %v3744, %v3820
        %v3842 = vsub.f32 %v3745, %v3820
        %v3843 = vsub.f32 %v3746, %v3821
        %v3844 = vsub.f32 %v3747, %v3821
        %v3845 = vsub.f32 %v3748, %v3822
        %v3846 = vsub.f32 %v3749, %v3822
        %v3847 = vsub.f32 %v3750, %v3823
        %v3848 = vsub.f32 %v3751, %v3823
        %v3849 = vsub.f32 %v3752, %v3824
        %v3850 = vsub.f32 %v3753, %v3824
        %v3851 = vsub.f32 %v3754, %v3825
        %v3852 = vsub.f32 %v3755, %v3825
        %v3853 = vsub.f32 %v3756, %v3826
        %v3854 = vsub.f32 %v3757, %v3826
        %v3855 = vsub.f32 %v3758, %v3827
        %v3856 = vsub.f32 %v3759, %v3827
        %v3857 = vsub.f32 %v3760, %v3828
        %v3858 = vsub.f32 %v3761, %v3828
        %v3859 = vsub.f32 %v3762, %v3829
        %v3860 = vsub.f32 %v3763, %v3829
        %v3861 = vsub.f32 %v3764, %v3830
        %v3862 = vsub.f32 %v3765, %v3830
        %v3863 = vmul.f32 %v3831, %v3831
        %v3864 = vmul.f32 %v3832, %v3832
        %v3865 = vmul.f32 %v3833, %v3833
        %v3866 = vmul.f32 %v3834, %v3834
        %v3867 = vmul.f32 %v3835, %v3835
        %v3868 = vmul.f32 %v3836, %v3836
        %v3869 = vmul.f32 %v3837, %v3837
        %v3870 = vmul.f32 %v3838, %v3838
        %v3871 = vmul.f32 %v3839, %v3839
        %v3872 = vmul.f32 %v3840, %v3840
        %v3873 = vmul.f32 %v3841, %v3841
        %v3874 = vmul.f32 %v3842, %v3842
        %v3875 = vmul.f32 %v3843, %v3843
        %v3876 = vmul.f32 %v3844, %v3844
        %v3877 = vmul.f32 %v3845, %v3845
        %v3878 = vmul.f32 %v3846, %v3846
        %v3879 = vmul.f32 %v3847, %v3847
        %v3880 = vmul.f32 %v3848, %v3848
        %v3881 = vmul.f32 %v3849, %v3849
        %v3882 = vmul.f32 %v3850, %v3850
        %v3883 = vmul.f32 %v3851, %v3851
        %v3884 = vmul.f32 %v3852, %v3852
        %v3885 = vmul.f32 %v3853, %v3853
        %v3886 = vmul.f32 %v3854, %v3854
        %v3887 = vmul.f32 %v3855, %v3855
        %v3888 = vmul.f32 %v3856, %v3856
        %v3889 = vmul.f32 %v3857, %v3857
        %v3890 = vmul.f32 %v3858, %v3858
        %v3891 = vmul.f32 %v3859, %v3859
        %v3892 = vmul.f32 %v3860, %v3860
        %v3893 = vmul.f32 %v3861, %v3861
        %v3894 = vmul.f32 %v3862, %v3862
        %v3895 = vadd.f32 %v3863, %v3864
        %3896 = vadd.xlane.f32.xlu0 %v3895
        %v3897 = vpop.xlane.xlu0 %3896
        %v3898 = vadd.f32 %v3865, %v3866
        %3899 = vadd.xlane.f32.xlu0 %v3898
        %v3900 = vpop.xlane.xlu0 %3899
        %v3901 = vadd.f32 %v3867, %v3868
        %3902 = vadd.xlane.f32.xlu0 %v3901
        %v3903 = vpop.xlane.xlu0 %3902
        %v3904 = vadd.f32 %v3869, %v3870
        %3905 = vadd.xlane.f32.xlu0 %v3904
        %v3906 = vpop.xlane.xlu0 %3905
        %v3907 = vadd.f32 %v3871, %v3872
        %3908 = vadd.xlane.f32.xlu0 %v3907
        %v3909 = vpop.xlane.xlu0 %3908
        %v3910 = vadd.f32 %v3873, %v3874
        %3911 = vadd.xlane.f32.xlu0 %v3910
        %v3912 = vpop.xlane.xlu0 %3911
        %v3913 = vadd.f32 %v3875, %v3876
        %3914 = vadd.xlane.f32.xlu0 %v3913
        %v3915 = vpop.xlane.xlu0 %3914
        %v3916 = vadd.f32 %v3877, %v3878
        %3917 = vadd.xlane.f32.xlu0 %v3916
        %v3918 = vpop.xlane.xlu0 %3917
        %v3919 = vadd.f32 %v3879, %v3880
        %3920 = vadd.xlane.f32.xlu0 %v3919
        %v3921 = vpop.xlane.xlu0 %3920
        %v3922 = vadd.f32 %v3881, %v3882
        %3923 = vadd.xlane.f32.xlu0 %v3922
        %v3924 = vpop.xlane.xlu0 %3923
        %v3925 = vadd.f32 %v3883, %v3884
        %3926 = vadd.xlane.f32.xlu0 %v3925
        %v3927 = vpop.xlane.xlu0 %3926
        %v3928 = vadd.f32 %v3885, %v3886
        %3929 = vadd.xlane.f32.xlu0 %v3928
        %v3930 = vpop.xlane.xlu0 %3929
        %v3931 = vadd.f32 %v3887, %v3888
        %3932 = vadd.xlane.f32.xlu0 %v3931
        %v3933 = vpop.xlane.xlu0 %3932
        %v3934 = vadd.f32 %v3889, %v3890
        %3935 = vadd.xlane.f32.xlu0 %v3934
        %v3936 = vpop.xlane.xlu0 %3935
        %v3937 = vadd.f32 %v3891, %v3892
        %3938 = vadd.xlane.f32.xlu0 %v3937
        %v3939 = vpop.xlane.xlu0 %3938
        %v3940 = vadd.f32 %v3893, %v3894
        %3941 = vadd.xlane.f32.xlu0 %v3940
        %v3942 = vpop.xlane.xlu0 %3941
        %v3943 = vmul.f32 %v3897, %v3814
        %v3944 = vmul.f32 %v3900, %v3814
        %v3945 = vmul.f32 %v3903, %v3814
        %v3946 = vmul.f32 %v3906, %v3814
        %v3947 = vmul.f32 %v3909, %v3814
        %v3948 = vmul.f32 %v3912, %v3814
        %v3949 = vmul.f32 %v3915, %v3814
        %v3950 = vmul.f32 %v3918, %v3814
        %v3951 = vmul.f32 %v3921, %v3814
        %v3952 = vmul.f32 %v3924, %v3814
        %v3953 = vmul.f32 %v3927, %v3814
        %v3954 = vmul.f32 %v3930, %v3814
        %v3955 = vmul.f32 %v3933, %v3814
        %v3956 = vmul.f32 %v3936, %v3814
        %v3957 = vmul.f32 %v3939, %v3814
        %v3958 = vmul.f32 %v3942, %v3814
        %v3959 = vadd.f32 %v3943, 1e-05
        %v3960 = vadd.f32 %v3944, 1e-05
        %v3961 = vadd.f32 %v3945, 1e-05
        %v3962 = vadd.f32 %v3946, 1e-05
        %v3963 = vadd.f32 %v3947, 1e-05
        %v3964 = vadd.f32 %v3948, 1e-05
        %v3965 = vadd.f32 %v3949, 1e-05
        %v3966 = vadd.f32 %v3950, 1e-05
        %v3967 = vadd.f32 %v3951, 1e-05
        %v3968 = vadd.f32 %v3952, 1e-05
        %v3969 = vadd.f32 %v3953, 1e-05
        %v3970 = vadd.f32 %v3954, 1e-05
        %v3971 = vadd.f32 %v3955, 1e-05
        %v3972 = vadd.f32 %v3956, 1e-05
        %v3973 = vadd.f32 %v3957, 1e-05
        %v3974 = vadd.f32 %v3958, 1e-05
        %v3975 = vrsqrt.pop %v3959
        %v3976 = vrsqrt.pop %v3960
        %v3977 = vrsqrt.pop %v3961
        %v3978 = vrsqrt.pop %v3962
        %v3979 = vrsqrt.pop %v3963
        %v3980 = vrsqrt.pop %v3964
        %v3981 = vrsqrt.pop %v3965
        %v3982 = vrsqrt.pop %v3966
        %v3983 = vrsqrt.pop %v3967
        %v3984 = vrsqrt.pop %v3968
        %v3985 = vrsqrt.pop %v3969
        %v3986 = vrsqrt.pop %v3970
        %v3987 = vrsqrt.pop %v3971
        %v3988 = vrsqrt.pop %v3972
        %v3989 = vrsqrt.pop %v3973
        %v3990 = vrsqrt.pop %v3974
        %v3991 = vmul.f32 %v3831, %v3975
        %v3992 = vmul.f32 %v3832, %v3975
        %v3993 = vmul.f32 %v3833, %v3976
        %v3994 = vmul.f32 %v3834, %v3976
        %v3995 = vmul.f32 %v3835, %v3977
        %v3996 = vmul.f32 %v3836, %v3977
        %v3997 = vmul.f32 %v3837, %v3978
        %v3998 = vmul.f32 %v3838, %v3978
        %v3999 = vmul.f32 %v3839, %v3979
        %v4000 = vmul.f32 %v3840, %v3979
        %v4001 = vmul.f32 %v3841, %v3980
        %v4002 = vmul.f32 %v3842, %v3980
        %v4003 = vmul.f32 %v3843, %v3981
        %v4004 = vmul.f32 %v3844, %v3981
        %v4005 = vmul.f32 %v3845, %v3982
        %v4006 = vmul.f32 %v3846, %v3982
        %v4007 = vmul.f32 %v3847, %v3983
        %v4008 = vmul.f32 %v3848, %v3983
        %v4009 = vmul.f32 %v3849, %v3984
        %v4010 = vmul.f32 %v3850, %v3984
        %v4011 = vmul.f32 %v3851, %v3985
        %v4012 = vmul.f32 %v3852, %v3985
        %v4013 = vmul.f32 %v3853, %v3986
        %v4014 = vmul.f32 %v3854, %v3986
        %v4015 = vmul.f32 %v3855, %v3987
        %v4016 = vmul.f32 %v3856, %v3987
        %v4017 = vmul.f32 %v3857, %v3988
        %v4018 = vmul.f32 %v3858, %v3988
        %v4019 = vmul.f32 %v3859, %v3989
        %v4020 = vmul.f32 %v3860, %v3989
        %v4021 = vmul.f32 %v3861, %v3990
        %v4022 = vmul.f32 %v3862, %v3990
        %v4023 = vld [vmem:[%s8] sm:$0x3]
        %v4025 = vlaneseq
        %v4026 = vshrl.u32 %v4025, 7
        %v4027 = vsub.s32 0, %v4026
        %v4028 = vrot.slane %v4023, %v4027
        %v4029 = vlaneseq
        %v4030 = vshrl.u32 %v4029, 7
        %v4031 = vsub.s32 1, %v4030
        %v4032 = vrot.slane %v4023, %v4031
        %v4035 = vmul.f32 %v3991, %v4028
        %v4036 = vmul.f32 %v3992, %v4032
        %v4037 = vmul.f32 %v3993, %v4028
        %v4038 = vmul.f32 %v3994, %v4032
        %v4039 = vmul.f32 %v3995, %v4028
        %v4040 = vmul.f32 %v3996, %v4032
        %v4041 = vmul.f32 %v3997, %v4028
        %v4042 = vmul.f32 %v3998, %v4032
        %v4043 = vmul.f32 %v3999, %v4028
        %v4044 = vmul.f32 %v4000, %v4032
        %v4045 = vmul.f32 %v4001, %v4028
        %v4046 = vmul.f32 %v4002, %v4032
        %v4047 = vmul.f32 %v4003, %v4028
        %v4048 = vmul.f32 %v4004, %v4032
        %v4049 = vmul.f32 %v4005, %v4028
        %v4050 = vmul.f32 %v4006, %v4032
        %v4051 = vmul.f32 %v4007, %v4028
        %v4052 = vmul.f32 %v4008, %v4032
        %v4053 = vmul.f32 %v4009, %v4028
        %v4054 = vmul.f32 %v4010, %v4032
        %v4055 = vmul.f32 %v4011, %v4028
        %v4056 = vmul.f32 %v4012, %v4032
        %v4057 = vmul.f32 %v4013, %v4028
        %v4058 = vmul.f32 %v4014, %v4032
        %v4059 = vmul.f32 %v4015, %v4028
        %v4060 = vmul.f32 %v4016, %v4032
        %v4061 = vmul.f32 %v4017, %v4028
        %v4062 = vmul.f32 %v4018, %v4032
        %v4063 = vmul.f32 %v4019, %v4028
        %v4064 = vmul.f32 %v4020, %v4032
        %v4065 = vmul.f32 %v4021, %v4028
        %v4066 = vmul.f32 %v4022, %v4032
        %v4067 = vld [vmem:[%s9] sm:$0x3]
        %v4069 = vlaneseq
        %v4070 = vshrl.u32 %v4069, 7
        %v4071 = vsub.s32 0, %v4070
        %v4072 = vrot.slane %v4067, %v4071
        %v4073 = vlaneseq
        %v4074 = vshrl.u32 %v4073, 7
        %v4075 = vsub.s32 1, %v4074
        %v4076 = vrot.slane %v4067, %v4075
        %v4079 = vadd.f32 %v4035, %v4072
        %v4080 = vadd.f32 %v4036, %v4076
        %v4081 = vadd.f32 %v4037, %v4072
        %v4082 = vadd.f32 %v4038, %v4076
        %v4083 = vadd.f32 %v4039, %v4072
        %v4084 = vadd.f32 %v4040, %v4076
        %v4085 = vadd.f32 %v4041, %v4072
        %v4086 = vadd.f32 %v4042, %v4076
        %v4087 = vadd.f32 %v4043, %v4072
        %v4088 = vadd.f32 %v4044, %v4076
        %v4089 = vadd.f32 %v4045, %v4072
        %v4090 = vadd.f32 %v4046, %v4076
        %v4091 = vadd.f32 %v4047, %v4072
        %v4092 = vadd.f32 %v4048, %v4076
        %v4093 = vadd.f32 %v4049, %v4072
        %v4094 = vadd.f32 %v4050, %v4076
        %v4095 = vadd.f32 %v4051, %v4072
        %v4096 = vadd.f32 %v4052, %v4076
        %v4097 = vadd.f32 %v4053, %v4072
        %v4098 = vadd.f32 %v4054, %v4076
        %v4099 = vadd.f32 %v4055, %v4072
        %v4100 = vadd.f32 %v4056, %v4076
        %v4101 = vadd.f32 %v4057, %v4072
        %v4102 = vadd.f32 %v4058, %v4076
        %v4103 = vadd.f32 %v4059, %v4072
        %v4104 = vadd.f32 %v4060, %v4076
        %v4105 = vadd.f32 %v4061, %v4072
        %v4106 = vadd.f32 %v4062, %v4076
        %v4107 = vadd.f32 %v4063, %v4072
        %v4108 = vadd.f32 %v4064, %v4076
        %v4109 = vadd.f32 %v4065, %v4072
        %v4110 = vadd.f32 %v4066, %v4076
        %4111 = vst [vmem:[%s462] sm:$0xff] %v4079
        %4112 = vst [vmem:[%s462 + $0x8] sm:$0xff] %v4080
        %4113 = vst [vmem:[%s462 + $0x10] sm:$0xff] %v4081
        %4114 = vst [vmem:[%s462 + $0x18] sm:$0xff] %v4082
        %4115 = vst [vmem:[%s462 + $0x20] sm:$0xff] %v4083
        %4116 = vst [vmem:[%s462 + $0x28] sm:$0xff] %v4084
        %4117 = vst [vmem:[%s462 + $0x30] sm:$0xff] %v4085
        %4118 = vst [vmem:[%s462 + $0x38] sm:$0xff] %v4086
        %4119 = vst [vmem:[%s462 + $0x40] sm:$0xff] %v4087
        %4120 = vst [vmem:[%s462 + $0x48] sm:$0xff] %v4088
        %4121 = vst [vmem:[%s462 + $0x50] sm:$0xff] %v4089
        %4122 = vst [vmem:[%s462 + $0x58] sm:$0xff] %v4090
        %4123 = vst [vmem:[%s462 + $0x60] sm:$0xff] %v4091
        %4124 = vst [vmem:[%s462 + $0x68] sm:$0xff] %v4092
        %4125 = vst [vmem:[%s462 + $0x70] sm:$0xff] %v4093
        %4126 = vst [vmem:[%s462 + $0x78] sm:$0xff] %v4094
        %4127 = vst [vmem:[%s462 + $0x80] sm:$0xff] %v4095
        %4128 = vst [vmem:[%s462 + $0x88] sm:$0xff] %v4096
        %4129 = vst [vmem:[%s462 + $0x90] sm:$0xff] %v4097
        %4130 = vst [vmem:[%s462 + $0x98] sm:$0xff] %v4098
        %4131 = vst [vmem:[%s462 + $0xa0] sm:$0xff] %v4099
        %4132 = vst [vmem:[%s462 + $0xa8] sm:$0xff] %v4100
        %4133 = vst [vmem:[%s462 + $0xb0] sm:$0xff] %v4101
        %4134 = vst [vmem:[%s462 + $0xb8] sm:$0xff] %v4102
        %4135 = vst [vmem:[%s462 + $0xc0] sm:$0xff] %v4103
        %4136 = vst [vmem:[%s462 + $0xc8] sm:$0xff] %v4104
        %4137 = vst [vmem:[%s462 + $0xd0] sm:$0xff] %v4105
        %4138 = vst [vmem:[%s462 + $0xd8] sm:$0xff] %v4106
        %4139 = vst [vmem:[%s462 + $0xe0] sm:$0xff] %v4107
        %4140 = vst [vmem:[%s462 + $0xe8] sm:$0xff] %v4108
        %4141 = vst [vmem:[%s462 + $0xf0] sm:$0xff] %v4109
        %4142 = vst [vmem:[%s462 + $0xf8] sm:$0xff] %v4110
        %s4143 = sand.u32 %s259, 1
        %s4144 = scalar_lea.sflag [#allocation4], %s4143
        %s4145 = sand.u32 %s259, 1
        %s4146 = smul.addr %s4145, 256
        %s4147 = scalar_lea.vmem [#allocation11], %s4146
        // Predicated region
        $region81: #{tpu_custom_call.1} parent=59 // pred_check
          %p4148 = pneg %p269
        $region82: #{tpu_custom_call.1} parent=59 // pred_check_branch
          %4150 = sbr.rel (%p4148) target = $region84
        $region83: #{tpu_custom_call.1} parent=59 // pred_region
          %s4151 = smul.u32 8, %s31
          %s4153 = ssub.s32 4096, 4096
          %4154 = vsyncadd %s4144, %s4153
          %s4155 = smul.addr %s4151, 4
          %s4156 = smul.addr %s4155, 128
          %s4157 = scalar_lea.hbm %s10, %s4156
          %s4158 = sshll.u32 %s4147, 4
          %s4159 = int_to_ptr.vmem [resolvable:$true] %s4158
          %4164 = dma.vmem_to_hbm [thread:$0]  %s4159, 4096, %s4157, %s4144, 256, 256, 16
        $region84: #{tpu_custom_call.1} parent=59 // pred_fallthru
          _
      $region60: #{tpu_custom_call.1} parent=5 // pred_fallthru
        _
      %p4165 = scmp.le.s32.totalorder 2, %s26
      // Predicated region
      $region85: #{tpu_custom_call.1} parent=5 // pred_check
        %p4166 = pneg %p4165
      $region86: #{tpu_custom_call.1} parent=5 // pred_check_branch
        %4168 = sbr.rel (%p4166) target = $region88
      $region87: #{tpu_custom_call.1} parent=5 // pred_region
        %s4169 = ssub.s32 %s26, 2
        // Predicated region
        $region89: #{tpu_custom_call.1} parent=87 // pred_check
          %p4170 = pneg %p275
        $region90: #{tpu_custom_call.1} parent=87 // pred_check_branch
          %4172 = sbr.rel (%p4170) target = $region92
        $region91: #{tpu_custom_call.1} parent=87 // pred_region
          %s4173 = sand.u32 %s260, 1
          %s4174 = scalar_lea.sflag [#allocation4], %s4173
          %s4175 = sand.u32 %s260, 1
          %s4176 = smul.addr %s4175, 256
          %s4177 = scalar_lea.vmem [#allocation11], %s4176
          %4178 = dma.done %s4174, 4096
        $region92: #{tpu_custom_call.1} parent=87 // pred_fallthru
          _
      $region88: #{tpu_custom_call.1} parent=5 // pred_fallthru
        _
    $region6: #{tpu_custom_call.1} parent=1 // loop_footer
      %s30 = sadd.s32 1, %s26
    $region7: #{tpu_custom_call.1} parent=1 // loop_footer_branch
      %25 = sbr.rel target = $region3
    $region8: #{tpu_custom_call.1} parent=1 // loop_exit
      _
    %4179 = vsyncpa [#allocation3], 1
    %s4180 = scalar_lea.sflag [#allocation3], 1
    %4181 = vsyncpa %s4180, 1
    %4182 = vsyncpa [#allocation6], 1
    %s4183 = scalar_lea.sflag [#allocation6], 1
    %4184 = vsyncpa %s4183, 1
    %4185 = vsyncpa [#allocation9], 1
    %4186 = vsyncpa [#allocation4], 1
    %s4187 = scalar_lea.sflag [#allocation4], 1
    %4188 = vsyncpa %s4187, 1

</llo_original>
